<compile_context>
chip_gen: v7x
topology: tpu7x:2x2x1
jax: 0.10.0
libtpu: 0.0.40
codegen_flags: <defaults>
</compile_context>

<pallas_src>
import functools

import jax
import jax.numpy as jnp
from jax.experimental import pallas as pl
from jax.experimental.pallas import tpu as pltpu

HIDDEN = 128          # nn.LSTM(hidden_size=128)
NUM_CLASSES = 25      # nn.Linear(128, 25)


def _round_up(x, m):
    return (x + m - 1) // m * m


# ---------------------------------------------------------------------------
# Fused 2-layer LSTM + final Linear kernel
# ---------------------------------------------------------------------------

def _lstm_kernel(x_ref, wih0_ref, whh0_ref, b0_ref,
                 wih1_ref, whh1_ref, b1_ref, wout_ref, bout_ref,
                 o_ref,
                 gx_scr, h0all_scr, h0_scr, c0_scr, h1_scr, c1_scr,
                 *, T, TT):
    TB = x_ref.shape[0]
    H = h0_scr.shape[-1]
    H4 = 4 * H
    s = pl.program_id(1)                       # time-chunk index (innermost)
    pad_time = (T % TT) != 0                   # static: do padded steps exist?

    @pl.when(s == 0)
    def _init():                               # zero initial state per batch block
        h0_scr[...] = jnp.zeros_like(h0_scr)
        c0_scr[...] = jnp.zeros_like(c0_scr)
        h1_scr[...] = jnp.zeros_like(h1_scr)
        c1_scr[...] = jnp.zeros_like(c1_scr)

    def sigmoid(v):                            # exp + reciprocal on the EUP slot
        return pl.reciprocal(1.0 + jnp.exp(-v), approx=True)

    def cell(gates, c_prev, h_prev_bf, t):     # gates: (TB, 4H) f32, order i,f,g,o
        i = sigmoid(gates[:, 0 * H:1 * H])
        f = sigmoid(gates[:, 1 * H:2 * H])
        g = jnp.tanh(gates[:, 2 * H:3 * H])
        o = sigmoid(gates[:, 3 * H:4 * H])
        c_new = f * c_prev + i * g
        h_new = o * jnp.tanh(c_new)
        if pad_time:                           # padded timesteps must not update state
            valid = (s * TT + t) < T
            c_new = jnp.where(valid, c_new, c_prev)
            h_new = jnp.where(valid, h_new, h_prev_bf.astype(jnp.float32))
        return h_new.astype(jnp.bfloat16), c_new

    # ---- layer 0: hoisted input->gates matmul for the whole chunk ----------
    # Assemble a time-major (TT*TB, D) view of the x block with static slices.
    x_tm = jnp.concatenate([x_ref[:, t, :] for t in range(TT)], axis=0)
    x_tm = x_tm.astype(jnp.bfloat16)
    gx = jnp.dot(x_tm, wih0_ref[...],
                 preferred_element_type=jnp.float32) + b0_ref[...]
    gx_scr[...] = gx.reshape(TT, TB, H4)

    # ---- layer-0 recurrence (fully unrolled; only h @ W_hh is serial) ------
    h = h0_scr[...]
    c = c0_scr[...]
    for t in range(TT):
        gates = gx_scr[t] + jnp.dot(h, whh0_ref[...],
                                    preferred_element_type=jnp.float32)
        h, c = cell(gates, c, h, t)
        h0all_scr[t] = h
    h0_scr[...] = h
    c0_scr[...] = c

    # ---- layer 1: hoisted input->gates matmul from all layer-0 outputs -----
    gx1 = jnp.dot(h0all_scr[...].reshape(TT * TB, H), wih1_ref[...],
                  preferred_element_type=jnp.float32) + b1_ref[...]
    gx_scr[...] = gx1.reshape(TT, TB, H4)

    # ---- layer-1 recurrence (fully unrolled) -------------------------------
    h = h1_scr[...]
    c = c1_scr[...]
    for t in range(TT):
        gates = gx_scr[t] + jnp.dot(h, whh1_ref[...],
                                    preferred_element_type=jnp.float32)
        h, c = cell(gates, c, h, t)
    h1_scr[...] = h
    c1_scr[...] = c

    # ---- fused final Linear on the last valid timestep's top hidden state --
    @pl.when(s == pl.num_programs(1) - 1)
    def _final():
        logits = jnp.dot(h1_scr[...], wout_ref[...],
                         preferred_element_type=jnp.float32) + bout_ref[...]
        o_ref[...] = logits.astype(o_ref.dtype)


def rnn_forward(x, pp, *, batch_block=128, max_time_chunk=16):
    """x: (B, T, input_size), batch_first like the PyTorch module."""
    B, T, D = x.shape
    batch_block = max(8, _round_up(batch_block, 8))
    max_time_chunk = max(8, _round_up(max_time_chunk, 8))

    TB = min(batch_block, _round_up(B, 8))          # batch tile (multiple of 8)
    Bp = _round_up(B, TB)
    TT = min(max_time_chunk, _round_up(T, 8))       # time chunk (multiple of 8)
    Tp = _round_up(T, TT)                           # padded steps masked in-kernel

    if (Bp, Tp) != (B, T):
        x = jnp.pad(x, ((0, Bp - B), (0, Tp - T), (0, 0)))

    H4 = 4 * HIDDEN
    grid = (Bp // TB, Tp // TT)
    kernel = functools.partial(_lstm_kernel, T=T, TT=TT)

    # Rough VMEM budget (gates scratch dominates); keep explicit headroom but
    # stay well inside v7x's 64 MiB physical VMEM with the defaults.
    vmem_bytes = (
        TT * TB * H4 * 4                 # gx scratch (f32)
        + TT * TB * HIDDEN * 2           # per-step h0 scratch (bf16)
        + 4 * TB * HIDDEN * 4            # h/c state scratch
        + 2 * TB * TT * D * 4            # double-buffered x blocks
        + 2 * (D + 3 * HIDDEN) * H4 * 2  # LSTM weights (bf16, x2 buffers)
        + 4 * H4 * 4                     # LSTM biases
        + 2 * HIDDEN * NUM_CLASSES * 2 + 2 * TB * NUM_CLASSES * 4
    )
    vmem_limit = max(32 * 1024 * 1024, int(vmem_bytes * 1.5))

    out = pl.pallas_call(
        kernel,
        out_shape=jax.ShapeDtypeStruct((Bp, NUM_CLASSES), jnp.float32),
        grid_spec=pltpu.PrefetchScalarGridSpec(
            num_scalar_prefetch=0,
            grid=grid,
            in_specs=[
                pl.BlockSpec((TB, TT, D), lambda b, s: (b, s, 0)),        # x chunk
                pl.BlockSpec((D, H4), lambda b, s: (0, 0)),               # w_ih l0
                pl.BlockSpec((HIDDEN, H4), lambda b, s: (0, 0)),          # w_hh l0
                pl.BlockSpec((1, H4), lambda b, s: (0, 0)),               # b l0
                pl.BlockSpec((HIDDEN, H4), lambda b, s: (0, 0)),          # w_ih l1
                pl.BlockSpec((HIDDEN, H4), lambda b, s: (0, 0)),          # w_hh l1
                pl.BlockSpec((1, H4), lambda b, s: (0, 0)),               # b l1
                pl.BlockSpec((HIDDEN, NUM_CLASSES), lambda b, s: (0, 0)),  # out w
                pl.BlockSpec((1, NUM_CLASSES), lambda b, s: (0, 0)),      # out b
            ],
            out_specs=pl.BlockSpec((TB, NUM_CLASSES), lambda b, s: (b, 0)),
            scratch_shapes=[
                pltpu.VMEM((TT, TB, H4), jnp.float32),        # hoisted gates
                pltpu.VMEM((TT, TB, HIDDEN), jnp.bfloat16),   # per-step h0
                pltpu.VMEM((TB, HIDDEN), jnp.bfloat16),       # h0 state
                pltpu.VMEM((TB, HIDDEN), jnp.float32),        # c0 state
                pltpu.VMEM((TB, HIDDEN), jnp.bfloat16),       # h1 state
                pltpu.VMEM((TB, HIDDEN), jnp.float32),        # c1 state
            ],
        ),
        compiler_params=pltpu.CompilerParams(
            dimension_semantics=("parallel", "arbitrary"),
            vmem_limit_bytes=vmem_limit),
    )(x, pp["wih0"], pp["whh0"], pp["b0"],
      pp["wih1"], pp["whh1"], pp["b1"], pp["wout"], pp["bout"])
    return out[:B]


# ---------------------------------------------------------------------------
# Parameters (PyTorch nn.LSTM / nn.Linear layout) and one-time layout prep
# ---------------------------------------------------------------------------

def init_params(input_size, key):
    H = HIDDEN
    ks = jax.random.split(key, 10)
    bound = 1.0 / (H ** 0.5)

    def u(k, shape):
        return jax.random.uniform(k, shape, jnp.float32, -bound, bound)

    return {
        # PyTorch gate order (i, f, g, o)
        "w_ih_l0": u(ks[0], (4 * H, input_size)),
        "w_hh_l0": u(ks[1], (4 * H, H)),
        "b_ih_l0": u(ks[2], (4 * H,)),
        "b_hh_l0": u(ks[3], (4 * H,)),
        "w_ih_l1": u(ks[4], (4 * H, H)),
        "w_hh_l1": u(ks[5], (4 * H, H)),
        "b_ih_l1": u(ks[6], (4 * H,)),
        "b_hh_l1": u(ks[7], (4 * H,)),
        "out_w": u(ks[8], (NUM_CLASSES, H)),
        "out_b": u(ks[9], (NUM_CLASSES,)),
    }


def prepare_params(p):
    """One-time (outside jit): transpose to (in, out) matmul layout, fold the
    two LSTM bias vectors, cast MXU operands to bf16 (biases stay f32)."""
    bf = jnp.bfloat16
    f32 = jnp.float32
    return {
        "wih0": p["w_ih_l0"].T.astype(bf),                         # (D, 512)
        "whh0": p["w_hh_l0"].T.astype(bf),                         # (128, 512)
        "b0": (p["b_ih_l0"] + p["b_hh_l0"])[None, :].astype(f32),  # (1, 512)
        "wih1": p["w_ih_l1"].T.astype(bf),                         # (128, 512)
        "whh1": p["w_hh_l1"].T.astype(bf),
        "b1": (p["b_ih_l1"] + p["b_hh_l1"])[None, :].astype(f32),
        "wout": p["out_w"].T.astype(bf),                           # (128, 25)
        "bout": p["out_b"][None, :].astype(f32),                   # (1, 25)
    }


# ---------------------------------------------------------------------------
# Pure-JAX f32 reference (same math as torch's LSTM + Linear), for validation
# ---------------------------------------------------------------------------

def lstm_ref(x, p):
    H = HIDDEN

    def sigmoid(v):
        return 1.0 / (1.0 + jnp.exp(-v))

    def run_layer(xs, w_ih, w_hh, b):
        B = xs.shape[1]

        def step(carry, x_t):
            h, c = carry
            gates = x_t @ w_ih.T + h @ w_hh.T + b
            i = sigmoid(gates[:, 0 * H:1 * H])
            f = sigmoid(gates[:, 1 * H:2 * H])
            g = jnp.tanh(gates[:, 2 * H:3 * H])
            o = sigmoid(gates[:, 3 * H:4 * H])
            c = f * c + i * g
            h = o * jnp.tanh(c)
            return (h, c), h

        init = (jnp.zeros((B, H), jnp.float32), jnp.zeros((B, H), jnp.float32))
        _, hs = jax.lax.scan(step, init, xs)
        return hs

    xs = jnp.transpose(x, (1, 0, 2))
    h1 = run_layer(xs, p["w_ih_l0"], p["w_hh_l0"], p["b_ih_l0"] + p["b_hh_l0"])
    h2 = run_layer(h1, p["w_ih_l1"], p["w_hh_l1"], p["b_ih_l1"] + p["b_hh_l1"])
    return h2[-1] @ p["out_w"].T + p["out_b"]


if __name__ == "__main__":
    INPUT_SIZE = 32
    BATCH = 2
    SEQ = 8

    key = jax.random.PRNGKey(0)
    k_p, k_x, k_x2 = jax.random.split(key, 3)
    params = init_params(INPUT_SIZE, k_p)
    prepped = prepare_params(params)

    # Test 1: small aligned case (single time chunk, no padding).
    x = jax.random.normal(k_x, (BATCH, SEQ, INPUT_SIZE), jnp.float32)
    fwd = jax.jit(lambda xx: rnn_forward(xx, prepped))
    out = fwd(x)
    jax.block_until_ready(out)
    assert out.shape == (BATCH, NUM_CLASSES), out.shape
    err = float(jnp.max(jnp.abs(out - lstm_ref(x, params))))
    assert err < 0.1, f"max |pallas - ref| = {err}"

    # Test 2: awkward sequence length -> multiple time chunks + masked padding.
    SEQ2 = 13
    x2 = jax.random.normal(k_x2, (BATCH, SEQ2, INPUT_SIZE), jnp.float32)
    fwd2 = jax.jit(lambda xx: rnn_forward(xx, prepped, max_time_chunk=8))
    out2 = fwd2(x2)
    jax.block_until_ready(out2)
    assert out2.shape == (BATCH, NUM_CLASSES), out2.shape
    err2 = float(jnp.max(jnp.abs(out2 - lstm_ref(x2, params))))
    assert err2 < 0.1, f"max |pallas - ref| = {err2}"

    print("KERNEL_OK")
</pallas_src>

<mosaic_0001>
module attributes {stable_mosaic.version = 11 : i64} {
  func.func @_lstm_kernel(%arg0: i32, %arg1: i32, %arg2: memref<8x8x32xf32, #tpu.memory_space<vmem>>, %arg3: memref<32x512xbf16, #tpu.memory_space<vmem>>, %arg4: memref<128x512xbf16, #tpu.memory_space<vmem>>, %arg5: memref<1x512xf32, #tpu.memory_space<vmem>>, %arg6: memref<128x512xbf16, #tpu.memory_space<vmem>>, %arg7: memref<128x512xbf16, #tpu.memory_space<vmem>>, %arg8: memref<1x512xf32, #tpu.memory_space<vmem>>, %arg9: memref<128x25xbf16, #tpu.memory_space<vmem>>, %arg10: memref<1x25xf32, #tpu.memory_space<vmem>>, %arg11: memref<8x25xf32, #tpu.memory_space<vmem>>, %arg12: memref<8x8x512xf32, #tpu.memory_space<vmem>>, %arg13: memref<8x8x128xbf16, #tpu.memory_space<vmem>>, %arg14: memref<8x128xbf16, #tpu.memory_space<vmem>>, %arg15: memref<8x128xf32, #tpu.memory_space<vmem>>, %arg16: memref<8x128xbf16, #tpu.memory_space<vmem>>, %arg17: memref<8x128xf32, #tpu.memory_space<vmem>>) attributes {dimension_semantics = [#tpu.dimension_semantics<parallel>, #tpu.dimension_semantics<arbitrary>], iteration_bounds = array<i64: 1, 1>, scalar_prefetch = 0 : i64, scratch_operands = 6 : i64, tpu.core_type = #tpu.core_type<tc>, window_params = [{transform_indices = @transform_0, window_bounds = array<i64: 8, 8, 32>}, {pipeline_mode = #tpu.pipeline_mode<synchronous>, transform_indices = @transform_1, window_bounds = array<i64: 32, 512>}, {pipeline_mode = #tpu.pipeline_mode<synchronous>, transform_indices = @transform_2, window_bounds = array<i64: 128, 512>}, {pipeline_mode = #tpu.pipeline_mode<synchronous>, transform_indices = @transform_3, window_bounds = array<i64: 1, 512>}, {pipeline_mode = #tpu.pipeline_mode<synchronous>, transform_indices = @transform_4, window_bounds = array<i64: 128, 512>}, {pipeline_mode = #tpu.pipeline_mode<synchronous>, transform_indices = @transform_5, window_bounds = array<i64: 128, 512>}, {pipeline_mode = #tpu.pipeline_mode<synchronous>, transform_indices = @transform_6, window_bounds = array<i64: 1, 512>}, {pipeline_mode = #tpu.pipeline_mode<synchronous>, transform_indices = @transform_7, window_bounds = array<i64: 128, 25>}, {pipeline_mode = #tpu.pipeline_mode<synchronous>, transform_indices = @transform_8, window_bounds = array<i64: 1, 25>}, {transform_indices = @transform_9, window_bounds = array<i64: 8, 25>}]} {
    %c0_i32 = arith.constant 0 : i32
    %0 = arith.cmpi eq, %arg1, %c0_i32 : i32
    %1 = arith.extui %0 : i1 to i32
    %c0_i32_0 = arith.constant 0 : i32
    %2 = arith.cmpi ne, %1, %c0_i32_0 : i32
    scf.if %2 {
      %cst_269 = arith.constant 0.000000e+00 : bf16
      %616 = vector.broadcast %cst_269 : bf16 to vector<8x128xbf16>
      %c0_270 = arith.constant 0 : index
      %c0_271 = arith.constant 0 : index
      %617 = vector.load %arg14[%c0_270, %c0_271] : memref<8x128xbf16, #tpu.memory_space<vmem>>, vector<8x128xbf16>
      tpu.vector_store %arg14[%c0_270, %c0_271], %616 {strides = array<i32>} : memref<8x128xbf16, #tpu.memory_space<vmem>>, vector<8x128xbf16>,
      %cst_272 = arith.constant 0.000000e+00 : f32
      %618 = vector.broadcast %cst_272 : f32 to vector<8x128xf32>
      %c0_273 = arith.constant 0 : index
      %c0_274 = arith.constant 0 : index
      %619 = vector.load %arg15[%c0_273, %c0_274] : memref<8x128xf32, #tpu.memory_space<vmem>>, vector<8x128xf32>
      tpu.vector_store %arg15[%c0_273, %c0_274], %618 {strides = array<i32>} : memref<8x128xf32, #tpu.memory_space<vmem>>, vector<8x128xf32>,
      %cst_275 = arith.constant 0.000000e+00 : bf16
      %620 = vector.broadcast %cst_275 : bf16 to vector<8x128xbf16>
      %c0_276 = arith.constant 0 : index
      %c0_277 = arith.constant 0 : index
      %621 = vector.load %arg16[%c0_276, %c0_277] : memref<8x128xbf16, #tpu.memory_space<vmem>>, vector<8x128xbf16>
      tpu.vector_store %arg16[%c0_276, %c0_277], %620 {strides = array<i32>} : memref<8x128xbf16, #tpu.memory_space<vmem>>, vector<8x128xbf16>,
      %cst_278 = arith.constant 0.000000e+00 : f32
      %622 = vector.broadcast %cst_278 : f32 to vector<8x128xf32>
      %c0_279 = arith.constant 0 : index
      %c0_280 = arith.constant 0 : index
      %623 = vector.load %arg17[%c0_279, %c0_280] : memref<8x128xf32, #tpu.memory_space<vmem>>, vector<8x128xf32>
      tpu.vector_store %arg17[%c0_279, %c0_280], %622 {strides = array<i32>} : memref<8x128xf32, #tpu.memory_space<vmem>>, vector<8x128xf32>,
    } else {
    }
    %c0 = arith.constant 0 : index
    %c0_1 = arith.constant 0 : index
    %c0_2 = arith.constant 0 : index
    %3 = vector.load %arg2[%c0, %c0_1, %c0_2] : memref<8x8x32xf32, #tpu.memory_space<vmem>>, vector<8x1x32xf32>
    %4 = vector.shape_cast %3 : vector<8x1x32xf32> to vector<8x32xf32>
    %c0_3 = arith.constant 0 : index
    %c1 = arith.constant 1 : index
    %c0_4 = arith.constant 0 : index
    %5 = vector.load %arg2[%c0_3, %c1, %c0_4] : memref<8x8x32xf32, #tpu.memory_space<vmem>>, vector<8x1x32xf32>
    %6 = vector.shape_cast %5 : vector<8x1x32xf32> to vector<8x32xf32>
    %c0_5 = arith.constant 0 : index
    %c2 = arith.constant 2 : index
    %c0_6 = arith.constant 0 : index
    %7 = vector.load %arg2[%c0_5, %c2, %c0_6] : memref<8x8x32xf32, #tpu.memory_space<vmem>>, vector<8x1x32xf32>
    %8 = vector.shape_cast %7 : vector<8x1x32xf32> to vector<8x32xf32>
    %c0_7 = arith.constant 0 : index
    %c3 = arith.constant 3 : index
    %c0_8 = arith.constant 0 : index
    %9 = vector.load %arg2[%c0_7, %c3, %c0_8] : memref<8x8x32xf32, #tpu.memory_space<vmem>>, vector<8x1x32xf32>
    %10 = vector.shape_cast %9 : vector<8x1x32xf32> to vector<8x32xf32>
    %c0_9 = arith.constant 0 : index
    %c4 = arith.constant 4 : index
    %c0_10 = arith.constant 0 : index
    %11 = vector.load %arg2[%c0_9, %c4, %c0_10] : memref<8x8x32xf32, #tpu.memory_space<vmem>>, vector<8x1x32xf32>
    %12 = vector.shape_cast %11 : vector<8x1x32xf32> to vector<8x32xf32>
    %c0_11 = arith.constant 0 : index
    %c5 = arith.constant 5 : index
    %c0_12 = arith.constant 0 : index
    %13 = vector.load %arg2[%c0_11, %c5, %c0_12] : memref<8x8x32xf32, #tpu.memory_space<vmem>>, vector<8x1x32xf32>
    %14 = vector.shape_cast %13 : vector<8x1x32xf32> to vector<8x32xf32>
    %c0_13 = arith.constant 0 : index
    %c6 = arith.constant 6 : index
    %c0_14 = arith.constant 0 : index
    %15 = vector.load %arg2[%c0_13, %c6, %c0_14] : memref<8x8x32xf32, #tpu.memory_space<vmem>>, vector<8x1x32xf32>
    %16 = vector.shape_cast %15 : vector<8x1x32xf32> to vector<8x32xf32>
    %c0_15 = arith.constant 0 : index
    %c7 = arith.constant 7 : index
    %c0_16 = arith.constant 0 : index
    %17 = vector.load %arg2[%c0_15, %c7, %c0_16] : memref<8x8x32xf32, #tpu.memory_space<vmem>>, vector<8x1x32xf32>
    %18 = vector.shape_cast %17 : vector<8x1x32xf32> to vector<8x32xf32>
    %19 = tpu.concatenate %4, %6, %8, %10, %12, %14, %16, %18 in 0 : vector<8x32xf32>, vector<8x32xf32>, vector<8x32xf32>, vector<8x32xf32>, vector<8x32xf32>, vector<8x32xf32>, vector<8x32xf32>, vector<8x32xf32> -> vector<64x32xf32>
    %20 = arith.truncf %19 : vector<64x32xf32> to vector<64x32xbf16>
    %c0_17 = arith.constant 0 : index
    %c0_18 = arith.constant 0 : index
    %21 = vector.load %arg3[%c0_17, %c0_18] : memref<32x512xbf16, #tpu.memory_space<vmem>>, vector<32x512xbf16>
    %cst = arith.constant dense<0.000000e+00> : vector<64x512xf32>
    %22 = tpu.matmul %20, %21, %cst {dimension_numbers = #tpu.dot_dimension_numbers<[1], [0], [0], [1], [0, 0, 1, 1], [], []>} : vector<64x32xbf16>, vector<32x512xbf16>, vector<64x512xf32> -> vector<64x512xf32>
    %c0_19 = arith.constant 0 : index
    %c0_20 = arith.constant 0 : index
    %23 = vector.load %arg5[%c0_19, %c0_20] : memref<1x512xf32, #tpu.memory_space<vmem>>, vector<1x512xf32>
    %24 = vector.broadcast %23 : vector<1x512xf32> to vector<64x512xf32>
    %25 = arith.addf %22, %24 : vector<64x512xf32>
    %26 = vector.shape_cast %25 : vector<64x512xf32> to vector<8x8x512xf32>
    %c0_21 = arith.constant 0 : index
    %c0_22 = arith.constant 0 : index
    %c0_23 = arith.constant 0 : index
    %27 = vector.load %arg12[%c0_21, %c0_22, %c0_23] : memref<8x8x512xf32, #tpu.memory_space<vmem>>, vector<8x8x512xf32>
    tpu.vector_store %arg12[%c0_21, %c0_22, %c0_23], %26 {strides = array<i32>} : memref<8x8x512xf32, #tpu.memory_space<vmem>>, vector<8x8x512xf32>,
    %c0_24 = arith.constant 0 : index
    %c0_25 = arith.constant 0 : index
    %28 = vector.load %arg14[%c0_24, %c0_25] : memref<8x128xbf16, #tpu.memory_space<vmem>>, vector<8x128xbf16>
    %c0_26 = arith.constant 0 : index
    %c0_27 = arith.constant 0 : index
    %29 = vector.load %arg15[%c0_26, %c0_27] : memref<8x128xf32, #tpu.memory_space<vmem>>, vector<8x128xf32>
    %c0_28 = arith.constant 0 : index
    %c0_29 = arith.constant 0 : index
    %c0_30 = arith.constant 0 : index
    %30 = vector.load %arg12[%c0_28, %c0_29, %c0_30] : memref<8x8x512xf32, #tpu.memory_space<vmem>>, vector<1x8x512xf32>
    %31 = vector.shape_cast %30 : vector<1x8x512xf32> to vector<8x512xf32>
    %c0_31 = arith.constant 0 : index
    %c0_32 = arith.constant 0 : index
    %32 = vector.load %arg4[%c0_31, %c0_32] : memref<128x512xbf16, #tpu.memory_space<vmem>>, vector<128x512xbf16>
    %cst_33 = arith.constant dense<0.000000e+00> : vector<8x512xf32>
    %33 = tpu.matmul %28, %32, %cst_33 {dimension_numbers = #tpu.dot_dimension_numbers<[1], [0], [0], [1], [0, 0, 1, 1], [], []>} : vector<8x128xbf16>, vector<128x512xbf16>, vector<8x512xf32> -> vector<8x512xf32>
    %34 = arith.addf %31, %33 : vector<8x512xf32>
    %35 = vector.extract_strided_slice %34 {offsets = [0, 0], sizes = [8, 128], strides = [1, 1]} : vector<8x512xf32> to vector<8x128xf32>
    %cst_34 = arith.constant 0.000000e+00 : f32
    %36 = vector.broadcast %cst_34 : f32 to vector<8x128xf32>
    %37 = arith.subf %36, %35 : vector<8x128xf32>
    %38 = math.exp %37 : vector<8x128xf32>
    %cst_35 = arith.constant 1.000000e+00 : f32
    %39 = vector.broadcast %cst_35 : f32 to vector<8x128xf32>
    %40 = arith.addf %39, %38 : vector<8x128xf32>
    %41 = tpu.reciprocal %40 {approx = true} : vector<8x128xf32> -> vector<8x128xf32>
    %42 = vector.extract_strided_slice %34 {offsets = [0, 128], sizes = [8, 128], strides = [1, 1]} : vector<8x512xf32> to vector<8x128xf32>
    %cst_36 = arith.constant 0.000000e+00 : f32
    %43 = vector.broadcast %cst_36 : f32 to vector<8x128xf32>
    %44 = arith.subf %43, %42 : vector<8x128xf32>
    %45 = math.exp %44 : vector<8x128xf32>
    %cst_37 = arith.constant 1.000000e+00 : f32
    %46 = vector.broadcast %cst_37 : f32 to vector<8x128xf32>
    %47 = arith.addf %46, %45 : vector<8x128xf32>
    %48 = tpu.reciprocal %47 {approx = true} : vector<8x128xf32> -> vector<8x128xf32>
    %49 = vector.extract_strided_slice %34 {offsets = [0, 256], sizes = [8, 128], strides = [1, 1]} : vector<8x512xf32> to vector<8x128xf32>
    %50 = math.tanh %49 : vector<8x128xf32>
    %51 = vector.extract_strided_slice %34 {offsets = [0, 384], sizes = [8, 128], strides = [1, 1]} : vector<8x512xf32> to vector<8x128xf32>
    %cst_38 = arith.constant 0.000000e+00 : f32
    %52 = vector.broadcast %cst_38 : f32 to vector<8x128xf32>
    %53 = arith.subf %52, %51 : vector<8x128xf32>
    %54 = math.exp %53 : vector<8x128xf32>
    %cst_39 = arith.constant 1.000000e+00 : f32
    %55 = vector.broadcast %cst_39 : f32 to vector<8x128xf32>
    %56 = arith.addf %55, %54 : vector<8x128xf32>
    %57 = tpu.reciprocal %56 {approx = true} : vector<8x128xf32> -> vector<8x128xf32>
    %58 = arith.mulf %48, %29 : vector<8x128xf32>
    %59 = arith.mulf %41, %50 : vector<8x128xf32>
    %60 = arith.addf %58, %59 : vector<8x128xf32>
    %61 = math.tanh %60 : vector<8x128xf32>
    %62 = arith.mulf %57, %61 : vector<8x128xf32>
    %63 = arith.truncf %62 : vector<8x128xf32> to vector<8x128xbf16>
    %c0_40 = arith.constant 0 : index
    %c0_41 = arith.constant 0 : index
    %c0_42 = arith.constant 0 : index
    %64 = vector.load %arg13[%c0_40, %c0_41, %c0_42] : memref<8x8x128xbf16, #tpu.memory_space<vmem>>, vector<1x8x128xbf16>
    %65 = vector.shape_cast %64 : vector<1x8x128xbf16> to vector<8x128xbf16>
    %66 = vector.shape_cast %63 : vector<8x128xbf16> to vector<1x8x128xbf16>
    tpu.vector_store %arg13[%c0_40, %c0_41, %c0_42], %66 {strides = array<i32>} : memref<8x8x128xbf16, #tpu.memory_space<vmem>>, vector<1x8x128xbf16>,
    %c1_43 = arith.constant 1 : index
    %c0_44 = arith.constant 0 : index
    %c0_45 = arith.constant 0 : index
    %67 = vector.load %arg12[%c1_43, %c0_44, %c0_45] : memref<8x8x512xf32, #tpu.memory_space<vmem>>, vector<1x8x512xf32>
    %68 = vector.shape_cast %67 : vector<1x8x512xf32> to vector<8x512xf32>
    %c0_46 = arith.constant 0 : index
    %c0_47 = arith.constant 0 : index
    %69 = vector.load %arg4[%c0_46, %c0_47] : memref<128x512xbf16, #tpu.memory_space<vmem>>, vector<128x512xbf16>
    %cst_48 = arith.constant dense<0.000000e+00> : vector<8x512xf32>
    %70 = tpu.matmul %63, %69, %cst_48 {dimension_numbers = #tpu.dot_dimension_numbers<[1], [0], [0], [1], [0, 0, 1, 1], [], []>} : vector<8x128xbf16>, vector<128x512xbf16>, vector<8x512xf32> -> vector<8x512xf32>
    %71 = arith.addf %68, %70 : vector<8x512xf32>
    %72 = vector.extract_strided_slice %71 {offsets = [0, 0], sizes = [8, 128], strides = [1, 1]} : vector<8x512xf32> to vector<8x128xf32>
    %cst_49 = arith.constant 0.000000e+00 : f32
    %73 = vector.broadcast %cst_49 : f32 to vector<8x128xf32>
    %74 = arith.subf %73, %72 : vector<8x128xf32>
    %75 = math.exp %74 : vector<8x128xf32>
    %cst_50 = arith.constant 1.000000e+00 : f32
    %76 = vector.broadcast %cst_50 : f32 to vector<8x128xf32>
    %77 = arith.addf %76, %75 : vector<8x128xf32>
    %78 = tpu.reciprocal %77 {approx = true} : vector<8x128xf32> -> vector<8x128xf32>
    %79 = vector.extract_strided_slice %71 {offsets = [0, 128], sizes = [8, 128], strides = [1, 1]} : vector<8x512xf32> to vector<8x128xf32>
    %cst_51 = arith.constant 0.000000e+00 : f32
    %80 = vector.broadcast %cst_51 : f32 to vector<8x128xf32>
    %81 = arith.subf %80, %79 : vector<8x128xf32>
    %82 = math.exp %81 : vector<8x128xf32>
    %cst_52 = arith.constant 1.000000e+00 : f32
    %83 = vector.broadcast %cst_52 : f32 to vector<8x128xf32>
    %84 = arith.addf %83, %82 : vector<8x128xf32>
    %85 = tpu.reciprocal %84 {approx = true} : vector<8x128xf32> -> vector<8x128xf32>
    %86 = vector.extract_strided_slice %71 {offsets = [0, 256], sizes = [8, 128], strides = [1, 1]} : vector<8x512xf32> to vector<8x128xf32>
    %87 = math.tanh %86 : vector<8x128xf32>
    %88 = vector.extract_strided_slice %71 {offsets = [0, 384], sizes = [8, 128], strides = [1, 1]} : vector<8x512xf32> to vector<8x128xf32>
    %cst_53 = arith.constant 0.000000e+00 : f32
    %89 = vector.broadcast %cst_53 : f32 to vector<8x128xf32>
    %90 = arith.subf %89, %88 : vector<8x128xf32>
    %91 = math.exp %90 : vector<8x128xf32>
    %cst_54 = arith.constant 1.000000e+00 : f32
    %92 = vector.broadcast %cst_54 : f32 to vector<8x128xf32>
    %93 = arith.addf %92, %91 : vector<8x128xf32>
    %94 = tpu.reciprocal %93 {approx = true} : vector<8x128xf32> -> vector<8x128xf32>
    %95 = arith.mulf %85, %60 : vector<8x128xf32>
    %96 = arith.mulf %78, %87 : vector<8x128xf32>
    %97 = arith.addf %95, %96 : vector<8x128xf32>
    %98 = math.tanh %97 : vector<8x128xf32>
    %99 = arith.mulf %94, %98 : vector<8x128xf32>
    %100 = arith.truncf %99 : vector<8x128xf32> to vector<8x128xbf16>
    %c1_55 = arith.constant 1 : index
    %c0_56 = arith.constant 0 : index
    %c0_57 = arith.constant 0 : index
    %101 = vector.load %arg13[%c1_55, %c0_56, %c0_57] : memref<8x8x128xbf16, #tpu.memory_space<vmem>>, vector<1x8x128xbf16>
    %102 = vector.shape_cast %101 : vector<1x8x128xbf16> to vector<8x128xbf16>
    %103 = vector.shape_cast %100 : vector<8x128xbf16> to vector<1x8x128xbf16>
    tpu.vector_store %arg13[%c1_55, %c0_56, %c0_57], %103 {strides = array<i32>} : memref<8x8x128xbf16, #tpu.memory_space<vmem>>, vector<1x8x128xbf16>,
    %c2_58 = arith.constant 2 : index
    %c0_59 = arith.constant 0 : index
    %c0_60 = arith.constant 0 : index
    %104 = vector.load %arg12[%c2_58, %c0_59, %c0_60] : memref<8x8x512xf32, #tpu.memory_space<vmem>>, vector<1x8x512xf32>
    %105 = vector.shape_cast %104 : vector<1x8x512xf32> to vector<8x512xf32>
    %c0_61 = arith.constant 0 : index
    %c0_62 = arith.constant 0 : index
    %106 = vector.load %arg4[%c0_61, %c0_62] : memref<128x512xbf16, #tpu.memory_space<vmem>>, vector<128x512xbf16>
    %cst_63 = arith.constant dense<0.000000e+00> : vector<8x512xf32>
    %107 = tpu.matmul %100, %106, %cst_63 {dimension_numbers = #tpu.dot_dimension_numbers<[1], [0], [0], [1], [0, 0, 1, 1], [], []>} : vector<8x128xbf16>, vector<128x512xbf16>, vector<8x512xf32> -> vector<8x512xf32>
    %108 = arith.addf %105, %107 : vector<8x512xf32>
    %109 = vector.extract_strided_slice %108 {offsets = [0, 0], sizes = [8, 128], strides = [1, 1]} : vector<8x512xf32> to vector<8x128xf32>
    %cst_64 = arith.constant 0.000000e+00 : f32
    %110 = vector.broadcast %cst_64 : f32 to vector<8x128xf32>
    %111 = arith.subf %110, %109 : vector<8x128xf32>
    %112 = math.exp %111 : vector<8x128xf32>
    %cst_65 = arith.constant 1.000000e+00 : f32
    %113 = vector.broadcast %cst_65 : f32 to vector<8x128xf32>
    %114 = arith.addf %113, %112 : vector<8x128xf32>
    %115 = tpu.reciprocal %114 {approx = true} : vector<8x128xf32> -> vector<8x128xf32>
    %116 = vector.extract_strided_slice %108 {offsets = [0, 128], sizes = [8, 128], strides = [1, 1]} : vector<8x512xf32> to vector<8x128xf32>
    %cst_66 = arith.constant 0.000000e+00 : f32
    %117 = vector.broadcast %cst_66 : f32 to vector<8x128xf32>
    %118 = arith.subf %117, %116 : vector<8x128xf32>
    %119 = math.exp %118 : vector<8x128xf32>
    %cst_67 = arith.constant 1.000000e+00 : f32
    %120 = vector.broadcast %cst_67 : f32 to vector<8x128xf32>
    %121 = arith.addf %120, %119 : vector<8x128xf32>
    %122 = tpu.reciprocal %121 {approx = true} : vector<8x128xf32> -> vector<8x128xf32>
    %123 = vector.extract_strided_slice %108 {offsets = [0, 256], sizes = [8, 128], strides = [1, 1]} : vector<8x512xf32> to vector<8x128xf32>
    %124 = math.tanh %123 : vector<8x128xf32>
    %125 = vector.extract_strided_slice %108 {offsets = [0, 384], sizes = [8, 128], strides = [1, 1]} : vector<8x512xf32> to vector<8x128xf32>
    %cst_68 = arith.constant 0.000000e+00 : f32
    %126 = vector.broadcast %cst_68 : f32 to vector<8x128xf32>
    %127 = arith.subf %126, %125 : vector<8x128xf32>
    %128 = math.exp %127 : vector<8x128xf32>
    %cst_69 = arith.constant 1.000000e+00 : f32
    %129 = vector.broadcast %cst_69 : f32 to vector<8x128xf32>
    %130 = arith.addf %129, %128 : vector<8x128xf32>
    %131 = tpu.reciprocal %130 {approx = true} : vector<8x128xf32> -> vector<8x128xf32>
    %132 = arith.mulf %122, %97 : vector<8x128xf32>
    %133 = arith.mulf %115, %124 : vector<8x128xf32>
    %134 = arith.addf %132, %133 : vector<8x128xf32>
    %135 = math.tanh %134 : vector<8x128xf32>
    %136 = arith.mulf %131, %135 : vector<8x128xf32>
    %137 = arith.truncf %136 : vector<8x128xf32> to vector<8x128xbf16>
    %c2_70 = arith.constant 2 : index
    %c0_71 = arith.constant 0 : index
    %c0_72 = arith.constant 0 : index
    %138 = vector.load %arg13[%c2_70, %c0_71, %c0_72] : memref<8x8x128xbf16, #tpu.memory_space<vmem>>, vector<1x8x128xbf16>
    %139 = vector.shape_cast %138 : vector<1x8x128xbf16> to vector<8x128xbf16>
    %140 = vector.shape_cast %137 : vector<8x128xbf16> to vector<1x8x128xbf16>
    tpu.vector_store %arg13[%c2_70, %c0_71, %c0_72], %140 {strides = array<i32>} : memref<8x8x128xbf16, #tpu.memory_space<vmem>>, vector<1x8x128xbf16>,
    %c3_73 = arith.constant 3 : index
    %c0_74 = arith.constant 0 : index
    %c0_75 = arith.constant 0 : index
    %141 = vector.load %arg12[%c3_73, %c0_74, %c0_75] : memref<8x8x512xf32, #tpu.memory_space<vmem>>, vector<1x8x512xf32>
    %142 = vector.shape_cast %141 : vector<1x8x512xf32> to vector<8x512xf32>
    %c0_76 = arith.constant 0 : index
    %c0_77 = arith.constant 0 : index
    %143 = vector.load %arg4[%c0_76, %c0_77] : memref<128x512xbf16, #tpu.memory_space<vmem>>, vector<128x512xbf16>
    %cst_78 = arith.constant dense<0.000000e+00> : vector<8x512xf32>
    %144 = tpu.matmul %137, %143, %cst_78 {dimension_numbers = #tpu.dot_dimension_numbers<[1], [0], [0], [1], [0, 0, 1, 1], [], []>} : vector<8x128xbf16>, vector<128x512xbf16>, vector<8x512xf32> -> vector<8x512xf32>
    %145 = arith.addf %142, %144 : vector<8x512xf32>
    %146 = vector.extract_strided_slice %145 {offsets = [0, 0], sizes = [8, 128], strides = [1, 1]} : vector<8x512xf32> to vector<8x128xf32>
    %cst_79 = arith.constant 0.000000e+00 : f32
    %147 = vector.broadcast %cst_79 : f32 to vector<8x128xf32>
    %148 = arith.subf %147, %146 : vector<8x128xf32>
    %149 = math.exp %148 : vector<8x128xf32>
    %cst_80 = arith.constant 1.000000e+00 : f32
    %150 = vector.broadcast %cst_80 : f32 to vector<8x128xf32>
    %151 = arith.addf %150, %149 : vector<8x128xf32>
    %152 = tpu.reciprocal %151 {approx = true} : vector<8x128xf32> -> vector<8x128xf32>
    %153 = vector.extract_strided_slice %145 {offsets = [0, 128], sizes = [8, 128], strides = [1, 1]} : vector<8x512xf32> to vector<8x128xf32>
    %cst_81 = arith.constant 0.000000e+00 : f32
    %154 = vector.broadcast %cst_81 : f32 to vector<8x128xf32>
    %155 = arith.subf %154, %153 : vector<8x128xf32>
    %156 = math.exp %155 : vector<8x128xf32>
    %cst_82 = arith.constant 1.000000e+00 : f32
    %157 = vector.broadcast %cst_82 : f32 to vector<8x128xf32>
    %158 = arith.addf %157, %156 : vector<8x128xf32>
    %159 = tpu.reciprocal %158 {approx = true} : vector<8x128xf32> -> vector<8x128xf32>
    %160 = vector.extract_strided_slice %145 {offsets = [0, 256], sizes = [8, 128], strides = [1, 1]} : vector<8x512xf32> to vector<8x128xf32>
    %161 = math.tanh %160 : vector<8x128xf32>
    %162 = vector.extract_strided_slice %145 {offsets = [0, 384], sizes = [8, 128], strides = [1, 1]} : vector<8x512xf32> to vector<8x128xf32>
    %cst_83 = arith.constant 0.000000e+00 : f32
    %163 = vector.broadcast %cst_83 : f32 to vector<8x128xf32>
    %164 = arith.subf %163, %162 : vector<8x128xf32>
    %165 = math.exp %164 : vector<8x128xf32>
    %cst_84 = arith.constant 1.000000e+00 : f32
    %166 = vector.broadcast %cst_84 : f32 to vector<8x128xf32>
    %167 = arith.addf %166, %165 : vector<8x128xf32>
    %168 = tpu.reciprocal %167 {approx = true} : vector<8x128xf32> -> vector<8x128xf32>
    %169 = arith.mulf %159, %134 : vector<8x128xf32>
    %170 = arith.mulf %152, %161 : vector<8x128xf32>
    %171 = arith.addf %169, %170 : vector<8x128xf32>
    %172 = math.tanh %171 : vector<8x128xf32>
    %173 = arith.mulf %168, %172 : vector<8x128xf32>
    %174 = arith.truncf %173 : vector<8x128xf32> to vector<8x128xbf16>
    %c3_85 = arith.constant 3 : index
    %c0_86 = arith.constant 0 : index
    %c0_87 = arith.constant 0 : index
    %175 = vector.load %arg13[%c3_85, %c0_86, %c0_87] : memref<8x8x128xbf16, #tpu.memory_space<vmem>>, vector<1x8x128xbf16>
    %176 = vector.shape_cast %175 : vector<1x8x128xbf16> to vector<8x128xbf16>
    %177 = vector.shape_cast %174 : vector<8x128xbf16> to vector<1x8x128xbf16>
    tpu.vector_store %arg13[%c3_85, %c0_86, %c0_87], %177 {strides = array<i32>} : memref<8x8x128xbf16, #tpu.memory_space<vmem>>, vector<1x8x128xbf16>,
    %c4_88 = arith.constant 4 : index
    %c0_89 = arith.constant 0 : index
    %c0_90 = arith.constant 0 : index
    %178 = vector.load %arg12[%c4_88, %c0_89, %c0_90] : memref<8x8x512xf32, #tpu.memory_space<vmem>>, vector<1x8x512xf32>
    %179 = vector.shape_cast %178 : vector<1x8x512xf32> to vector<8x512xf32>
    %c0_91 = arith.constant 0 : index
    %c0_92 = arith.constant 0 : index
    %180 = vector.load %arg4[%c0_91, %c0_92] : memref<128x512xbf16, #tpu.memory_space<vmem>>, vector<128x512xbf16>
    %cst_93 = arith.constant dense<0.000000e+00> : vector<8x512xf32>
    %181 = tpu.matmul %174, %180, %cst_93 {dimension_numbers = #tpu.dot_dimension_numbers<[1], [0], [0], [1], [0, 0, 1, 1], [], []>} : vector<8x128xbf16>, vector<128x512xbf16>, vector<8x512xf32> -> vector<8x512xf32>
    %182 = arith.addf %179, %181 : vector<8x512xf32>
    %183 = vector.extract_strided_slice %182 {offsets = [0, 0], sizes = [8, 128], strides = [1, 1]} : vector<8x512xf32> to vector<8x128xf32>
    %cst_94 = arith.constant 0.000000e+00 : f32
    %184 = vector.broadcast %cst_94 : f32 to vector<8x128xf32>
    %185 = arith.subf %184, %183 : vector<8x128xf32>
    %186 = math.exp %185 : vector<8x128xf32>
    %cst_95 = arith.constant 1.000000e+00 : f32
    %187 = vector.broadcast %cst_95 : f32 to vector<8x128xf32>
    %188 = arith.addf %187, %186 : vector<8x128xf32>
    %189 = tpu.reciprocal %188 {approx = true} : vector<8x128xf32> -> vector<8x128xf32>
    %190 = vector.extract_strided_slice %182 {offsets = [0, 128], sizes = [8, 128], strides = [1, 1]} : vector<8x512xf32> to vector<8x128xf32>
    %cst_96 = arith.constant 0.000000e+00 : f32
    %191 = vector.broadcast %cst_96 : f32 to vector<8x128xf32>
    %192 = arith.subf %191, %190 : vector<8x128xf32>
    %193 = math.exp %192 : vector<8x128xf32>
    %cst_97 = arith.constant 1.000000e+00 : f32
    %194 = vector.broadcast %cst_97 : f32 to vector<8x128xf32>
    %195 = arith.addf %194, %193 : vector<8x128xf32>
    %196 = tpu.reciprocal %195 {approx = true} : vector<8x128xf32> -> vector<8x128xf32>
    %197 = vector.extract_strided_slice %182 {offsets = [0, 256], sizes = [8, 128], strides = [1, 1]} : vector<8x512xf32> to vector<8x128xf32>
    %198 = math.tanh %197 : vector<8x128xf32>
    %199 = vector.extract_strided_slice %182 {offsets = [0, 384], sizes = [8, 128], strides = [1, 1]} : vector<8x512xf32> to vector<8x128xf32>
    %cst_98 = arith.constant 0.000000e+00 : f32
    %200 = vector.broadcast %cst_98 : f32 to vector<8x128xf32>
    %201 = arith.subf %200, %199 : vector<8x128xf32>
    %202 = math.exp %201 : vector<8x128xf32>
    %cst_99 = arith.constant 1.000000e+00 : f32
    %203 = vector.broadcast %cst_99 : f32 to vector<8x128xf32>
    %204 = arith.addf %203, %202 : vector<8x128xf32>
    %205 = tpu.reciprocal %204 {approx = true} : vector<8x128xf32> -> vector<8x128xf32>
    %206 = arith.mulf %196, %171 : vector<8x128xf32>
    %207 = arith.mulf %189, %198 : vector<8x128xf32>
    %208 = arith.addf %206, %207 : vector<8x128xf32>
    %209 = math.tanh %208 : vector<8x128xf32>
    %210 = arith.mulf %205, %209 : vector<8x128xf32>
    %211 = arith.truncf %210 : vector<8x128xf32> to vector<8x128xbf16>
    %c4_100 = arith.constant 4 : index
    %c0_101 = arith.constant 0 : index
    %c0_102 = arith.constant 0 : index
    %212 = vector.load %arg13[%c4_100, %c0_101, %c0_102] : memref<8x8x128xbf16, #tpu.memory_space<vmem>>, vector<1x8x128xbf16>
    %213 = vector.shape_cast %212 : vector<1x8x128xbf16> to vector<8x128xbf16>
    %214 = vector.shape_cast %211 : vector<8x128xbf16> to vector<1x8x128xbf16>
    tpu.vector_store %arg13[%c4_100, %c0_101, %c0_102], %214 {strides = array<i32>} : memref<8x8x128xbf16, #tpu.memory_space<vmem>>, vector<1x8x128xbf16>,
    %c5_103 = arith.constant 5 : index
    %c0_104 = arith.constant 0 : index
    %c0_105 = arith.constant 0 : index
    %215 = vector.load %arg12[%c5_103, %c0_104, %c0_105] : memref<8x8x512xf32, #tpu.memory_space<vmem>>, vector<1x8x512xf32>
    %216 = vector.shape_cast %215 : vector<1x8x512xf32> to vector<8x512xf32>
    %c0_106 = arith.constant 0 : index
    %c0_107 = arith.constant 0 : index
    %217 = vector.load %arg4[%c0_106, %c0_107] : memref<128x512xbf16, #tpu.memory_space<vmem>>, vector<128x512xbf16>
    %cst_108 = arith.constant dense<0.000000e+00> : vector<8x512xf32>
    %218 = tpu.matmul %211, %217, %cst_108 {dimension_numbers = #tpu.dot_dimension_numbers<[1], [0], [0], [1], [0, 0, 1, 1], [], []>} : vector<8x128xbf16>, vector<128x512xbf16>, vector<8x512xf32> -> vector<8x512xf32>
    %219 = arith.addf %216, %218 : vector<8x512xf32>
    %220 = vector.extract_strided_slice %219 {offsets = [0, 0], sizes = [8, 128], strides = [1, 1]} : vector<8x512xf32> to vector<8x128xf32>
    %cst_109 = arith.constant 0.000000e+00 : f32
    %221 = vector.broadcast %cst_109 : f32 to vector<8x128xf32>
    %222 = arith.subf %221, %220 : vector<8x128xf32>
    %223 = math.exp %222 : vector<8x128xf32>
    %cst_110 = arith.constant 1.000000e+00 : f32
    %224 = vector.broadcast %cst_110 : f32 to vector<8x128xf32>
    %225 = arith.addf %224, %223 : vector<8x128xf32>
    %226 = tpu.reciprocal %225 {approx = true} : vector<8x128xf32> -> vector<8x128xf32>
    %227 = vector.extract_strided_slice %219 {offsets = [0, 128], sizes = [8, 128], strides = [1, 1]} : vector<8x512xf32> to vector<8x128xf32>
    %cst_111 = arith.constant 0.000000e+00 : f32
    %228 = vector.broadcast %cst_111 : f32 to vector<8x128xf32>
    %229 = arith.subf %228, %227 : vector<8x128xf32>
    %230 = math.exp %229 : vector<8x128xf32>
    %cst_112 = arith.constant 1.000000e+00 : f32
    %231 = vector.broadcast %cst_112 : f32 to vector<8x128xf32>
    %232 = arith.addf %231, %230 : vector<8x128xf32>
    %233 = tpu.reciprocal %232 {approx = true} : vector<8x128xf32> -> vector<8x128xf32>
    %234 = vector.extract_strided_slice %219 {offsets = [0, 256], sizes = [8, 128], strides = [1, 1]} : vector<8x512xf32> to vector<8x128xf32>
    %235 = math.tanh %234 : vector<8x128xf32>
    %236 = vector.extract_strided_slice %219 {offsets = [0, 384], sizes = [8, 128], strides = [1, 1]} : vector<8x512xf32> to vector<8x128xf32>
    %cst_113 = arith.constant 0.000000e+00 : f32
    %237 = vector.broadcast %cst_113 : f32 to vector<8x128xf32>
    %238 = arith.subf %237, %236 : vector<8x128xf32>
    %239 = math.exp %238 : vector<8x128xf32>
    %cst_114 = arith.constant 1.000000e+00 : f32
    %240 = vector.broadcast %cst_114 : f32 to vector<8x128xf32>
    %241 = arith.addf %240, %239 : vector<8x128xf32>
    %242 = tpu.reciprocal %241 {approx = true} : vector<8x128xf32> -> vector<8x128xf32>
    %243 = arith.mulf %233, %208 : vector<8x128xf32>
    %244 = arith.mulf %226, %235 : vector<8x128xf32>
    %245 = arith.addf %243, %244 : vector<8x128xf32>
    %246 = math.tanh %245 : vector<8x128xf32>
    %247 = arith.mulf %242, %246 : vector<8x128xf32>
    %248 = arith.truncf %247 : vector<8x128xf32> to vector<8x128xbf16>
    %c5_115 = arith.constant 5 : index
    %c0_116 = arith.constant 0 : index
    %c0_117 = arith.constant 0 : index
    %249 = vector.load %arg13[%c5_115, %c0_116, %c0_117] : memref<8x8x128xbf16, #tpu.memory_space<vmem>>, vector<1x8x128xbf16>
    %250 = vector.shape_cast %249 : vector<1x8x128xbf16> to vector<8x128xbf16>
    %251 = vector.shape_cast %248 : vector<8x128xbf16> to vector<1x8x128xbf16>
    tpu.vector_store %arg13[%c5_115, %c0_116, %c0_117], %251 {strides = array<i32>} : memref<8x8x128xbf16, #tpu.memory_space<vmem>>, vector<1x8x128xbf16>,
    %c6_118 = arith.constant 6 : index
    %c0_119 = arith.constant 0 : index
    %c0_120 = arith.constant 0 : index
    %252 = vector.load %arg12[%c6_118, %c0_119, %c0_120] : memref<8x8x512xf32, #tpu.memory_space<vmem>>, vector<1x8x512xf32>
    %253 = vector.shape_cast %252 : vector<1x8x512xf32> to vector<8x512xf32>
    %c0_121 = arith.constant 0 : index
    %c0_122 = arith.constant 0 : index
    %254 = vector.load %arg4[%c0_121, %c0_122] : memref<128x512xbf16, #tpu.memory_space<vmem>>, vector<128x512xbf16>
    %cst_123 = arith.constant dense<0.000000e+00> : vector<8x512xf32>
    %255 = tpu.matmul %248, %254, %cst_123 {dimension_numbers = #tpu.dot_dimension_numbers<[1], [0], [0], [1], [0, 0, 1, 1], [], []>} : vector<8x128xbf16>, vector<128x512xbf16>, vector<8x512xf32> -> vector<8x512xf32>
    %256 = arith.addf %253, %255 : vector<8x512xf32>
    %257 = vector.extract_strided_slice %256 {offsets = [0, 0], sizes = [8, 128], strides = [1, 1]} : vector<8x512xf32> to vector<8x128xf32>
    %cst_124 = arith.constant 0.000000e+00 : f32
    %258 = vector.broadcast %cst_124 : f32 to vector<8x128xf32>
    %259 = arith.subf %258, %257 : vector<8x128xf32>
    %260 = math.exp %259 : vector<8x128xf32>
    %cst_125 = arith.constant 1.000000e+00 : f32
    %261 = vector.broadcast %cst_125 : f32 to vector<8x128xf32>
    %262 = arith.addf %261, %260 : vector<8x128xf32>
    %263 = tpu.reciprocal %262 {approx = true} : vector<8x128xf32> -> vector<8x128xf32>
    %264 = vector.extract_strided_slice %256 {offsets = [0, 128], sizes = [8, 128], strides = [1, 1]} : vector<8x512xf32> to vector<8x128xf32>
    %cst_126 = arith.constant 0.000000e+00 : f32
    %265 = vector.broadcast %cst_126 : f32 to vector<8x128xf32>
    %266 = arith.subf %265, %264 : vector<8x128xf32>
    %267 = math.exp %266 : vector<8x128xf32>
    %cst_127 = arith.constant 1.000000e+00 : f32
    %268 = vector.broadcast %cst_127 : f32 to vector<8x128xf32>
    %269 = arith.addf %268, %267 : vector<8x128xf32>
    %270 = tpu.reciprocal %269 {approx = true} : vector<8x128xf32> -> vector<8x128xf32>
    %271 = vector.extract_strided_slice %256 {offsets = [0, 256], sizes = [8, 128], strides = [1, 1]} : vector<8x512xf32> to vector<8x128xf32>
    %272 = math.tanh %271 : vector<8x128xf32>
    %273 = vector.extract_strided_slice %256 {offsets = [0, 384], sizes = [8, 128], strides = [1, 1]} : vector<8x512xf32> to vector<8x128xf32>
    %cst_128 = arith.constant 0.000000e+00 : f32
    %274 = vector.broadcast %cst_128 : f32 to vector<8x128xf32>
    %275 = arith.subf %274, %273 : vector<8x128xf32>
    %276 = math.exp %275 : vector<8x128xf32>
    %cst_129 = arith.constant 1.000000e+00 : f32
    %277 = vector.broadcast %cst_129 : f32 to vector<8x128xf32>
    %278 = arith.addf %277, %276 : vector<8x128xf32>
    %279 = tpu.reciprocal %278 {approx = true} : vector<8x128xf32> -> vector<8x128xf32>
    %280 = arith.mulf %270, %245 : vector<8x128xf32>
    %281 = arith.mulf %263, %272 : vector<8x128xf32>
    %282 = arith.addf %280, %281 : vector<8x128xf32>
    %283 = math.tanh %282 : vector<8x128xf32>
    %284 = arith.mulf %279, %283 : vector<8x128xf32>
    %285 = arith.truncf %284 : vector<8x128xf32> to vector<8x128xbf16>
    %c6_130 = arith.constant 6 : index
    %c0_131 = arith.constant 0 : index
    %c0_132 = arith.constant 0 : index
    %286 = vector.load %arg13[%c6_130, %c0_131, %c0_132] : memref<8x8x128xbf16, #tpu.memory_space<vmem>>, vector<1x8x128xbf16>
    %287 = vector.shape_cast %286 : vector<1x8x128xbf16> to vector<8x128xbf16>
    %288 = vector.shape_cast %285 : vector<8x128xbf16> to vector<1x8x128xbf16>
    tpu.vector_store %arg13[%c6_130, %c0_131, %c0_132], %288 {strides = array<i32>} : memref<8x8x128xbf16, #tpu.memory_space<vmem>>, vector<1x8x128xbf16>,
    %c7_133 = arith.constant 7 : index
    %c0_134 = arith.constant 0 : index
    %c0_135 = arith.constant 0 : index
    %289 = vector.load %arg12[%c7_133, %c0_134, %c0_135] : memref<8x8x512xf32, #tpu.memory_space<vmem>>, vector<1x8x512xf32>
    %290 = vector.shape_cast %289 : vector<1x8x512xf32> to vector<8x512xf32>
    %c0_136 = arith.constant 0 : index
    %c0_137 = arith.constant 0 : index
    %291 = vector.load %arg4[%c0_136, %c0_137] : memref<128x512xbf16, #tpu.memory_space<vmem>>, vector<128x512xbf16>
    %cst_138 = arith.constant dense<0.000000e+00> : vector<8x512xf32>
    %292 = tpu.matmul %285, %291, %cst_138 {dimension_numbers = #tpu.dot_dimension_numbers<[1], [0], [0], [1], [0, 0, 1, 1], [], []>} : vector<8x128xbf16>, vector<128x512xbf16>, vector<8x512xf32> -> vector<8x512xf32>
    %293 = arith.addf %290, %292 : vector<8x512xf32>
    %294 = vector.extract_strided_slice %293 {offsets = [0, 0], sizes = [8, 128], strides = [1, 1]} : vector<8x512xf32> to vector<8x128xf32>
    %cst_139 = arith.constant 0.000000e+00 : f32
    %295 = vector.broadcast %cst_139 : f32 to vector<8x128xf32>
    %296 = arith.subf %295, %294 : vector<8x128xf32>
    %297 = math.exp %296 : vector<8x128xf32>
    %cst_140 = arith.constant 1.000000e+00 : f32
    %298 = vector.broadcast %cst_140 : f32 to vector<8x128xf32>
    %299 = arith.addf %298, %297 : vector<8x128xf32>
    %300 = tpu.reciprocal %299 {approx = true} : vector<8x128xf32> -> vector<8x128xf32>
    %301 = vector.extract_strided_slice %293 {offsets = [0, 128], sizes = [8, 128], strides = [1, 1]} : vector<8x512xf32> to vector<8x128xf32>
    %cst_141 = arith.constant 0.000000e+00 : f32
    %302 = vector.broadcast %cst_141 : f32 to vector<8x128xf32>
    %303 = arith.subf %302, %301 : vector<8x128xf32>
    %304 = math.exp %303 : vector<8x128xf32>
    %cst_142 = arith.constant 1.000000e+00 : f32
    %305 = vector.broadcast %cst_142 : f32 to vector<8x128xf32>
    %306 = arith.addf %305, %304 : vector<8x128xf32>
    %307 = tpu.reciprocal %306 {approx = true} : vector<8x128xf32> -> vector<8x128xf32>
    %308 = vector.extract_strided_slice %293 {offsets = [0, 256], sizes = [8, 128], strides = [1, 1]} : vector<8x512xf32> to vector<8x128xf32>
    %309 = math.tanh %308 : vector<8x128xf32>
    %310 = vector.extract_strided_slice %293 {offsets = [0, 384], sizes = [8, 128], strides = [1, 1]} : vector<8x512xf32> to vector<8x128xf32>
    %cst_143 = arith.constant 0.000000e+00 : f32
    %311 = vector.broadcast %cst_143 : f32 to vector<8x128xf32>
    %312 = arith.subf %311, %310 : vector<8x128xf32>
    %313 = math.exp %312 : vector<8x128xf32>
    %cst_144 = arith.constant 1.000000e+00 : f32
    %314 = vector.broadcast %cst_144 : f32 to vector<8x128xf32>
    %315 = arith.addf %314, %313 : vector<8x128xf32>
    %316 = tpu.reciprocal %315 {approx = true} : vector<8x128xf32> -> vector<8x128xf32>
    %317 = arith.mulf %307, %282 : vector<8x128xf32>
    %318 = arith.mulf %300, %309 : vector<8x128xf32>
    %319 = arith.addf %317, %318 : vector<8x128xf32>
    %320 = math.tanh %319 : vector<8x128xf32>
    %321 = arith.mulf %316, %320 : vector<8x128xf32>
    %322 = arith.truncf %321 : vector<8x128xf32> to vector<8x128xbf16>
    %c7_145 = arith.constant 7 : index
    %c0_146 = arith.constant 0 : index
    %c0_147 = arith.constant 0 : index
    %323 = vector.load %arg13[%c7_145, %c0_146, %c0_147] : memref<8x8x128xbf16, #tpu.memory_space<vmem>>, vector<1x8x128xbf16>
    %324 = vector.shape_cast %323 : vector<1x8x128xbf16> to vector<8x128xbf16>
    %325 = vector.shape_cast %322 : vector<8x128xbf16> to vector<1x8x128xbf16>
    tpu.vector_store %arg13[%c7_145, %c0_146, %c0_147], %325 {strides = array<i32>} : memref<8x8x128xbf16, #tpu.memory_space<vmem>>, vector<1x8x128xbf16>,
    %c0_148 = arith.constant 0 : index
    %c0_149 = arith.constant 0 : index
    %326 = vector.load %arg14[%c0_148, %c0_149] : memref<8x128xbf16, #tpu.memory_space<vmem>>, vector<8x128xbf16>
    tpu.vector_store %arg14[%c0_148, %c0_149], %322 {strides = array<i32>} : memref<8x128xbf16, #tpu.memory_space<vmem>>, vector<8x128xbf16>,
    %c0_150 = arith.constant 0 : index
    %c0_151 = arith.constant 0 : index
    %327 = vector.load %arg15[%c0_150, %c0_151] : memref<8x128xf32, #tpu.memory_space<vmem>>, vector<8x128xf32>
    tpu.vector_store %arg15[%c0_150, %c0_151], %319 {strides = array<i32>} : memref<8x128xf32, #tpu.memory_space<vmem>>, vector<8x128xf32>,
    %c0_152 = arith.constant 0 : index
    %c0_153 = arith.constant 0 : index
    %c0_154 = arith.constant 0 : index
    %328 = vector.load %arg13[%c0_152, %c0_153, %c0_154] : memref<8x8x128xbf16, #tpu.memory_space<vmem>>, vector<8x8x128xbf16>
    %329 = vector.shape_cast %328 : vector<8x8x128xbf16> to vector<64x128xbf16>
    %c0_155 = arith.constant 0 : index
    %c0_156 = arith.constant 0 : index
    %330 = vector.load %arg6[%c0_155, %c0_156] : memref<128x512xbf16, #tpu.memory_space<vmem>>, vector<128x512xbf16>
    %cst_157 = arith.constant dense<0.000000e+00> : vector<64x512xf32>
    %331 = tpu.matmul %329, %330, %cst_157 {dimension_numbers = #tpu.dot_dimension_numbers<[1], [0], [0], [1], [0, 0, 1, 1], [], []>} : vector<64x128xbf16>, vector<128x512xbf16>, vector<64x512xf32> -> vector<64x512xf32>
    %c0_158 = arith.constant 0 : index
    %c0_159 = arith.constant 0 : index
    %332 = vector.load %arg8[%c0_158, %c0_159] : memref<1x512xf32, #tpu.memory_space<vmem>>, vector<1x512xf32>
    %333 = vector.broadcast %332 : vector<1x512xf32> to vector<64x512xf32>
    %334 = arith.addf %331, %333 : vector<64x512xf32>
    %335 = vector.shape_cast %334 : vector<64x512xf32> to vector<8x8x512xf32>
    %c0_160 = arith.constant 0 : index
    %c0_161 = arith.constant 0 : index
    %c0_162 = arith.constant 0 : index
    %336 = vector.load %arg12[%c0_160, %c0_161, %c0_162] : memref<8x8x512xf32, #tpu.memory_space<vmem>>, vector<8x8x512xf32>
    tpu.vector_store %arg12[%c0_160, %c0_161, %c0_162], %335 {strides = array<i32>} : memref<8x8x512xf32, #tpu.memory_space<vmem>>, vector<8x8x512xf32>,
    %c0_163 = arith.constant 0 : index
    %c0_164 = arith.constant 0 : index
    %337 = vector.load %arg16[%c0_163, %c0_164] : memref<8x128xbf16, #tpu.memory_space<vmem>>, vector<8x128xbf16>
    %c0_165 = arith.constant 0 : index
    %c0_166 = arith.constant 0 : index
    %338 = vector.load %arg17[%c0_165, %c0_166] : memref<8x128xf32, #tpu.memory_space<vmem>>, vector<8x128xf32>
    %c0_167 = arith.constant 0 : index
    %c0_168 = arith.constant 0 : index
    %c0_169 = arith.constant 0 : index
    %339 = vector.load %arg12[%c0_167, %c0_168, %c0_169] : memref<8x8x512xf32, #tpu.memory_space<vmem>>, vector<1x8x512xf32>
    %340 = vector.shape_cast %339 : vector<1x8x512xf32> to vector<8x512xf32>
    %c0_170 = arith.constant 0 : index
    %c0_171 = arith.constant 0 : index
    %341 = vector.load %arg7[%c0_170, %c0_171] : memref<128x512xbf16, #tpu.memory_space<vmem>>, vector<128x512xbf16>
    %cst_172 = arith.constant dense<0.000000e+00> : vector<8x512xf32>
    %342 = tpu.matmul %337, %341, %cst_172 {dimension_numbers = #tpu.dot_dimension_numbers<[1], [0], [0], [1], [0, 0, 1, 1], [], []>} : vector<8x128xbf16>, vector<128x512xbf16>, vector<8x512xf32> -> vector<8x512xf32>
    %343 = arith.addf %340, %342 : vector<8x512xf32>
    %344 = vector.extract_strided_slice %343 {offsets = [0, 0], sizes = [8, 128], strides = [1, 1]} : vector<8x512xf32> to vector<8x128xf32>
    %cst_173 = arith.constant 0.000000e+00 : f32
    %345 = vector.broadcast %cst_173 : f32 to vector<8x128xf32>
    %346 = arith.subf %345, %344 : vector<8x128xf32>
    %347 = math.exp %346 : vector<8x128xf32>
    %cst_174 = arith.constant 1.000000e+00 : f32
    %348 = vector.broadcast %cst_174 : f32 to vector<8x128xf32>
    %349 = arith.addf %348, %347 : vector<8x128xf32>
    %350 = tpu.reciprocal %349 {approx = true} : vector<8x128xf32> -> vector<8x128xf32>
    %351 = vector.extract_strided_slice %343 {offsets = [0, 128], sizes = [8, 128], strides = [1, 1]} : vector<8x512xf32> to vector<8x128xf32>
    %cst_175 = arith.constant 0.000000e+00 : f32
    %352 = vector.broadcast %cst_175 : f32 to vector<8x128xf32>
    %353 = arith.subf %352, %351 : vector<8x128xf32>
    %354 = math.exp %353 : vector<8x128xf32>
    %cst_176 = arith.constant 1.000000e+00 : f32
    %355 = vector.broadcast %cst_176 : f32 to vector<8x128xf32>
    %356 = arith.addf %355, %354 : vector<8x128xf32>
    %357 = tpu.reciprocal %356 {approx = true} : vector<8x128xf32> -> vector<8x128xf32>
    %358 = vector.extract_strided_slice %343 {offsets = [0, 256], sizes = [8, 128], strides = [1, 1]} : vector<8x512xf32> to vector<8x128xf32>
    %359 = math.tanh %358 : vector<8x128xf32>
    %360 = vector.extract_strided_slice %343 {offsets = [0, 384], sizes = [8, 128], strides = [1, 1]} : vector<8x512xf32> to vector<8x128xf32>
    %cst_177 = arith.constant 0.000000e+00 : f32
    %361 = vector.broadcast %cst_177 : f32 to vector<8x128xf32>
    %362 = arith.subf %361, %360 : vector<8x128xf32>
    %363 = math.exp %362 : vector<8x128xf32>
    %cst_178 = arith.constant 1.000000e+00 : f32
    %364 = vector.broadcast %cst_178 : f32 to vector<8x128xf32>
    %365 = arith.addf %364, %363 : vector<8x128xf32>
    %366 = tpu.reciprocal %365 {approx = true} : vector<8x128xf32> -> vector<8x128xf32>
    %367 = arith.mulf %357, %338 : vector<8x128xf32>
    %368 = arith.mulf %350, %359 : vector<8x128xf32>
    %369 = arith.addf %367, %368 : vector<8x128xf32>
    %370 = math.tanh %369 : vector<8x128xf32>
    %371 = arith.mulf %366, %370 : vector<8x128xf32>
    %372 = arith.truncf %371 : vector<8x128xf32> to vector<8x128xbf16>
    %c1_179 = arith.constant 1 : index
    %c0_180 = arith.constant 0 : index
    %c0_181 = arith.constant 0 : index
    %373 = vector.load %arg12[%c1_179, %c0_180, %c0_181] : memref<8x8x512xf32, #tpu.memory_space<vmem>>, vector<1x8x512xf32>
    %374 = vector.shape_cast %373 : vector<1x8x512xf32> to vector<8x512xf32>
    %c0_182 = arith.constant 0 : index
    %c0_183 = arith.constant 0 : index
    %375 = vector.load %arg7[%c0_182, %c0_183] : memref<128x512xbf16, #tpu.memory_space<vmem>>, vector<128x512xbf16>
    %cst_184 = arith.constant dense<0.000000e+00> : vector<8x512xf32>
    %376 = tpu.matmul %372, %375, %cst_184 {dimension_numbers = #tpu.dot_dimension_numbers<[1], [0], [0], [1], [0, 0, 1, 1], [], []>} : vector<8x128xbf16>, vector<128x512xbf16>, vector<8x512xf32> -> vector<8x512xf32>
    %377 = arith.addf %374, %376 : vector<8x512xf32>
    %378 = vector.extract_strided_slice %377 {offsets = [0, 0], sizes = [8, 128], strides = [1, 1]} : vector<8x512xf32> to vector<8x128xf32>
    %cst_185 = arith.constant 0.000000e+00 : f32
    %379 = vector.broadcast %cst_185 : f32 to vector<8x128xf32>
    %380 = arith.subf %379, %378 : vector<8x128xf32>
    %381 = math.exp %380 : vector<8x128xf32>
    %cst_186 = arith.constant 1.000000e+00 : f32
    %382 = vector.broadcast %cst_186 : f32 to vector<8x128xf32>
    %383 = arith.addf %382, %381 : vector<8x128xf32>
    %384 = tpu.reciprocal %383 {approx = true} : vector<8x128xf32> -> vector<8x128xf32>
    %385 = vector.extract_strided_slice %377 {offsets = [0, 128], sizes = [8, 128], strides = [1, 1]} : vector<8x512xf32> to vector<8x128xf32>
    %cst_187 = arith.constant 0.000000e+00 : f32
    %386 = vector.broadcast %cst_187 : f32 to vector<8x128xf32>
    %387 = arith.subf %386, %385 : vector<8x128xf32>
    %388 = math.exp %387 : vector<8x128xf32>
    %cst_188 = arith.constant 1.000000e+00 : f32
    %389 = vector.broadcast %cst_188 : f32 to vector<8x128xf32>
    %390 = arith.addf %389, %388 : vector<8x128xf32>
    %391 = tpu.reciprocal %390 {approx = true} : vector<8x128xf32> -> vector<8x128xf32>
    %392 = vector.extract_strided_slice %377 {offsets = [0, 256], sizes = [8, 128], strides = [1, 1]} : vector<8x512xf32> to vector<8x128xf32>
    %393 = math.tanh %392 : vector<8x128xf32>
    %394 = vector.extract_strided_slice %377 {offsets = [0, 384], sizes = [8, 128], strides = [1, 1]} : vector<8x512xf32> to vector<8x128xf32>
    %cst_189 = arith.constant 0.000000e+00 : f32
    %395 = vector.broadcast %cst_189 : f32 to vector<8x128xf32>
    %396 = arith.subf %395, %394 : vector<8x128xf32>
    %397 = math.exp %396 : vector<8x128xf32>
    %cst_190 = arith.constant 1.000000e+00 : f32
    %398 = vector.broadcast %cst_190 : f32 to vector<8x128xf32>
    %399 = arith.addf %398, %397 : vector<8x128xf32>
    %400 = tpu.reciprocal %399 {approx = true} : vector<8x128xf32> -> vector<8x128xf32>
    %401 = arith.mulf %391, %369 : vector<8x128xf32>
    %402 = arith.mulf %384, %393 : vector<8x128xf32>
    %403 = arith.addf %401, %402 : vector<8x128xf32>
    %404 = math.tanh %403 : vector<8x128xf32>
    %405 = arith.mulf %400, %404 : vector<8x128xf32>
    %406 = arith.truncf %405 : vector<8x128xf32> to vector<8x128xbf16>
    %c2_191 = arith.constant 2 : index
    %c0_192 = arith.constant 0 : index
    %c0_193 = arith.constant 0 : index
    %407 = vector.load %arg12[%c2_191, %c0_192, %c0_193] : memref<8x8x512xf32, #tpu.memory_space<vmem>>, vector<1x8x512xf32>
    %408 = vector.shape_cast %407 : vector<1x8x512xf32> to vector<8x512xf32>
    %c0_194 = arith.constant 0 : index
    %c0_195 = arith.constant 0 : index
    %409 = vector.load %arg7[%c0_194, %c0_195] : memref<128x512xbf16, #tpu.memory_space<vmem>>, vector<128x512xbf16>
    %cst_196 = arith.constant dense<0.000000e+00> : vector<8x512xf32>
    %410 = tpu.matmul %406, %409, %cst_196 {dimension_numbers = #tpu.dot_dimension_numbers<[1], [0], [0], [1], [0, 0, 1, 1], [], []>} : vector<8x128xbf16>, vector<128x512xbf16>, vector<8x512xf32> -> vector<8x512xf32>
    %411 = arith.addf %408, %410 : vector<8x512xf32>
    %412 = vector.extract_strided_slice %411 {offsets = [0, 0], sizes = [8, 128], strides = [1, 1]} : vector<8x512xf32> to vector<8x128xf32>
    %cst_197 = arith.constant 0.000000e+00 : f32
    %413 = vector.broadcast %cst_197 : f32 to vector<8x128xf32>
    %414 = arith.subf %413, %412 : vector<8x128xf32>
    %415 = math.exp %414 : vector<8x128xf32>
    %cst_198 = arith.constant 1.000000e+00 : f32
    %416 = vector.broadcast %cst_198 : f32 to vector<8x128xf32>
    %417 = arith.addf %416, %415 : vector<8x128xf32>
    %418 = tpu.reciprocal %417 {approx = true} : vector<8x128xf32> -> vector<8x128xf32>
    %419 = vector.extract_strided_slice %411 {offsets = [0, 128], sizes = [8, 128], strides = [1, 1]} : vector<8x512xf32> to vector<8x128xf32>
    %cst_199 = arith.constant 0.000000e+00 : f32
    %420 = vector.broadcast %cst_199 : f32 to vector<8x128xf32>
    %421 = arith.subf %420, %419 : vector<8x128xf32>
    %422 = math.exp %421 : vector<8x128xf32>
    %cst_200 = arith.constant 1.000000e+00 : f32
    %423 = vector.broadcast %cst_200 : f32 to vector<8x128xf32>
    %424 = arith.addf %423, %422 : vector<8x128xf32>
    %425 = tpu.reciprocal %424 {approx = true} : vector<8x128xf32> -> vector<8x128xf32>
    %426 = vector.extract_strided_slice %411 {offsets = [0, 256], sizes = [8, 128], strides = [1, 1]} : vector<8x512xf32> to vector<8x128xf32>
    %427 = math.tanh %426 : vector<8x128xf32>
    %428 = vector.extract_strided_slice %411 {offsets = [0, 384], sizes = [8, 128], strides = [1, 1]} : vector<8x512xf32> to vector<8x128xf32>
    %cst_201 = arith.constant 0.000000e+00 : f32
    %429 = vector.broadcast %cst_201 : f32 to vector<8x128xf32>
    %430 = arith.subf %429, %428 : vector<8x128xf32>
    %431 = math.exp %430 : vector<8x128xf32>
    %cst_202 = arith.constant 1.000000e+00 : f32
    %432 = vector.broadcast %cst_202 : f32 to vector<8x128xf32>
    %433 = arith.addf %432, %431 : vector<8x128xf32>
    %434 = tpu.reciprocal %433 {approx = true} : vector<8x128xf32> -> vector<8x128xf32>
    %435 = arith.mulf %425, %403 : vector<8x128xf32>
    %436 = arith.mulf %418, %427 : vector<8x128xf32>
    %437 = arith.addf %435, %436 : vector<8x128xf32>
    %438 = math.tanh %437 : vector<8x128xf32>
    %439 = arith.mulf %434, %438 : vector<8x128xf32>
    %440 = arith.truncf %439 : vector<8x128xf32> to vector<8x128xbf16>
    %c3_203 = arith.constant 3 : index
    %c0_204 = arith.constant 0 : index
    %c0_205 = arith.constant 0 : index
    %441 = vector.load %arg12[%c3_203, %c0_204, %c0_205] : memref<8x8x512xf32, #tpu.memory_space<vmem>>, vector<1x8x512xf32>
    %442 = vector.shape_cast %441 : vector<1x8x512xf32> to vector<8x512xf32>
    %c0_206 = arith.constant 0 : index
    %c0_207 = arith.constant 0 : index
    %443 = vector.load %arg7[%c0_206, %c0_207] : memref<128x512xbf16, #tpu.memory_space<vmem>>, vector<128x512xbf16>
    %cst_208 = arith.constant dense<0.000000e+00> : vector<8x512xf32>
    %444 = tpu.matmul %440, %443, %cst_208 {dimension_numbers = #tpu.dot_dimension_numbers<[1], [0], [0], [1], [0, 0, 1, 1], [], []>} : vector<8x128xbf16>, vector<128x512xbf16>, vector<8x512xf32> -> vector<8x512xf32>
    %445 = arith.addf %442, %444 : vector<8x512xf32>
    %446 = vector.extract_strided_slice %445 {offsets = [0, 0], sizes = [8, 128], strides = [1, 1]} : vector<8x512xf32> to vector<8x128xf32>
    %cst_209 = arith.constant 0.000000e+00 : f32
    %447 = vector.broadcast %cst_209 : f32 to vector<8x128xf32>
    %448 = arith.subf %447, %446 : vector<8x128xf32>
    %449 = math.exp %448 : vector<8x128xf32>
    %cst_210 = arith.constant 1.000000e+00 : f32
    %450 = vector.broadcast %cst_210 : f32 to vector<8x128xf32>
    %451 = arith.addf %450, %449 : vector<8x128xf32>
    %452 = tpu.reciprocal %451 {approx = true} : vector<8x128xf32> -> vector<8x128xf32>
    %453 = vector.extract_strided_slice %445 {offsets = [0, 128], sizes = [8, 128], strides = [1, 1]} : vector<8x512xf32> to vector<8x128xf32>
    %cst_211 = arith.constant 0.000000e+00 : f32
    %454 = vector.broadcast %cst_211 : f32 to vector<8x128xf32>
    %455 = arith.subf %454, %453 : vector<8x128xf32>
    %456 = math.exp %455 : vector<8x128xf32>
    %cst_212 = arith.constant 1.000000e+00 : f32
    %457 = vector.broadcast %cst_212 : f32 to vector<8x128xf32>
    %458 = arith.addf %457, %456 : vector<8x128xf32>
    %459 = tpu.reciprocal %458 {approx = true} : vector<8x128xf32> -> vector<8x128xf32>
    %460 = vector.extract_strided_slice %445 {offsets = [0, 256], sizes = [8, 128], strides = [1, 1]} : vector<8x512xf32> to vector<8x128xf32>
    %461 = math.tanh %460 : vector<8x128xf32>
    %462 = vector.extract_strided_slice %445 {offsets = [0, 384], sizes = [8, 128], strides = [1, 1]} : vector<8x512xf32> to vector<8x128xf32>
    %cst_213 = arith.constant 0.000000e+00 : f32
    %463 = vector.broadcast %cst_213 : f32 to vector<8x128xf32>
    %464 = arith.subf %463, %462 : vector<8x128xf32>
    %465 = math.exp %464 : vector<8x128xf32>
    %cst_214 = arith.constant 1.000000e+00 : f32
    %466 = vector.broadcast %cst_214 : f32 to vector<8x128xf32>
    %467 = arith.addf %466, %465 : vector<8x128xf32>
    %468 = tpu.reciprocal %467 {approx = true} : vector<8x128xf32> -> vector<8x128xf32>
    %469 = arith.mulf %459, %437 : vector<8x128xf32>
    %470 = arith.mulf %452, %461 : vector<8x128xf32>
    %471 = arith.addf %469, %470 : vector<8x128xf32>
    %472 = math.tanh %471 : vector<8x128xf32>
    %473 = arith.mulf %468, %472 : vector<8x128xf32>
    %474 = arith.truncf %473 : vector<8x128xf32> to vector<8x128xbf16>
    %c4_215 = arith.constant 4 : index
    %c0_216 = arith.constant 0 : index
    %c0_217 = arith.constant 0 : index
    %475 = vector.load %arg12[%c4_215, %c0_216, %c0_217] : memref<8x8x512xf32, #tpu.memory_space<vmem>>, vector<1x8x512xf32>
    %476 = vector.shape_cast %475 : vector<1x8x512xf32> to vector<8x512xf32>
    %c0_218 = arith.constant 0 : index
    %c0_219 = arith.constant 0 : index
    %477 = vector.load %arg7[%c0_218, %c0_219] : memref<128x512xbf16, #tpu.memory_space<vmem>>, vector<128x512xbf16>
    %cst_220 = arith.constant dense<0.000000e+00> : vector<8x512xf32>
    %478 = tpu.matmul %474, %477, %cst_220 {dimension_numbers = #tpu.dot_dimension_numbers<[1], [0], [0], [1], [0, 0, 1, 1], [], []>} : vector<8x128xbf16>, vector<128x512xbf16>, vector<8x512xf32> -> vector<8x512xf32>
    %479 = arith.addf %476, %478 : vector<8x512xf32>
    %480 = vector.extract_strided_slice %479 {offsets = [0, 0], sizes = [8, 128], strides = [1, 1]} : vector<8x512xf32> to vector<8x128xf32>
    %cst_221 = arith.constant 0.000000e+00 : f32
    %481 = vector.broadcast %cst_221 : f32 to vector<8x128xf32>
    %482 = arith.subf %481, %480 : vector<8x128xf32>
    %483 = math.exp %482 : vector<8x128xf32>
    %cst_222 = arith.constant 1.000000e+00 : f32
    %484 = vector.broadcast %cst_222 : f32 to vector<8x128xf32>
    %485 = arith.addf %484, %483 : vector<8x128xf32>
    %486 = tpu.reciprocal %485 {approx = true} : vector<8x128xf32> -> vector<8x128xf32>
    %487 = vector.extract_strided_slice %479 {offsets = [0, 128], sizes = [8, 128], strides = [1, 1]} : vector<8x512xf32> to vector<8x128xf32>
    %cst_223 = arith.constant 0.000000e+00 : f32
    %488 = vector.broadcast %cst_223 : f32 to vector<8x128xf32>
    %489 = arith.subf %488, %487 : vector<8x128xf32>
    %490 = math.exp %489 : vector<8x128xf32>
    %cst_224 = arith.constant 1.000000e+00 : f32
    %491 = vector.broadcast %cst_224 : f32 to vector<8x128xf32>
    %492 = arith.addf %491, %490 : vector<8x128xf32>
    %493 = tpu.reciprocal %492 {approx = true} : vector<8x128xf32> -> vector<8x128xf32>
    %494 = vector.extract_strided_slice %479 {offsets = [0, 256], sizes = [8, 128], strides = [1, 1]} : vector<8x512xf32> to vector<8x128xf32>
    %495 = math.tanh %494 : vector<8x128xf32>
    %496 = vector.extract_strided_slice %479 {offsets = [0, 384], sizes = [8, 128], strides = [1, 1]} : vector<8x512xf32> to vector<8x128xf32>
    %cst_225 = arith.constant 0.000000e+00 : f32
    %497 = vector.broadcast %cst_225 : f32 to vector<8x128xf32>
    %498 = arith.subf %497, %496 : vector<8x128xf32>
    %499 = math.exp %498 : vector<8x128xf32>
    %cst_226 = arith.constant 1.000000e+00 : f32
    %500 = vector.broadcast %cst_226 : f32 to vector<8x128xf32>
    %501 = arith.addf %500, %499 : vector<8x128xf32>
    %502 = tpu.reciprocal %501 {approx = true} : vector<8x128xf32> -> vector<8x128xf32>
    %503 = arith.mulf %493, %471 : vector<8x128xf32>
    %504 = arith.mulf %486, %495 : vector<8x128xf32>
    %505 = arith.addf %503, %504 : vector<8x128xf32>
    %506 = math.tanh %505 : vector<8x128xf32>
    %507 = arith.mulf %502, %506 : vector<8x128xf32>
    %508 = arith.truncf %507 : vector<8x128xf32> to vector<8x128xbf16>
    %c5_227 = arith.constant 5 : index
    %c0_228 = arith.constant 0 : index
    %c0_229 = arith.constant 0 : index
    %509 = vector.load %arg12[%c5_227, %c0_228, %c0_229] : memref<8x8x512xf32, #tpu.memory_space<vmem>>, vector<1x8x512xf32>
    %510 = vector.shape_cast %509 : vector<1x8x512xf32> to vector<8x512xf32>
    %c0_230 = arith.constant 0 : index
    %c0_231 = arith.constant 0 : index
    %511 = vector.load %arg7[%c0_230, %c0_231] : memref<128x512xbf16, #tpu.memory_space<vmem>>, vector<128x512xbf16>
    %cst_232 = arith.constant dense<0.000000e+00> : vector<8x512xf32>
    %512 = tpu.matmul %508, %511, %cst_232 {dimension_numbers = #tpu.dot_dimension_numbers<[1], [0], [0], [1], [0, 0, 1, 1], [], []>} : vector<8x128xbf16>, vector<128x512xbf16>, vector<8x512xf32> -> vector<8x512xf32>
    %513 = arith.addf %510, %512 : vector<8x512xf32>
    %514 = vector.extract_strided_slice %513 {offsets = [0, 0], sizes = [8, 128], strides = [1, 1]} : vector<8x512xf32> to vector<8x128xf32>
    %cst_233 = arith.constant 0.000000e+00 : f32
    %515 = vector.broadcast %cst_233 : f32 to vector<8x128xf32>
    %516 = arith.subf %515, %514 : vector<8x128xf32>
    %517 = math.exp %516 : vector<8x128xf32>
    %cst_234 = arith.constant 1.000000e+00 : f32
    %518 = vector.broadcast %cst_234 : f32 to vector<8x128xf32>
    %519 = arith.addf %518, %517 : vector<8x128xf32>
    %520 = tpu.reciprocal %519 {approx = true} : vector<8x128xf32> -> vector<8x128xf32>
    %521 = vector.extract_strided_slice %513 {offsets = [0, 128], sizes = [8, 128], strides = [1, 1]} : vector<8x512xf32> to vector<8x128xf32>
    %cst_235 = arith.constant 0.000000e+00 : f32
    %522 = vector.broadcast %cst_235 : f32 to vector<8x128xf32>
    %523 = arith.subf %522, %521 : vector<8x128xf32>
    %524 = math.exp %523 : vector<8x128xf32>
    %cst_236 = arith.constant 1.000000e+00 : f32
    %525 = vector.broadcast %cst_236 : f32 to vector<8x128xf32>
    %526 = arith.addf %525, %524 : vector<8x128xf32>
    %527 = tpu.reciprocal %526 {approx = true} : vector<8x128xf32> -> vector<8x128xf32>
    %528 = vector.extract_strided_slice %513 {offsets = [0, 256], sizes = [8, 128], strides = [1, 1]} : vector<8x512xf32> to vector<8x128xf32>
    %529 = math.tanh %528 : vector<8x128xf32>
    %530 = vector.extract_strided_slice %513 {offsets = [0, 384], sizes = [8, 128], strides = [1, 1]} : vector<8x512xf32> to vector<8x128xf32>
    %cst_237 = arith.constant 0.000000e+00 : f32
    %531 = vector.broadcast %cst_237 : f32 to vector<8x128xf32>
    %532 = arith.subf %531, %530 : vector<8x128xf32>
    %533 = math.exp %532 : vector<8x128xf32>
    %cst_238 = arith.constant 1.000000e+00 : f32
    %534 = vector.broadcast %cst_238 : f32 to vector<8x128xf32>
    %535 = arith.addf %534, %533 : vector<8x128xf32>
    %536 = tpu.reciprocal %535 {approx = true} : vector<8x128xf32> -> vector<8x128xf32>
    %537 = arith.mulf %527, %505 : vector<8x128xf32>
    %538 = arith.mulf %520, %529 : vector<8x128xf32>
    %539 = arith.addf %537, %538 : vector<8x128xf32>
    %540 = math.tanh %539 : vector<8x128xf32>
    %541 = arith.mulf %536, %540 : vector<8x128xf32>
    %542 = arith.truncf %541 : vector<8x128xf32> to vector<8x128xbf16>
    %c6_239 = arith.constant 6 : index
    %c0_240 = arith.constant 0 : index
    %c0_241 = arith.constant 0 : index
    %543 = vector.load %arg12[%c6_239, %c0_240, %c0_241] : memref<8x8x512xf32, #tpu.memory_space<vmem>>, vector<1x8x512xf32>
    %544 = vector.shape_cast %543 : vector<1x8x512xf32> to vector<8x512xf32>
    %c0_242 = arith.constant 0 : index
    %c0_243 = arith.constant 0 : index
    %545 = vector.load %arg7[%c0_242, %c0_243] : memref<128x512xbf16, #tpu.memory_space<vmem>>, vector<128x512xbf16>
    %cst_244 = arith.constant dense<0.000000e+00> : vector<8x512xf32>
    %546 = tpu.matmul %542, %545, %cst_244 {dimension_numbers = #tpu.dot_dimension_numbers<[1], [0], [0], [1], [0, 0, 1, 1], [], []>} : vector<8x128xbf16>, vector<128x512xbf16>, vector<8x512xf32> -> vector<8x512xf32>
    %547 = arith.addf %544, %546 : vector<8x512xf32>
    %548 = vector.extract_strided_slice %547 {offsets = [0, 0], sizes = [8, 128], strides = [1, 1]} : vector<8x512xf32> to vector<8x128xf32>
    %cst_245 = arith.constant 0.000000e+00 : f32
    %549 = vector.broadcast %cst_245 : f32 to vector<8x128xf32>
    %550 = arith.subf %549, %548 : vector<8x128xf32>
    %551 = math.exp %550 : vector<8x128xf32>
    %cst_246 = arith.constant 1.000000e+00 : f32
    %552 = vector.broadcast %cst_246 : f32 to vector<8x128xf32>
    %553 = arith.addf %552, %551 : vector<8x128xf32>
    %554 = tpu.reciprocal %553 {approx = true} : vector<8x128xf32> -> vector<8x128xf32>
    %555 = vector.extract_strided_slice %547 {offsets = [0, 128], sizes = [8, 128], strides = [1, 1]} : vector<8x512xf32> to vector<8x128xf32>
    %cst_247 = arith.constant 0.000000e+00 : f32
    %556 = vector.broadcast %cst_247 : f32 to vector<8x128xf32>
    %557 = arith.subf %556, %555 : vector<8x128xf32>
    %558 = math.exp %557 : vector<8x128xf32>
    %cst_248 = arith.constant 1.000000e+00 : f32
    %559 = vector.broadcast %cst_248 : f32 to vector<8x128xf32>
    %560 = arith.addf %559, %558 : vector<8x128xf32>
    %561 = tpu.reciprocal %560 {approx = true} : vector<8x128xf32> -> vector<8x128xf32>
    %562 = vector.extract_strided_slice %547 {offsets = [0, 256], sizes = [8, 128], strides = [1, 1]} : vector<8x512xf32> to vector<8x128xf32>
    %563 = math.tanh %562 : vector<8x128xf32>
    %564 = vector.extract_strided_slice %547 {offsets = [0, 384], sizes = [8, 128], strides = [1, 1]} : vector<8x512xf32> to vector<8x128xf32>
    %cst_249 = arith.constant 0.000000e+00 : f32
    %565 = vector.broadcast %cst_249 : f32 to vector<8x128xf32>
    %566 = arith.subf %565, %564 : vector<8x128xf32>
    %567 = math.exp %566 : vector<8x128xf32>
    %cst_250 = arith.constant 1.000000e+00 : f32
    %568 = vector.broadcast %cst_250 : f32 to vector<8x128xf32>
    %569 = arith.addf %568, %567 : vector<8x128xf32>
    %570 = tpu.reciprocal %569 {approx = true} : vector<8x128xf32> -> vector<8x128xf32>
    %571 = arith.mulf %561, %539 : vector<8x128xf32>
    %572 = arith.mulf %554, %563 : vector<8x128xf32>
    %573 = arith.addf %571, %572 : vector<8x128xf32>
    %574 = math.tanh %573 : vector<8x128xf32>
    %575 = arith.mulf %570, %574 : vector<8x128xf32>
    %576 = arith.truncf %575 : vector<8x128xf32> to vector<8x128xbf16>
    %c7_251 = arith.constant 7 : index
    %c0_252 = arith.constant 0 : index
    %c0_253 = arith.constant 0 : index
    %577 = vector.load %arg12[%c7_251, %c0_252, %c0_253] : memref<8x8x512xf32, #tpu.memory_space<vmem>>, vector<1x8x512xf32>
    %578 = vector.shape_cast %577 : vector<1x8x512xf32> to vector<8x512xf32>
    %c0_254 = arith.constant 0 : index
    %c0_255 = arith.constant 0 : index
    %579 = vector.load %arg7[%c0_254, %c0_255] : memref<128x512xbf16, #tpu.memory_space<vmem>>, vector<128x512xbf16>
    %cst_256 = arith.constant dense<0.000000e+00> : vector<8x512xf32>
    %580 = tpu.matmul %576, %579, %cst_256 {dimension_numbers = #tpu.dot_dimension_numbers<[1], [0], [0], [1], [0, 0, 1, 1], [], []>} : vector<8x128xbf16>, vector<128x512xbf16>, vector<8x512xf32> -> vector<8x512xf32>
    %581 = arith.addf %578, %580 : vector<8x512xf32>
    %582 = vector.extract_strided_slice %581 {offsets = [0, 0], sizes = [8, 128], strides = [1, 1]} : vector<8x512xf32> to vector<8x128xf32>
    %cst_257 = arith.constant 0.000000e+00 : f32
    %583 = vector.broadcast %cst_257 : f32 to vector<8x128xf32>
    %584 = arith.subf %583, %582 : vector<8x128xf32>
    %585 = math.exp %584 : vector<8x128xf32>
    %cst_258 = arith.constant 1.000000e+00 : f32
    %586 = vector.broadcast %cst_258 : f32 to vector<8x128xf32>
    %587 = arith.addf %586, %585 : vector<8x128xf32>
    %588 = tpu.reciprocal %587 {approx = true} : vector<8x128xf32> -> vector<8x128xf32>
    %589 = vector.extract_strided_slice %581 {offsets = [0, 128], sizes = [8, 128], strides = [1, 1]} : vector<8x512xf32> to vector<8x128xf32>
    %cst_259 = arith.constant 0.000000e+00 : f32
    %590 = vector.broadcast %cst_259 : f32 to vector<8x128xf32>
    %591 = arith.subf %590, %589 : vector<8x128xf32>
    %592 = math.exp %591 : vector<8x128xf32>
    %cst_260 = arith.constant 1.000000e+00 : f32
    %593 = vector.broadcast %cst_260 : f32 to vector<8x128xf32>
    %594 = arith.addf %593, %592 : vector<8x128xf32>
    %595 = tpu.reciprocal %594 {approx = true} : vector<8x128xf32> -> vector<8x128xf32>
    %596 = vector.extract_strided_slice %581 {offsets = [0, 256], sizes = [8, 128], strides = [1, 1]} : vector<8x512xf32> to vector<8x128xf32>
    %597 = math.tanh %596 : vector<8x128xf32>
    %598 = vector.extract_strided_slice %581 {offsets = [0, 384], sizes = [8, 128], strides = [1, 1]} : vector<8x512xf32> to vector<8x128xf32>
    %cst_261 = arith.constant 0.000000e+00 : f32
    %599 = vector.broadcast %cst_261 : f32 to vector<8x128xf32>
    %600 = arith.subf %599, %598 : vector<8x128xf32>
    %601 = math.exp %600 : vector<8x128xf32>
    %cst_262 = arith.constant 1.000000e+00 : f32
    %602 = vector.broadcast %cst_262 : f32 to vector<8x128xf32>
    %603 = arith.addf %602, %601 : vector<8x128xf32>
    %604 = tpu.reciprocal %603 {approx = true} : vector<8x128xf32> -> vector<8x128xf32>
    %605 = arith.mulf %595, %573 : vector<8x128xf32>
    %606 = arith.mulf %588, %597 : vector<8x128xf32>
    %607 = arith.addf %605, %606 : vector<8x128xf32>
    %608 = math.tanh %607 : vector<8x128xf32>
    %609 = arith.mulf %604, %608 : vector<8x128xf32>
    %610 = arith.truncf %609 : vector<8x128xf32> to vector<8x128xbf16>
    %c0_263 = arith.constant 0 : index
    %c0_264 = arith.constant 0 : index
    %611 = vector.load %arg16[%c0_263, %c0_264] : memref<8x128xbf16, #tpu.memory_space<vmem>>, vector<8x128xbf16>
    tpu.vector_store %arg16[%c0_263, %c0_264], %610 {strides = array<i32>} : memref<8x128xbf16, #tpu.memory_space<vmem>>, vector<8x128xbf16>,
    %c0_265 = arith.constant 0 : index
    %c0_266 = arith.constant 0 : index
    %612 = vector.load %arg17[%c0_265, %c0_266] : memref<8x128xf32, #tpu.memory_space<vmem>>, vector<8x128xf32>
    tpu.vector_store %arg17[%c0_265, %c0_266], %607 {strides = array<i32>} : memref<8x128xf32, #tpu.memory_space<vmem>>, vector<8x128xf32>,
    %c0_i32_267 = arith.constant 0 : i32
    %613 = arith.cmpi eq, %arg1, %c0_i32_267 : i32
    %614 = arith.extui %613 : i1 to i32
    %c0_i32_268 = arith.constant 0 : i32
    %615 = arith.cmpi ne, %614, %c0_i32_268 : i32
    scf.if %615 {
      %c0_269 = arith.constant 0 : index
      %c0_270 = arith.constant 0 : index
      %616 = vector.load %arg16[%c0_269, %c0_270] : memref<8x128xbf16, #tpu.memory_space<vmem>>, vector<8x128xbf16>
      %c0_271 = arith.constant 0 : index
      %c0_272 = arith.constant 0 : index
      %617 = vector.load %arg9[%c0_271, %c0_272] : memref<128x25xbf16, #tpu.memory_space<vmem>>, vector<128x25xbf16>
      %cst_273 = arith.constant dense<0.000000e+00> : vector<8x25xf32>
      %618 = tpu.matmul %616, %617, %cst_273 {dimension_numbers = #tpu.dot_dimension_numbers<[1], [0], [0], [1], [0, 0, 1, 1], [], []>} : vector<8x128xbf16>, vector<128x25xbf16>, vector<8x25xf32> -> vector<8x25xf32>
      %c0_274 = arith.constant 0 : index
      %c0_275 = arith.constant 0 : index
      %619 = vector.load %arg10[%c0_274, %c0_275] : memref<1x25xf32, #tpu.memory_space<vmem>>, vector<1x25xf32>
      %620 = vector.broadcast %619 : vector<1x25xf32> to vector<8x25xf32>
      %621 = arith.addf %618, %620 : vector<8x25xf32>
      %c0_276 = arith.constant 0 : index
      %c0_277 = arith.constant 0 : index
      %622 = vector.load %arg11[%c0_276, %c0_277] : memref<8x25xf32, #tpu.memory_space<vmem>>, vector<8x25xf32>
      tpu.vector_store %arg11[%c0_276, %c0_277], %621 {strides = array<i32>} : memref<8x25xf32, #tpu.memory_space<vmem>>, vector<8x25xf32>,
    } else {
    }
    return
  }
  func.func @transform_0(%arg0: i32, %arg1: i32) -> (i32, i32, i32) {
    %c0_i32 = arith.constant 0 : i32
    %c0_i32_0 = arith.constant 0 : i32
    return %arg0, %arg1, %c0_i32 : i32, i32, i32
  }
  func.func @transform_1(%arg0: i32, %arg1: i32) -> (i32, i32) {
    %c0_i32 = arith.constant 0 : i32
    %c0_i32_0 = arith.constant 0 : i32
    %c0_i32_1 = arith.constant 0 : i32
    return %c0_i32, %c0_i32_0 : i32, i32
  }
  func.func @transform_2(%arg0: i32, %arg1: i32) -> (i32, i32) {
    %c0_i32 = arith.constant 0 : i32
    %c0_i32_0 = arith.constant 0 : i32
    %c0_i32_1 = arith.constant 0 : i32
    return %c0_i32, %c0_i32_0 : i32, i32
  }
  func.func @transform_3(%arg0: i32, %arg1: i32) -> (i32, i32) {
    %c0_i32 = arith.constant 0 : i32
    %c0_i32_0 = arith.constant 0 : i32
    %c0_i32_1 = arith.constant 0 : i32
    return %c0_i32, %c0_i32_0 : i32, i32
  }
  func.func @transform_4(%arg0: i32, %arg1: i32) -> (i32, i32) {
    %c0_i32 = arith.constant 0 : i32
    %c0_i32_0 = arith.constant 0 : i32
    %c0_i32_1 = arith.constant 0 : i32
    return %c0_i32, %c0_i32_0 : i32, i32
  }
  func.func @transform_5(%arg0: i32, %arg1: i32) -> (i32, i32) {
    %c0_i32 = arith.constant 0 : i32
    %c0_i32_0 = arith.constant 0 : i32
    %c0_i32_1 = arith.constant 0 : i32
    return %c0_i32, %c0_i32_0 : i32, i32
  }
  func.func @transform_6(%arg0: i32, %arg1: i32) -> (i32, i32) {
    %c0_i32 = arith.constant 0 : i32
    %c0_i32_0 = arith.constant 0 : i32
    %c0_i32_1 = arith.constant 0 : i32
    return %c0_i32, %c0_i32_0 : i32, i32
  }
  func.func @transform_7(%arg0: i32, %arg1: i32) -> (i32, i32) {
    %c0_i32 = arith.constant 0 : i32
    %c0_i32_0 = arith.constant 0 : i32
    %c0_i32_1 = arith.constant 0 : i32
    return %c0_i32, %c0_i32_0 : i32, i32
  }
  func.func @transform_8(%arg0: i32, %arg1: i32) -> (i32, i32) {
    %c0_i32 = arith.constant 0 : i32
    %c0_i32_0 = arith.constant 0 : i32
    %c0_i32_1 = arith.constant 0 : i32
    return %c0_i32, %c0_i32_0 : i32, i32
  }
  func.func @transform_9(%arg0: i32, %arg1: i32) -> (i32, i32) {
    %c0_i32 = arith.constant 0 : i32
    %c0_i32_0 = arith.constant 0 : i32
    return %arg0, %c0_i32 : i32, i32
  }
}

</mosaic_0001>

<llo_original>
// kernel: _lambda_.1
$region0: #{_lambda_.1}
  #allocation0 [shape = 'u32[]', space=smem, size = 0x4, offset = 0x4, fixed_abs, tag = 'smem constant byte address 0x4 - core index']
  #allocation1 [shape = 'u32[144,128]{1,0:T(1,128)}', space=vmem, size = 0x12000, scoped, tag = 'internal scratch']
  #allocation2 [shape = 'f32[8,8,512]{2,1,0:T(8,128)}', space=vmem, size = 0x20000, scoped, tag = 'scratch operand']
  #allocation3 [shape = 'bf16[8,8,128]{2,1,0:T(8,128)(2,1)}', space=vmem, size = 0x4000, scoped, tag = 'scratch operand']
  #allocation4 [shape = 'bf16[8,128]{1,0:T(8,128)(2,1)}', space=vmem, size = 0x800, scoped, tag = 'scratch operand']
  #allocation5 [shape = 'f32[8,128]{1,0:T(8,128)}', space=vmem, size = 0x1000, scoped, tag = 'scratch operand']
  #allocation6 [shape = 'bf16[8,128]{1,0:T(8,128)(2,1)}', space=vmem, size = 0x800, scoped, tag = 'scratch operand']
  #allocation7 [shape = 'f32[8,128]{1,0:T(8,128)}', space=vmem, size = 0x1000, scoped, tag = 'scratch operand']
  %s0 = inlined_call_operand.vmem [shape: f32[8,8,32], index: 0, kind: input, shape index: {}]
  %s1 = inlined_call_operand.vmem [shape: bf16[32,512], index: 1, kind: input, shape index: {}]
  %s2 = inlined_call_operand.vmem [shape: bf16[128,512], index: 2, kind: input, shape index: {}]
  %s3 = inlined_call_operand.vmem [shape: f32[1,512], index: 3, kind: input, shape index: {}]
  %s4 = inlined_call_operand.vmem [shape: bf16[128,512], index: 4, kind: input, shape index: {}]
  %s5 = inlined_call_operand.vmem [shape: bf16[128,512], index: 5, kind: input, shape index: {}]
  %s6 = inlined_call_operand.vmem [shape: f32[1,512], index: 6, kind: input, shape index: {}]
  %s7 = inlined_call_operand.vmem [shape: bf16[128,25], index: 7, kind: input, shape index: {}]
  %s8 = inlined_call_operand.vmem [shape: f32[1,25], index: 8, kind: input, shape index: {}]
  %s9 = inlined_call_operand.vmem [shape: f32[8,25], index: 9, kind: output, shape index: {}]
  %s10 = sld [smem:[#allocation0]]
  $region54: #{_lambda_.1} parent=0
    _
  %s12 = ssub.s32 1, %s10
  %s13 = scalar_select 0, %s12, %s10
  // Predicated region
  $region2: #{_lambda_.1} parent=0 // pred_check
    _
  $region3: #{_lambda_.1} parent=0 // pred_check_branch
    %15 = sbr.rel (0) target = $region5
  $region4: #{_lambda_.1} parent=0 // pred_region
    _
  $region5: #{_lambda_.1} parent=0 // pred_fallthru
    _
  // Predicated region
  $region6: #{_lambda_.1} parent=0 // pred_check
    _
  $region7: #{_lambda_.1} parent=0 // pred_check_branch
    %17 = sbr.rel (0) target = $region9
  $region8: #{_lambda_.1} parent=0 // pred_region
    _
  $region9: #{_lambda_.1} parent=0 // pred_fallthru
    _
  // Predicated region
  $region10: #{_lambda_.1} parent=0 // pred_check
    _
  $region11: #{_lambda_.1} parent=0 // pred_check_branch
    %19 = sbr.rel (0) target = $region13
  $region12: #{_lambda_.1} parent=0 // pred_region
    _
  $region13: #{_lambda_.1} parent=0 // pred_fallthru
    _
  // Predicated region
  $region14: #{_lambda_.1} parent=0 // pred_check
    _
  $region15: #{_lambda_.1} parent=0 // pred_check_branch
    %21 = sbr.rel (0) target = $region17
  $region16: #{_lambda_.1} parent=0 // pred_region
    _
  $region17: #{_lambda_.1} parent=0 // pred_fallthru
    _
  // Predicated region
  $region18: #{_lambda_.1} parent=0 // pred_check
    _
  $region19: #{_lambda_.1} parent=0 // pred_check_branch
    %23 = sbr.rel (0) target = $region21
  $region20: #{_lambda_.1} parent=0 // pred_region
    _
  $region21: #{_lambda_.1} parent=0 // pred_fallthru
    _
  // Predicated region
  $region22: #{_lambda_.1} parent=0 // pred_check
    _
  $region23: #{_lambda_.1} parent=0 // pred_check_branch
    %25 = sbr.rel (0) target = $region25
  $region24: #{_lambda_.1} parent=0 // pred_region
    _
  $region25: #{_lambda_.1} parent=0 // pred_fallthru
    _
  // Predicated region
  $region26: #{_lambda_.1} parent=0 // pred_check
    _
  $region27: #{_lambda_.1} parent=0 // pred_check_branch
    %27 = sbr.rel (0) target = $region29
  $region28: #{_lambda_.1} parent=0 // pred_region
    _
  $region29: #{_lambda_.1} parent=0 // pred_fallthru
    _
  // Predicated region
  $region30: #{_lambda_.1} parent=0 // pred_check
    _
  $region31: #{_lambda_.1} parent=0 // pred_check_branch
    %29 = sbr.rel (0) target = $region33
  $region32: #{_lambda_.1} parent=0 // pred_region
    _
  $region33: #{_lambda_.1} parent=0 // pred_fallthru
    _
  // Predicated region
  $region34: #{_lambda_.1} parent=0 // pred_check
    _
  $region35: #{_lambda_.1} parent=0 // pred_check_branch
    %31 = sbr.rel (0) target = $region37
  $region36: #{_lambda_.1} parent=0 // pred_region
    _
  $region37: #{_lambda_.1} parent=0 // pred_fallthru
    _
  %p33 = scmp.eq.s32.totalorder 0, 0
  // Predicated region
  $region38: #{_lambda_.1} parent=0 // pred_check
    %p34 = pneg %p33
  $region39: #{_lambda_.1} parent=0 // pred_check_branch
    %36 = sbr.rel (%p34) target = $region41
  $region40: #{_lambda_.1} parent=0 // pred_region
    %37 = vst [vmem:[#allocation4] sm:$0xf] 0
    %38 = vst [vmem:[#allocation5] sm:$0xff] 0.0
    %39 = vst [vmem:[#allocation6] sm:$0xf] 0
    %40 = vst [vmem:[#allocation7] sm:$0xff] 0.0
  $region41: #{_lambda_.1} parent=0 // pred_fallthru
    _
  %v41 = vld [vmem:[%s0] sm:$0x1]
  %v42 = vld [vmem:[%s0 + $0x8] sm:$0x1]
  %v43 = vld [vmem:[%s0 + $0x10] sm:$0x1]
  %v44 = vld [vmem:[%s0 + $0x18] sm:$0x1]
  %v45 = vld [vmem:[%s0 + $0x20] sm:$0x1]
  %v46 = vld [vmem:[%s0 + $0x28] sm:$0x1]
  %v47 = vld [vmem:[%s0 + $0x30] sm:$0x1]
  %v48 = vld [vmem:[%s0 + $0x38] sm:$0x1]
  %v49 = vld [vmem:[%s0 + $0x1] sm:$0x1]
  %v50 = vld [vmem:[%s0 + $0x9] sm:$0x1]
  %v51 = vld [vmem:[%s0 + $0x11] sm:$0x1]
  %v52 = vld [vmem:[%s0 + $0x19] sm:$0x1]
  %v53 = vld [vmem:[%s0 + $0x21] sm:$0x1]
  %v54 = vld [vmem:[%s0 + $0x29] sm:$0x1]
  %v55 = vld [vmem:[%s0 + $0x31] sm:$0x1]
  %v56 = vld [vmem:[%s0 + $0x39] sm:$0x1]
  %v57 = vld [vmem:[%s0 + $0x2] sm:$0x1]
  %v58 = vld [vmem:[%s0 + $0xa] sm:$0x1]
  %v59 = vld [vmem:[%s0 + $0x12] sm:$0x1]
  %v60 = vld [vmem:[%s0 + $0x1a] sm:$0x1]
  %v61 = vld [vmem:[%s0 + $0x22] sm:$0x1]
  %v62 = vld [vmem:[%s0 + $0x2a] sm:$0x1]
  %v63 = vld [vmem:[%s0 + $0x32] sm:$0x1]
  %v64 = vld [vmem:[%s0 + $0x3a] sm:$0x1]
  %v65 = vld [vmem:[%s0 + $0x3] sm:$0x1]
  %v66 = vld [vmem:[%s0 + $0xb] sm:$0x1]
  %v67 = vld [vmem:[%s0 + $0x13] sm:$0x1]
  %v68 = vld [vmem:[%s0 + $0x1b] sm:$0x1]
  %v69 = vld [vmem:[%s0 + $0x23] sm:$0x1]
  %v70 = vld [vmem:[%s0 + $0x2b] sm:$0x1]
  %v71 = vld [vmem:[%s0 + $0x33] sm:$0x1]
  %v72 = vld [vmem:[%s0 + $0x3b] sm:$0x1]
  %v73 = vld [vmem:[%s0 + $0x4] sm:$0x1]
  %v74 = vld [vmem:[%s0 + $0xc] sm:$0x1]
  %v75 = vld [vmem:[%s0 + $0x14] sm:$0x1]
  %v76 = vld [vmem:[%s0 + $0x1c] sm:$0x1]
  %v77 = vld [vmem:[%s0 + $0x24] sm:$0x1]
  %v78 = vld [vmem:[%s0 + $0x2c] sm:$0x1]
  %v79 = vld [vmem:[%s0 + $0x34] sm:$0x1]
  %v80 = vld [vmem:[%s0 + $0x3c] sm:$0x1]
  %v81 = vld [vmem:[%s0 + $0x5] sm:$0x1]
  %v82 = vld [vmem:[%s0 + $0xd] sm:$0x1]
  %v83 = vld [vmem:[%s0 + $0x15] sm:$0x1]
  %v84 = vld [vmem:[%s0 + $0x1d] sm:$0x1]
  %v85 = vld [vmem:[%s0 + $0x25] sm:$0x1]
  %v86 = vld [vmem:[%s0 + $0x2d] sm:$0x1]
  %v87 = vld [vmem:[%s0 + $0x35] sm:$0x1]
  %v88 = vld [vmem:[%s0 + $0x3d] sm:$0x1]
  %v89 = vld [vmem:[%s0 + $0x6] sm:$0x1]
  %v90 = vld [vmem:[%s0 + $0xe] sm:$0x1]
  %v91 = vld [vmem:[%s0 + $0x16] sm:$0x1]
  %v92 = vld [vmem:[%s0 + $0x1e] sm:$0x1]
  %v93 = vld [vmem:[%s0 + $0x26] sm:$0x1]
  %v94 = vld [vmem:[%s0 + $0x2e] sm:$0x1]
  %v95 = vld [vmem:[%s0 + $0x36] sm:$0x1]
  %v96 = vld [vmem:[%s0 + $0x3e] sm:$0x1]
  %v97 = vld [vmem:[%s0 + $0x7] sm:$0x1]
  %v98 = vld [vmem:[%s0 + $0xf] sm:$0x1]
  %v99 = vld [vmem:[%s0 + $0x17] sm:$0x1]
  %v100 = vld [vmem:[%s0 + $0x1f] sm:$0x1]
  %v101 = vld [vmem:[%s0 + $0x27] sm:$0x1]
  %v102 = vld [vmem:[%s0 + $0x2f] sm:$0x1]
  %v103 = vld [vmem:[%s0 + $0x37] sm:$0x1]
  %v104 = vld [vmem:[%s0 + $0x3f] sm:$0x1]
  %v113 = vrot.slane %v42, 7
  %vm114 = vcmask 1041409
  %v115 = vsel %vm114, %v113, %v41
  %v116 = vrot.slane %v43, 6
  %vm117 = vcmask 1042434
  %v118 = vsel %vm117, %v116, %v115
  %v119 = vrot.slane %v44, 5
  %vm120 = vcmask 1043459
  %v121 = vsel %vm120, %v119, %v118
  %v122 = vrot.slane %v45, 4
  %vm123 = vcmask 1044484
  %v124 = vsel %vm123, %v122, %v121
  %v125 = vrot.slane %v46, 3
  %vm126 = vcmask 1045509
  %v127 = vsel %vm126, %v125, %v124
  %v128 = vrot.slane %v47, 2
  %vm129 = vcmask 1046534
  %v130 = vsel %vm129, %v128, %v127
  %v131 = vrot.slane %v48, 1
  %vm132 = vcmask 1047559
  %v133 = vsel %vm132, %v131, %v130
  %v143 = vrot.slane %v50, 7
  %v144 = vsel %vm114, %v143, %v49
  %v145 = vrot.slane %v51, 6
  %v146 = vsel %vm117, %v145, %v144
  %v147 = vrot.slane %v52, 5
  %v148 = vsel %vm120, %v147, %v146
  %v149 = vrot.slane %v53, 4
  %v150 = vsel %vm123, %v149, %v148
  %v151 = vrot.slane %v54, 3
  %v152 = vsel %vm126, %v151, %v150
  %v153 = vrot.slane %v55, 2
  %v154 = vsel %vm129, %v153, %v152
  %v155 = vrot.slane %v56, 1
  %v156 = vsel %vm132, %v155, %v154
  %v166 = vrot.slane %v58, 7
  %v167 = vsel %vm114, %v166, %v57
  %v168 = vrot.slane %v59, 6
  %v169 = vsel %vm117, %v168, %v167
  %v170 = vrot.slane %v60, 5
  %v171 = vsel %vm120, %v170, %v169
  %v172 = vrot.slane %v61, 4
  %v173 = vsel %vm123, %v172, %v171
  %v174 = vrot.slane %v62, 3
  %v175 = vsel %vm126, %v174, %v173
  %v176 = vrot.slane %v63, 2
  %v177 = vsel %vm129, %v176, %v175
  %v178 = vrot.slane %v64, 1
  %v179 = vsel %vm132, %v178, %v177
  %v189 = vrot.slane %v66, 7
  %v190 = vsel %vm114, %v189, %v65
  %v191 = vrot.slane %v67, 6
  %v192 = vsel %vm117, %v191, %v190
  %v193 = vrot.slane %v68, 5
  %v194 = vsel %vm120, %v193, %v192
  %v195 = vrot.slane %v69, 4
  %v196 = vsel %vm123, %v195, %v194
  %v197 = vrot.slane %v70, 3
  %v198 = vsel %vm126, %v197, %v196
  %v199 = vrot.slane %v71, 2
  %v200 = vsel %vm129, %v199, %v198
  %v201 = vrot.slane %v72, 1
  %v202 = vsel %vm132, %v201, %v200
  %v212 = vrot.slane %v74, 7
  %v213 = vsel %vm114, %v212, %v73
  %v214 = vrot.slane %v75, 6
  %v215 = vsel %vm117, %v214, %v213
  %v216 = vrot.slane %v76, 5
  %v217 = vsel %vm120, %v216, %v215
  %v218 = vrot.slane %v77, 4
  %v219 = vsel %vm123, %v218, %v217
  %v220 = vrot.slane %v78, 3
  %v221 = vsel %vm126, %v220, %v219
  %v222 = vrot.slane %v79, 2
  %v223 = vsel %vm129, %v222, %v221
  %v224 = vrot.slane %v80, 1
  %v225 = vsel %vm132, %v224, %v223
  %v235 = vrot.slane %v82, 7
  %v236 = vsel %vm114, %v235, %v81
  %v237 = vrot.slane %v83, 6
  %v238 = vsel %vm117, %v237, %v236
  %v239 = vrot.slane %v84, 5
  %v240 = vsel %vm120, %v239, %v238
  %v241 = vrot.slane %v85, 4
  %v242 = vsel %vm123, %v241, %v240
  %v243 = vrot.slane %v86, 3
  %v244 = vsel %vm126, %v243, %v242
  %v245 = vrot.slane %v87, 2
  %v246 = vsel %vm129, %v245, %v244
  %v247 = vrot.slane %v88, 1
  %v248 = vsel %vm132, %v247, %v246
  %v258 = vrot.slane %v90, 7
  %v259 = vsel %vm114, %v258, %v89
  %v260 = vrot.slane %v91, 6
  %v261 = vsel %vm117, %v260, %v259
  %v262 = vrot.slane %v92, 5
  %v263 = vsel %vm120, %v262, %v261
  %v264 = vrot.slane %v93, 4
  %v265 = vsel %vm123, %v264, %v263
  %v266 = vrot.slane %v94, 3
  %v267 = vsel %vm126, %v266, %v265
  %v268 = vrot.slane %v95, 2
  %v269 = vsel %vm129, %v268, %v267
  %v270 = vrot.slane %v96, 1
  %v271 = vsel %vm132, %v270, %v269
  %v281 = vrot.slane %v98, 7
  %v282 = vsel %vm114, %v281, %v97
  %v283 = vrot.slane %v99, 6
  %v284 = vsel %vm117, %v283, %v282
  %v285 = vrot.slane %v100, 5
  %v286 = vsel %vm120, %v285, %v284
  %v287 = vrot.slane %v101, 4
  %v288 = vsel %vm123, %v287, %v286
  %v289 = vrot.slane %v102, 3
  %v290 = vsel %vm126, %v289, %v288
  %v291 = vrot.slane %v103, 2
  %v292 = vsel %vm129, %v291, %v290
  %v293 = vrot.slane %v104, 1
  %v294 = vsel %vm132, %v293, %v292
  %v296 = vpack.c.bf16 %v156, %v133
  %v297 = vpack.c.bf16 %v202, %v179
  %v298 = vpack.c.bf16 %v248, %v225
  %v299 = vpack.c.bf16 %v294, %v271
  %v300 = vld [vmem:[%s1] sm:$0xff]
  %v301 = vld [vmem:[%s1 + $0x8] sm:$0xff]
  %v302 = vld [vmem:[%s1 + $0x10] sm:$0xff]
  %v303 = vld [vmem:[%s1 + $0x18] sm:$0xff]
  %v304 = vld [vmem:[%s1 + $0x20] sm:$0xff]
  %v305 = vld [vmem:[%s1 + $0x28] sm:$0xff]
  %v306 = vld [vmem:[%s1 + $0x30] sm:$0xff]
  %v307 = vld [vmem:[%s1 + $0x38] sm:$0xff]
  %v308 = vld [vmem:[%s3] sm:$0xf]
  %v310 = vlaneseq
  %v311 = vshrl.u32 %v310, 7
  %v312 = vsub.s32 0, %v311
  %v313 = vrot.slane %v308, %v312
  %v314 = vlaneseq
  %v315 = vshrl.u32 %v314, 7
  %v316 = vsub.s32 1, %v315
  %v317 = vrot.slane %v308, %v316
  %v318 = vlaneseq
  %v319 = vshrl.u32 %v318, 7
  %v320 = vsub.s32 2, %v319
  %v321 = vrot.slane %v308, %v320
  %v322 = vlaneseq
  %v323 = vshrl.u32 %v322, 7
  %v324 = vsub.s32 3, %v323
  %v325 = vrot.slane %v308, %v324
  %v338 = vunpack.c.l.b16 %v300
  %v339 = vunpack.c.h.b16 %v300
  %v340 = vunpack.c.l.b16 %v301
  %v341 = vunpack.c.h.b16 %v301
  %v342 = vunpack.c.l.b16 %v302
  %v343 = vunpack.c.h.b16 %v302
  %v344 = vunpack.c.l.b16 %v303
  %v345 = vunpack.c.h.b16 %v303
  %v346 = vunpack.c.l.b16 %v304
  %v347 = vunpack.c.h.b16 %v304
  %v348 = vunpack.c.l.b16 %v305
  %v349 = vunpack.c.h.b16 %v305
  %v350 = vunpack.c.l.b16 %v306
  %v351 = vunpack.c.h.b16 %v306
  %v352 = vunpack.c.l.b16 %v307
  %v353 = vunpack.c.h.b16 %v307
  %v354 = vpack.c.b16 %v342, %v338
  %v355 = vpack.c.b16 %v343, %v339
  %v356 = vpack.c.b16 %v344, %v340
  %v357 = vpack.c.b16 %v345, %v341
  %v358 = vpack.c.b16 %v350, %v346
  %v359 = vpack.c.b16 %v351, %v347
  %v360 = vpack.c.b16 %v352, %v348
  %v361 = vpack.c.b16 %v353, %v349
  %vm370 = vcmask 261120
  %v372 = vsel %vm370, %v296, 0
  %v375 = vsel %vm370, %v297, 0
  %v378 = vsel %vm370, %v298, 0
  %v381 = vsel %vm370, %v299, 0
  %383 = vmatprep.subr.bf16.mxu0 %v355
  %384 = vmatpush1.bf16.msra.mxu0 %v354
  %385 = vmatprep.subr.bf16.mxu0 %v359
  %386 = vmatpush1.bf16.msra.mxu0 %v358
  %387 = vmatprep.subr.bf16.mxu0 0
  %388 = vmatpush1.bf16.msra.mxu0 0
  %389 = vmatprep.subr.bf16.mxu0 0
  %390 = vmatpush1.bf16.msra.mxu0 0
  %391 = vmatprep.subr.bf16.mxu0 0
  %392 = vmatpush1.bf16.msra.mxu0 0
  %393 = vmatprep.subr.bf16.mxu0 0
  %394 = vmatpush1.bf16.msra.mxu0 0
  %395 = vmatprep.subr.bf16.mxu0 0
  %396 = vmatpush1.bf16.msra.mxu0 0
  %397 = vmatprep.subr.bf16.mxu0 0
  %398 = vmatpush1.bf16.msra.mxu0 0
  %399 = vmatprep.subr.bf16.mxu0 0
  %400 = vmatpush1.bf16.msra.mxu0 0
  %401 = vmatprep.subr.bf16.mxu0 0
  %402 = vmatpush1.bf16.msra.mxu0 0
  %403 = vmatprep.subr.bf16.mxu0 0
  %404 = vmatpush1.bf16.msra.mxu0 0
  %405 = vmatprep.subr.bf16.mxu0 0
  %406 = vmatpush1.bf16.msra.mxu0 0
  %407 = vmatprep.subr.bf16.mxu0 0
  %408 = vmatpush1.bf16.msra.mxu0 0
  %409 = vmatprep.subr.bf16.mxu0 0
  %410 = vmatpush1.bf16.msra.mxu0 0
  %411 = vmatprep.subr.bf16.mxu0 0
  %412 = vmatpush1.bf16.msra.mxu0 0
  %413 = vmatprep.subr.bf16.mxu0 0
  %414 = vmatpush1.bf16.msra.mxu0 0
  %415 = vmatprep.mubr.bf16.mxu0 0
  %416 = vmatmul.mubr.bf16.gmra.mrb[0].mxu0 %v372
  %v417 = vpop.f32.mrb[0].mxu0
  %v418 = vadd.f32 %v313, %v417
  %v419 = vpop.f32.mrb[0].mxu0
  %v420 = vadd.f32 %v317, %v419
  %v421 = vpop.f32.mrb[0].mxu0
  %v422 = vadd.f32 %v313, %v421
  %v423 = vpop.f32.mrb[0].mxu0
  %v424 = vadd.f32 %v317, %v423
  %425 = vmatprep.mubr.bf16.mxu0 0
  %426 = vmatmul.mubr.bf16.gmra.mrb[0].mxu0 %v375
  %v427 = vpop.f32.mrb[0].mxu0
  %v428 = vadd.f32 %v313, %v427
  %v429 = vpop.f32.mrb[0].mxu0
  %v430 = vadd.f32 %v317, %v429
  %v431 = vpop.f32.mrb[0].mxu0
  %v432 = vadd.f32 %v313, %v431
  %v433 = vpop.f32.mrb[0].mxu0
  %v434 = vadd.f32 %v317, %v433
  %435 = vmatprep.mubr.bf16.mxu0 0
  %436 = vmatmul.mubr.bf16.gmra.mrb[0].mxu0 %v378
  %v437 = vpop.f32.mrb[0].mxu0
  %v438 = vadd.f32 %v313, %v437
  %v439 = vpop.f32.mrb[0].mxu0
  %v440 = vadd.f32 %v317, %v439
  %v441 = vpop.f32.mrb[0].mxu0
  %v442 = vadd.f32 %v313, %v441
  %v443 = vpop.f32.mrb[0].mxu0
  %v444 = vadd.f32 %v317, %v443
  %445 = vmatprep.mubr.bf16.mxu0 0
  %446 = vmatmul.mubr.bf16.gmra.mrb[0].mxu0 %v381
  %v447 = vpop.f32.mrb[0].mxu0
  %v448 = vadd.f32 %v313, %v447
  %v449 = vpop.f32.mrb[0].mxu0
  %v450 = vadd.f32 %v317, %v449
  %v451 = vpop.f32.mrb[0].mxu0
  %v452 = vadd.f32 %v313, %v451
  %v453 = vpop.f32.mrb[0].mxu0
  %v454 = vadd.f32 %v317, %v453
  %455 = vdwg.mxu0
  %456 = vmatprep.subr.bf16.mxu0 %v357
  %457 = vmatpush1.bf16.msra.mxu0 %v356
  %458 = vmatprep.subr.bf16.mxu0 %v361
  %459 = vmatpush1.bf16.msra.mxu0 %v360
  %460 = vmatprep.subr.bf16.mxu0 0
  %461 = vmatpush1.bf16.msra.mxu0 0
  %462 = vmatprep.subr.bf16.mxu0 0
  %463 = vmatpush1.bf16.msra.mxu0 0
  %464 = vmatprep.subr.bf16.mxu0 0
  %465 = vmatpush1.bf16.msra.mxu0 0
  %466 = vmatprep.subr.bf16.mxu0 0
  %467 = vmatpush1.bf16.msra.mxu0 0
  %468 = vmatprep.subr.bf16.mxu0 0
  %469 = vmatpush1.bf16.msra.mxu0 0
  %470 = vmatprep.subr.bf16.mxu0 0
  %471 = vmatpush1.bf16.msra.mxu0 0
  %472 = vmatprep.subr.bf16.mxu0 0
  %473 = vmatpush1.bf16.msra.mxu0 0
  %474 = vmatprep.subr.bf16.mxu0 0
  %475 = vmatpush1.bf16.msra.mxu0 0
  %476 = vmatprep.subr.bf16.mxu0 0
  %477 = vmatpush1.bf16.msra.mxu0 0
  %478 = vmatprep.subr.bf16.mxu0 0
  %479 = vmatpush1.bf16.msra.mxu0 0
  %480 = vmatprep.subr.bf16.mxu0 0
  %481 = vmatpush1.bf16.msra.mxu0 0
  %482 = vmatprep.subr.bf16.mxu0 0
  %483 = vmatpush1.bf16.msra.mxu0 0
  %484 = vmatprep.subr.bf16.mxu0 0
  %485 = vmatpush1.bf16.msra.mxu0 0
  %486 = vmatprep.subr.bf16.mxu0 0
  %487 = vmatpush1.bf16.msra.mxu0 0
  %488 = vmatprep.mubr.bf16.mxu0 0
  %489 = vmatmul.mubr.bf16.gmra.mrb[0].mxu0 %v372
  %v490 = vpop.f32.mrb[0].mxu0
  %v491 = vadd.f32 %v321, %v490
  %v492 = vpop.f32.mrb[0].mxu0
  %v493 = vadd.f32 %v325, %v492
  %v494 = vpop.f32.mrb[0].mxu0
  %v495 = vadd.f32 %v321, %v494
  %v496 = vpop.f32.mrb[0].mxu0
  %v497 = vadd.f32 %v325, %v496
  %498 = vmatprep.mubr.bf16.mxu0 0
  %499 = vmatmul.mubr.bf16.gmra.mrb[0].mxu0 %v375
  %v500 = vpop.f32.mrb[0].mxu0
  %v501 = vadd.f32 %v321, %v500
  %v502 = vpop.f32.mrb[0].mxu0
  %v503 = vadd.f32 %v325, %v502
  %v504 = vpop.f32.mrb[0].mxu0
  %v505 = vadd.f32 %v321, %v504
  %v506 = vpop.f32.mrb[0].mxu0
  %v507 = vadd.f32 %v325, %v506
  %508 = vmatprep.mubr.bf16.mxu0 0
  %509 = vmatmul.mubr.bf16.gmra.mrb[0].mxu0 %v378
  %v510 = vpop.f32.mrb[0].mxu0
  %v511 = vadd.f32 %v321, %v510
  %v512 = vpop.f32.mrb[0].mxu0
  %v513 = vadd.f32 %v325, %v512
  %v514 = vpop.f32.mrb[0].mxu0
  %v515 = vadd.f32 %v321, %v514
  %v516 = vpop.f32.mrb[0].mxu0
  %v517 = vadd.f32 %v325, %v516
  %518 = vmatprep.mubr.bf16.mxu0 0
  %519 = vmatmul.mubr.bf16.gmra.mrb[0].mxu0 %v381
  %v520 = vpop.f32.mrb[0].mxu0
  %v521 = vadd.f32 %v321, %v520
  %v522 = vpop.f32.mrb[0].mxu0
  %v523 = vadd.f32 %v325, %v522
  %v524 = vpop.f32.mrb[0].mxu0
  %v525 = vadd.f32 %v321, %v524
  %v526 = vpop.f32.mrb[0].mxu0
  %v527 = vadd.f32 %v325, %v526
  %528 = vdwg.mxu0
  %529 = vst [vmem:[#allocation2] sm:$0xff] %v418
  %530 = vst [vmem:[#allocation2 + $0x8] sm:$0xff] %v420
  %531 = vst [vmem:[#allocation2 + $0x10] sm:$0xff] %v491
  %532 = vst [vmem:[#allocation2 + $0x18] sm:$0xff] %v493
  %533 = vst [vmem:[#allocation2 + $0x20] sm:$0xff] %v422
  %534 = vst [vmem:[#allocation2 + $0x28] sm:$0xff] %v424
  %535 = vst [vmem:[#allocation2 + $0x30] sm:$0xff] %v495
  %536 = vst [vmem:[#allocation2 + $0x38] sm:$0xff] %v497
  %537 = vst [vmem:[#allocation2 + $0x40] sm:$0xff] %v428
  %538 = vst [vmem:[#allocation2 + $0x48] sm:$0xff] %v430
  %539 = vst [vmem:[#allocation2 + $0x50] sm:$0xff] %v501
  %540 = vst [vmem:[#allocation2 + $0x58] sm:$0xff] %v503
  %541 = vst [vmem:[#allocation2 + $0x60] sm:$0xff] %v432
  %542 = vst [vmem:[#allocation2 + $0x68] sm:$0xff] %v434
  %543 = vst [vmem:[#allocation2 + $0x70] sm:$0xff] %v505
  %544 = vst [vmem:[#allocation2 + $0x78] sm:$0xff] %v507
  %545 = vst [vmem:[#allocation2 + $0x80] sm:$0xff] %v438
  %546 = vst [vmem:[#allocation2 + $0x88] sm:$0xff] %v440
  %547 = vst [vmem:[#allocation2 + $0x90] sm:$0xff] %v511
  %548 = vst [vmem:[#allocation2 + $0x98] sm:$0xff] %v513
  %549 = vst [vmem:[#allocation2 + $0xa0] sm:$0xff] %v442
  %550 = vst [vmem:[#allocation2 + $0xa8] sm:$0xff] %v444
  %551 = vst [vmem:[#allocation2 + $0xb0] sm:$0xff] %v515
  %552 = vst [vmem:[#allocation2 + $0xb8] sm:$0xff] %v517
  %553 = vst [vmem:[#allocation2 + $0xc0] sm:$0xff] %v448
  %554 = vst [vmem:[#allocation2 + $0xc8] sm:$0xff] %v450
  %555 = vst [vmem:[#allocation2 + $0xd0] sm:$0xff] %v521
  %556 = vst [vmem:[#allocation2 + $0xd8] sm:$0xff] %v523
  %557 = vst [vmem:[#allocation2 + $0xe0] sm:$0xff] %v452
  %558 = vst [vmem:[#allocation2 + $0xe8] sm:$0xff] %v454
  %559 = vst [vmem:[#allocation2 + $0xf0] sm:$0xff] %v525
  %560 = vst [vmem:[#allocation2 + $0xf8] sm:$0xff] %v527
  %v561 = vld [vmem:[#allocation4] sm:$0xf]
  %v562 = vld [vmem:[#allocation5] sm:$0xff]
  %v563 = vld [vmem:[#allocation2] sm:$0xff]
  %v564 = vld [vmem:[#allocation2 + $0x8] sm:$0xff]
  %v565 = vld [vmem:[#allocation2 + $0x10] sm:$0xff]
  %v566 = vld [vmem:[#allocation2 + $0x18] sm:$0xff]
  %v567 = vld [vmem:[%s2] sm:$0xff]
  %v568 = vld [vmem:[%s2 + $0x8] sm:$0xff]
  %v569 = vld [vmem:[%s2 + $0x10] sm:$0xff]
  %v570 = vld [vmem:[%s2 + $0x18] sm:$0xff]
  %v571 = vld [vmem:[%s2 + $0x20] sm:$0xff]
  %v572 = vld [vmem:[%s2 + $0x28] sm:$0xff]
  %v573 = vld [vmem:[%s2 + $0x30] sm:$0xff]
  %v574 = vld [vmem:[%s2 + $0x38] sm:$0xff]
  %v575 = vld [vmem:[%s2 + $0x40] sm:$0xff]
  %v576 = vld [vmem:[%s2 + $0x48] sm:$0xff]
  %v577 = vld [vmem:[%s2 + $0x50] sm:$0xff]
  %v578 = vld [vmem:[%s2 + $0x58] sm:$0xff]
  %v579 = vld [vmem:[%s2 + $0x60] sm:$0xff]
  %v580 = vld [vmem:[%s2 + $0x68] sm:$0xff]
  %v581 = vld [vmem:[%s2 + $0x70] sm:$0xff]
  %v582 = vld [vmem:[%s2 + $0x78] sm:$0xff]
  %v583 = vld [vmem:[%s2 + $0x80] sm:$0xff]
  %v584 = vld [vmem:[%s2 + $0x88] sm:$0xff]
  %v585 = vld [vmem:[%s2 + $0x90] sm:$0xff]
  %v586 = vld [vmem:[%s2 + $0x98] sm:$0xff]
  %v587 = vld [vmem:[%s2 + $0xa0] sm:$0xff]
  %v588 = vld [vmem:[%s2 + $0xa8] sm:$0xff]
  %v589 = vld [vmem:[%s2 + $0xb0] sm:$0xff]
  %v590 = vld [vmem:[%s2 + $0xb8] sm:$0xff]
  %v591 = vld [vmem:[%s2 + $0xc0] sm:$0xff]
  %v592 = vld [vmem:[%s2 + $0xc8] sm:$0xff]
  %v593 = vld [vmem:[%s2 + $0xd0] sm:$0xff]
  %v594 = vld [vmem:[%s2 + $0xd8] sm:$0xff]
  %v595 = vld [vmem:[%s2 + $0xe0] sm:$0xff]
  %v596 = vld [vmem:[%s2 + $0xe8] sm:$0xff]
  %v597 = vld [vmem:[%s2 + $0xf0] sm:$0xff]
  %v598 = vld [vmem:[%s2 + $0xf8] sm:$0xff]
  %v631 = vunpack.c.l.b16 %v567
  %v632 = vunpack.c.h.b16 %v567
  %v633 = vunpack.c.l.b16 %v568
  %v634 = vunpack.c.h.b16 %v568
  %v635 = vunpack.c.l.b16 %v569
  %v636 = vunpack.c.h.b16 %v569
  %v637 = vunpack.c.l.b16 %v570
  %v638 = vunpack.c.h.b16 %v570
  %v639 = vunpack.c.l.b16 %v571
  %v640 = vunpack.c.h.b16 %v571
  %v641 = vunpack.c.l.b16 %v572
  %v642 = vunpack.c.h.b16 %v572
  %v643 = vunpack.c.l.b16 %v573
  %v644 = vunpack.c.h.b16 %v573
  %v645 = vunpack.c.l.b16 %v574
  %v646 = vunpack.c.h.b16 %v574
  %v647 = vunpack.c.l.b16 %v575
  %v648 = vunpack.c.h.b16 %v575
  %v649 = vunpack.c.l.b16 %v576
  %v650 = vunpack.c.h.b16 %v576
  %v651 = vunpack.c.l.b16 %v577
  %v652 = vunpack.c.h.b16 %v577
  %v653 = vunpack.c.l.b16 %v578
  %v654 = vunpack.c.h.b16 %v578
  %v655 = vunpack.c.l.b16 %v579
  %v656 = vunpack.c.h.b16 %v579
  %v657 = vunpack.c.l.b16 %v580
  %v658 = vunpack.c.h.b16 %v580
  %v659 = vunpack.c.l.b16 %v581
  %v660 = vunpack.c.h.b16 %v581
  %v661 = vunpack.c.l.b16 %v582
  %v662 = vunpack.c.h.b16 %v582
  %v663 = vunpack.c.l.b16 %v583
  %v664 = vunpack.c.h.b16 %v583
  %v665 = vunpack.c.l.b16 %v584
  %v666 = vunpack.c.h.b16 %v584
  %v667 = vunpack.c.l.b16 %v585
  %v668 = vunpack.c.h.b16 %v585
  %v669 = vunpack.c.l.b16 %v586
  %v670 = vunpack.c.h.b16 %v586
  %v671 = vunpack.c.l.b16 %v587
  %v672 = vunpack.c.h.b16 %v587
  %v673 = vunpack.c.l.b16 %v588
  %v674 = vunpack.c.h.b16 %v588
  %v675 = vunpack.c.l.b16 %v589
  %v676 = vunpack.c.h.b16 %v589
  %v677 = vunpack.c.l.b16 %v590
  %v678 = vunpack.c.h.b16 %v590
  %v679 = vunpack.c.l.b16 %v591
  %v680 = vunpack.c.h.b16 %v591
  %v681 = vunpack.c.l.b16 %v592
  %v682 = vunpack.c.h.b16 %v592
  %v683 = vunpack.c.l.b16 %v593
  %v684 = vunpack.c.h.b16 %v593
  %v685 = vunpack.c.l.b16 %v594
  %v686 = vunpack.c.h.b16 %v594
  %v687 = vunpack.c.l.b16 %v595
  %v688 = vunpack.c.h.b16 %v595
  %v689 = vunpack.c.l.b16 %v596
  %v690 = vunpack.c.h.b16 %v596
  %v691 = vunpack.c.l.b16 %v597
  %v692 = vunpack.c.h.b16 %v597
  %v693 = vunpack.c.l.b16 %v598
  %v694 = vunpack.c.h.b16 %v598
  %v695 = vpack.c.b16 %v635, %v631
  %v696 = vpack.c.b16 %v636, %v632
  %v697 = vpack.c.b16 %v637, %v633
  %v698 = vpack.c.b16 %v638, %v634
  %v699 = vpack.c.b16 %v643, %v639
  %v700 = vpack.c.b16 %v644, %v640
  %v701 = vpack.c.b16 %v645, %v641
  %v702 = vpack.c.b16 %v646, %v642
  %v703 = vpack.c.b16 %v651, %v647
  %v704 = vpack.c.b16 %v652, %v648
  %v705 = vpack.c.b16 %v653, %v649
  %v706 = vpack.c.b16 %v654, %v650
  %v707 = vpack.c.b16 %v659, %v655
  %v708 = vpack.c.b16 %v660, %v656
  %v709 = vpack.c.b16 %v661, %v657
  %v710 = vpack.c.b16 %v662, %v658
  %v711 = vpack.c.b16 %v667, %v663
  %v712 = vpack.c.b16 %v668, %v664
  %v713 = vpack.c.b16 %v669, %v665
  %v714 = vpack.c.b16 %v670, %v666
  %v715 = vpack.c.b16 %v675, %v671
  %v716 = vpack.c.b16 %v676, %v672
  %v717 = vpack.c.b16 %v677, %v673
  %v718 = vpack.c.b16 %v678, %v674
  %v719 = vpack.c.b16 %v683, %v679
  %v720 = vpack.c.b16 %v684, %v680
  %v721 = vpack.c.b16 %v685, %v681
  %v722 = vpack.c.b16 %v686, %v682
  %v723 = vpack.c.b16 %v691, %v687
  %v724 = vpack.c.b16 %v692, %v688
  %v725 = vpack.c.b16 %v693, %v689
  %v726 = vpack.c.b16 %v694, %v690
  %759 = vmatprep.subr.bf16.mxu0 %v696
  %760 = vmatpush1.bf16.msra.mxu0 %v695
  %761 = vmatprep.subr.bf16.mxu0 %v700
  %762 = vmatpush1.bf16.msra.mxu0 %v699
  %763 = vmatprep.subr.bf16.mxu0 %v704
  %764 = vmatpush1.bf16.msra.mxu0 %v703
  %765 = vmatprep.subr.bf16.mxu0 %v708
  %766 = vmatpush1.bf16.msra.mxu0 %v707
  %767 = vmatprep.subr.bf16.mxu0 %v712
  %768 = vmatpush1.bf16.msra.mxu0 %v711
  %769 = vmatprep.subr.bf16.mxu0 %v716
  %770 = vmatpush1.bf16.msra.mxu0 %v715
  %771 = vmatprep.subr.bf16.mxu0 %v720
  %772 = vmatpush1.bf16.msra.mxu0 %v719
  %773 = vmatprep.subr.bf16.mxu0 %v724
  %774 = vmatpush1.bf16.msra.mxu0 %v723
  %775 = vmatprep.subr.bf16.mxu0 0
  %776 = vmatpush1.bf16.msra.mxu0 0
  %777 = vmatprep.subr.bf16.mxu0 0
  %778 = vmatpush1.bf16.msra.mxu0 0
  %779 = vmatprep.subr.bf16.mxu0 0
  %780 = vmatpush1.bf16.msra.mxu0 0
  %781 = vmatprep.subr.bf16.mxu0 0
  %782 = vmatpush1.bf16.msra.mxu0 0
  %783 = vmatprep.subr.bf16.mxu0 0
  %784 = vmatpush1.bf16.msra.mxu0 0
  %785 = vmatprep.subr.bf16.mxu0 0
  %786 = vmatpush1.bf16.msra.mxu0 0
  %787 = vmatprep.subr.bf16.mxu0 0
  %788 = vmatpush1.bf16.msra.mxu0 0
  %789 = vmatprep.subr.bf16.mxu0 0
  %790 = vmatpush1.bf16.msra.mxu0 0
  %791 = vmatprep.mubr.bf16.mxu0 0
  %792 = vmatmul.mubr.bf16.gmra.mrb[0].mxu0 %v561
  %v793 = vpop.f32.mrb[0].mxu0
  %v794 = vadd.f32 0.0, %v793
  %v795 = vpop.f32.mrb[0].mxu0
  %v796 = vadd.f32 0.0, %v795
  %v797 = vpop.f32.mrb[0].mxu0
  %v798 = vpop.f32.mrb[0].mxu0
  %799 = vdwg.mxu0
  %800 = vmatprep.subr.bf16.mxu0 %v698
  %801 = vmatpush1.bf16.msra.mxu0 %v697
  %802 = vmatprep.subr.bf16.mxu0 %v702
  %803 = vmatpush1.bf16.msra.mxu0 %v701
  %804 = vmatprep.subr.bf16.mxu0 %v706
  %805 = vmatpush1.bf16.msra.mxu0 %v705
  %806 = vmatprep.subr.bf16.mxu0 %v710
  %807 = vmatpush1.bf16.msra.mxu0 %v709
  %808 = vmatprep.subr.bf16.mxu0 %v714
  %809 = vmatpush1.bf16.msra.mxu0 %v713
  %810 = vmatprep.subr.bf16.mxu0 %v718
  %811 = vmatpush1.bf16.msra.mxu0 %v717
  %812 = vmatprep.subr.bf16.mxu0 %v722
  %813 = vmatpush1.bf16.msra.mxu0 %v721
  %814 = vmatprep.subr.bf16.mxu0 %v726
  %815 = vmatpush1.bf16.msra.mxu0 %v725
  %816 = vmatprep.subr.bf16.mxu0 0
  %817 = vmatpush1.bf16.msra.mxu0 0
  %818 = vmatprep.subr.bf16.mxu0 0
  %819 = vmatpush1.bf16.msra.mxu0 0
  %820 = vmatprep.subr.bf16.mxu0 0
  %821 = vmatpush1.bf16.msra.mxu0 0
  %822 = vmatprep.subr.bf16.mxu0 0
  %823 = vmatpush1.bf16.msra.mxu0 0
  %824 = vmatprep.subr.bf16.mxu0 0
  %825 = vmatpush1.bf16.msra.mxu0 0
  %826 = vmatprep.subr.bf16.mxu0 0
  %827 = vmatpush1.bf16.msra.mxu0 0
  %828 = vmatprep.subr.bf16.mxu0 0
  %829 = vmatpush1.bf16.msra.mxu0 0
  %830 = vmatprep.subr.bf16.mxu0 0
  %831 = vmatpush1.bf16.msra.mxu0 0
  %832 = vmatprep.mubr.bf16.mxu0 0
  %833 = vmatmul.mubr.bf16.gmra.mrb[0].mxu0 %v561
  %v834 = vpop.f32.mrb[0].mxu0
  %v835 = vadd.f32 0.0, %v834
  %v836 = vpop.f32.mrb[0].mxu0
  %v837 = vadd.f32 0.0, %v836
  %v838 = vpop.f32.mrb[0].mxu0
  %v839 = vpop.f32.mrb[0].mxu0
  %840 = vdwg.mxu0
  %v841 = vadd.f32 %v563, %v794
  %v842 = vadd.f32 %v564, %v796
  %v843 = vadd.f32 %v565, %v835
  %v844 = vadd.f32 %v566, %v837
  %v845 = vsub.f32 0.0, %v841
  %v846 = vmul.f32 %v845, 1.442695
  %v847 = vpow.pop %v846
  %v848 = vadd.f32 %v847, 1.0
  %v849 = vrcp.pop %v848
  %v850 = vsub.f32 0.0, %v842
  %v851 = vmul.f32 %v850, 1.442695
  %v852 = vpow.pop %v851
  %v853 = vadd.f32 %v852, 1.0
  %v854 = vrcp.pop %v853
  %v855 = vtanh.pop %v843
  %v856 = vsub.f32 0.0, %v844
  %v857 = vmul.f32 %v856, 1.442695
  %v858 = vpow.pop %v857
  %v859 = vadd.f32 %v858, 1.0
  %v860 = vrcp.pop %v859
  %v861 = vmul.f32 %v854, %v562
  %v862 = vmul.f32 %v849, %v855
  %v863 = vadd.f32 %v861, %v862
  %v864 = vtanh.pop %v863
  %v865 = vmul.f32 %v860, %v864
  %v866 = vpack.c.bf16 %v865, %v865
  %867 = vst [vmem:[#allocation3] sm:$0xf] %v866
  %s868 = scalar_lea.vmem [#allocation2], 32
  %v869 = vld [vmem:[%s868] sm:$0xff]
  %v870 = vld [vmem:[%s868 + $0x8] sm:$0xff]
  %v871 = vld [vmem:[%s868 + $0x10] sm:$0xff]
  %v872 = vld [vmem:[%s868 + $0x18] sm:$0xff]
  %v873 = vld [vmem:[%s2] sm:$0xff]
  %v874 = vld [vmem:[%s2 + $0x8] sm:$0xff]
  %v875 = vld [vmem:[%s2 + $0x10] sm:$0xff]
  %v876 = vld [vmem:[%s2 + $0x18] sm:$0xff]
  %v877 = vld [vmem:[%s2 + $0x20] sm:$0xff]
  %v878 = vld [vmem:[%s2 + $0x28] sm:$0xff]
  %v879 = vld [vmem:[%s2 + $0x30] sm:$0xff]
  %v880 = vld [vmem:[%s2 + $0x38] sm:$0xff]
  %v881 = vld [vmem:[%s2 + $0x40] sm:$0xff]
  %v882 = vld [vmem:[%s2 + $0x48] sm:$0xff]
  %v883 = vld [vmem:[%s2 + $0x50] sm:$0xff]
  %v884 = vld [vmem:[%s2 + $0x58] sm:$0xff]
  %v885 = vld [vmem:[%s2 + $0x60] sm:$0xff]
  %v886 = vld [vmem:[%s2 + $0x68] sm:$0xff]
  %v887 = vld [vmem:[%s2 + $0x70] sm:$0xff]
  %v888 = vld [vmem:[%s2 + $0x78] sm:$0xff]
  %v889 = vld [vmem:[%s2 + $0x80] sm:$0xff]
  %v890 = vld [vmem:[%s2 + $0x88] sm:$0xff]
  %v891 = vld [vmem:[%s2 + $0x90] sm:$0xff]
  %v892 = vld [vmem:[%s2 + $0x98] sm:$0xff]
  %v893 = vld [vmem:[%s2 + $0xa0] sm:$0xff]
  %v894 = vld [vmem:[%s2 + $0xa8] sm:$0xff]
  %v895 = vld [vmem:[%s2 + $0xb0] sm:$0xff]
  %v896 = vld [vmem:[%s2 + $0xb8] sm:$0xff]
  %v897 = vld [vmem:[%s2 + $0xc0] sm:$0xff]
  %v898 = vld [vmem:[%s2 + $0xc8] sm:$0xff]
  %v899 = vld [vmem:[%s2 + $0xd0] sm:$0xff]
  %v900 = vld [vmem:[%s2 + $0xd8] sm:$0xff]
  %v901 = vld [vmem:[%s2 + $0xe0] sm:$0xff]
  %v902 = vld [vmem:[%s2 + $0xe8] sm:$0xff]
  %v903 = vld [vmem:[%s2 + $0xf0] sm:$0xff]
  %v904 = vld [vmem:[%s2 + $0xf8] sm:$0xff]
  %v937 = vunpack.c.l.b16 %v873
  %v938 = vunpack.c.h.b16 %v873
  %v939 = vunpack.c.l.b16 %v874
  %v940 = vunpack.c.h.b16 %v874
  %v941 = vunpack.c.l.b16 %v875
  %v942 = vunpack.c.h.b16 %v875
  %v943 = vunpack.c.l.b16 %v876
  %v944 = vunpack.c.h.b16 %v876
  %v945 = vunpack.c.l.b16 %v877
  %v946 = vunpack.c.h.b16 %v877
  %v947 = vunpack.c.l.b16 %v878
  %v948 = vunpack.c.h.b16 %v878
  %v949 = vunpack.c.l.b16 %v879
  %v950 = vunpack.c.h.b16 %v879
  %v951 = vunpack.c.l.b16 %v880
  %v952 = vunpack.c.h.b16 %v880
  %v953 = vunpack.c.l.b16 %v881
  %v954 = vunpack.c.h.b16 %v881
  %v955 = vunpack.c.l.b16 %v882
  %v956 = vunpack.c.h.b16 %v882
  %v957 = vunpack.c.l.b16 %v883
  %v958 = vunpack.c.h.b16 %v883
  %v959 = vunpack.c.l.b16 %v884
  %v960 = vunpack.c.h.b16 %v884
  %v961 = vunpack.c.l.b16 %v885
  %v962 = vunpack.c.h.b16 %v885
  %v963 = vunpack.c.l.b16 %v886
  %v964 = vunpack.c.h.b16 %v886
  %v965 = vunpack.c.l.b16 %v887
  %v966 = vunpack.c.h.b16 %v887
  %v967 = vunpack.c.l.b16 %v888
  %v968 = vunpack.c.h.b16 %v888
  %v969 = vunpack.c.l.b16 %v889
  %v970 = vunpack.c.h.b16 %v889
  %v971 = vunpack.c.l.b16 %v890
  %v972 = vunpack.c.h.b16 %v890
  %v973 = vunpack.c.l.b16 %v891
  %v974 = vunpack.c.h.b16 %v891
  %v975 = vunpack.c.l.b16 %v892
  %v976 = vunpack.c.h.b16 %v892
  %v977 = vunpack.c.l.b16 %v893
  %v978 = vunpack.c.h.b16 %v893
  %v979 = vunpack.c.l.b16 %v894
  %v980 = vunpack.c.h.b16 %v894
  %v981 = vunpack.c.l.b16 %v895
  %v982 = vunpack.c.h.b16 %v895
  %v983 = vunpack.c.l.b16 %v896
  %v984 = vunpack.c.h.b16 %v896
  %v985 = vunpack.c.l.b16 %v897
  %v986 = vunpack.c.h.b16 %v897
  %v987 = vunpack.c.l.b16 %v898
  %v988 = vunpack.c.h.b16 %v898
  %v989 = vunpack.c.l.b16 %v899
  %v990 = vunpack.c.h.b16 %v899
  %v991 = vunpack.c.l.b16 %v900
  %v992 = vunpack.c.h.b16 %v900
  %v993 = vunpack.c.l.b16 %v901
  %v994 = vunpack.c.h.b16 %v901
  %v995 = vunpack.c.l.b16 %v902
  %v996 = vunpack.c.h.b16 %v902
  %v997 = vunpack.c.l.b16 %v903
  %v998 = vunpack.c.h.b16 %v903
  %v999 = vunpack.c.l.b16 %v904
  %v1000 = vunpack.c.h.b16 %v904
  %v1001 = vpack.c.b16 %v941, %v937
  %v1002 = vpack.c.b16 %v942, %v938
  %v1003 = vpack.c.b16 %v943, %v939
  %v1004 = vpack.c.b16 %v944, %v940
  %v1005 = vpack.c.b16 %v949, %v945
  %v1006 = vpack.c.b16 %v950, %v946
  %v1007 = vpack.c.b16 %v951, %v947
  %v1008 = vpack.c.b16 %v952, %v948
  %v1009 = vpack.c.b16 %v957, %v953
  %v1010 = vpack.c.b16 %v958, %v954
  %v1011 = vpack.c.b16 %v959, %v955
  %v1012 = vpack.c.b16 %v960, %v956
  %v1013 = vpack.c.b16 %v965, %v961
  %v1014 = vpack.c.b16 %v966, %v962
  %v1015 = vpack.c.b16 %v967, %v963
  %v1016 = vpack.c.b16 %v968, %v964
  %v1017 = vpack.c.b16 %v973, %v969
  %v1018 = vpack.c.b16 %v974, %v970
  %v1019 = vpack.c.b16 %v975, %v971
  %v1020 = vpack.c.b16 %v976, %v972
  %v1021 = vpack.c.b16 %v981, %v977
  %v1022 = vpack.c.b16 %v982, %v978
  %v1023 = vpack.c.b16 %v983, %v979
  %v1024 = vpack.c.b16 %v984, %v980
  %v1025 = vpack.c.b16 %v989, %v985
  %v1026 = vpack.c.b16 %v990, %v986
  %v1027 = vpack.c.b16 %v991, %v987
  %v1028 = vpack.c.b16 %v992, %v988
  %v1029 = vpack.c.b16 %v997, %v993
  %v1030 = vpack.c.b16 %v998, %v994
  %v1031 = vpack.c.b16 %v999, %v995
  %v1032 = vpack.c.b16 %v1000, %v996
  %1065 = vmatprep.subr.bf16.mxu0 %v1002
  %1066 = vmatpush1.bf16.msra.mxu0 %v1001
  %1067 = vmatprep.subr.bf16.mxu0 %v1006
  %1068 = vmatpush1.bf16.msra.mxu0 %v1005
  %1069 = vmatprep.subr.bf16.mxu0 %v1010
  %1070 = vmatpush1.bf16.msra.mxu0 %v1009
  %1071 = vmatprep.subr.bf16.mxu0 %v1014
  %1072 = vmatpush1.bf16.msra.mxu0 %v1013
  %1073 = vmatprep.subr.bf16.mxu0 %v1018
  %1074 = vmatpush1.bf16.msra.mxu0 %v1017
  %1075 = vmatprep.subr.bf16.mxu0 %v1022
  %1076 = vmatpush1.bf16.msra.mxu0 %v1021
  %1077 = vmatprep.subr.bf16.mxu0 %v1026
  %1078 = vmatpush1.bf16.msra.mxu0 %v1025
  %1079 = vmatprep.subr.bf16.mxu0 %v1030
  %1080 = vmatpush1.bf16.msra.mxu0 %v1029
  %1081 = vmatprep.subr.bf16.mxu0 0
  %1082 = vmatpush1.bf16.msra.mxu0 0
  %1083 = vmatprep.subr.bf16.mxu0 0
  %1084 = vmatpush1.bf16.msra.mxu0 0
  %1085 = vmatprep.subr.bf16.mxu0 0
  %1086 = vmatpush1.bf16.msra.mxu0 0
  %1087 = vmatprep.subr.bf16.mxu0 0
  %1088 = vmatpush1.bf16.msra.mxu0 0
  %1089 = vmatprep.subr.bf16.mxu0 0
  %1090 = vmatpush1.bf16.msra.mxu0 0
  %1091 = vmatprep.subr.bf16.mxu0 0
  %1092 = vmatpush1.bf16.msra.mxu0 0
  %1093 = vmatprep.subr.bf16.mxu0 0
  %1094 = vmatpush1.bf16.msra.mxu0 0
  %1095 = vmatprep.subr.bf16.mxu0 0
  %1096 = vmatpush1.bf16.msra.mxu0 0
  %1097 = vmatprep.mubr.bf16.mxu0 0
  %1098 = vmatmul.mubr.bf16.gmra.mrb[0].mxu0 %v866
  %v1099 = vpop.f32.mrb[0].mxu0
  %v1100 = vadd.f32 0.0, %v1099
  %v1101 = vpop.f32.mrb[0].mxu0
  %v1102 = vadd.f32 0.0, %v1101
  %v1103 = vpop.f32.mrb[0].mxu0
  %v1104 = vpop.f32.mrb[0].mxu0
  %1105 = vdwg.mxu0
  %1106 = vmatprep.subr.bf16.mxu0 %v1004
  %1107 = vmatpush1.bf16.msra.mxu0 %v1003
  %1108 = vmatprep.subr.bf16.mxu0 %v1008
  %1109 = vmatpush1.bf16.msra.mxu0 %v1007
  %1110 = vmatprep.subr.bf16.mxu0 %v1012
  %1111 = vmatpush1.bf16.msra.mxu0 %v1011
  %1112 = vmatprep.subr.bf16.mxu0 %v1016
  %1113 = vmatpush1.bf16.msra.mxu0 %v1015
  %1114 = vmatprep.subr.bf16.mxu0 %v1020
  %1115 = vmatpush1.bf16.msra.mxu0 %v1019
  %1116 = vmatprep.subr.bf16.mxu0 %v1024
  %1117 = vmatpush1.bf16.msra.mxu0 %v1023
  %1118 = vmatprep.subr.bf16.mxu0 %v1028
  %1119 = vmatpush1.bf16.msra.mxu0 %v1027
  %1120 = vmatprep.subr.bf16.mxu0 %v1032
  %1121 = vmatpush1.bf16.msra.mxu0 %v1031
  %1122 = vmatprep.subr.bf16.mxu0 0
  %1123 = vmatpush1.bf16.msra.mxu0 0
  %1124 = vmatprep.subr.bf16.mxu0 0
  %1125 = vmatpush1.bf16.msra.mxu0 0
  %1126 = vmatprep.subr.bf16.mxu0 0
  %1127 = vmatpush1.bf16.msra.mxu0 0
  %1128 = vmatprep.subr.bf16.mxu0 0
  %1129 = vmatpush1.bf16.msra.mxu0 0
  %1130 = vmatprep.subr.bf16.mxu0 0
  %1131 = vmatpush1.bf16.msra.mxu0 0
  %1132 = vmatprep.subr.bf16.mxu0 0
  %1133 = vmatpush1.bf16.msra.mxu0 0
  %1134 = vmatprep.subr.bf16.mxu0 0
  %1135 = vmatpush1.bf16.msra.mxu0 0
  %1136 = vmatprep.subr.bf16.mxu0 0
  %1137 = vmatpush1.bf16.msra.mxu0 0
  %1138 = vmatprep.mubr.bf16.mxu0 0
  %1139 = vmatmul.mubr.bf16.gmra.mrb[0].mxu0 %v866
  %v1140 = vpop.f32.mrb[0].mxu0
  %v1141 = vadd.f32 0.0, %v1140
  %v1142 = vpop.f32.mrb[0].mxu0
  %v1143 = vadd.f32 0.0, %v1142
  %v1144 = vpop.f32.mrb[0].mxu0
  %v1145 = vpop.f32.mrb[0].mxu0
  %1146 = vdwg.mxu0
  %v1147 = vadd.f32 %v869, %v1100
  %v1148 = vadd.f32 %v870, %v1102
  %v1149 = vadd.f32 %v871, %v1141
  %v1150 = vadd.f32 %v872, %v1143
  %v1151 = vsub.f32 0.0, %v1147
  %v1152 = vmul.f32 %v1151, 1.442695
  %v1153 = vpow.pop %v1152
  %v1154 = vadd.f32 %v1153, 1.0
  %v1155 = vrcp.pop %v1154
  %v1156 = vsub.f32 0.0, %v1148
  %v1157 = vmul.f32 %v1156, 1.442695
  %v1158 = vpow.pop %v1157
  %v1159 = vadd.f32 %v1158, 1.0
  %v1160 = vrcp.pop %v1159
  %v1161 = vtanh.pop %v1149
  %v1162 = vsub.f32 0.0, %v1150
  %v1163 = vmul.f32 %v1162, 1.442695
  %v1164 = vpow.pop %v1163
  %v1165 = vadd.f32 %v1164, 1.0
  %v1166 = vrcp.pop %v1165
  %v1167 = vmul.f32 %v1160, %v863
  %v1168 = vmul.f32 %v1155, %v1161
  %v1169 = vadd.f32 %v1167, %v1168
  %v1170 = vtanh.pop %v1169
  %v1171 = vmul.f32 %v1166, %v1170
  %v1172 = vpack.c.bf16 %v1171, %v1171
  %s1173 = scalar_lea.vmem [#allocation3], 4
  %1174 = vst [vmem:[%s1173] sm:$0xf] %v1172
  %s1175 = scalar_lea.vmem [#allocation2], 64
  %v1176 = vld [vmem:[%s1175] sm:$0xff]
  %v1177 = vld [vmem:[%s1175 + $0x8] sm:$0xff]
  %v1178 = vld [vmem:[%s1175 + $0x10] sm:$0xff]
  %v1179 = vld [vmem:[%s1175 + $0x18] sm:$0xff]
  %v1180 = vld [vmem:[%s2] sm:$0xff]
  %v1181 = vld [vmem:[%s2 + $0x8] sm:$0xff]
  %v1182 = vld [vmem:[%s2 + $0x10] sm:$0xff]
  %v1183 = vld [vmem:[%s2 + $0x18] sm:$0xff]
  %v1184 = vld [vmem:[%s2 + $0x20] sm:$0xff]
  %v1185 = vld [vmem:[%s2 + $0x28] sm:$0xff]
  %v1186 = vld [vmem:[%s2 + $0x30] sm:$0xff]
  %v1187 = vld [vmem:[%s2 + $0x38] sm:$0xff]
  %v1188 = vld [vmem:[%s2 + $0x40] sm:$0xff]
  %v1189 = vld [vmem:[%s2 + $0x48] sm:$0xff]
  %v1190 = vld [vmem:[%s2 + $0x50] sm:$0xff]
  %v1191 = vld [vmem:[%s2 + $0x58] sm:$0xff]
  %v1192 = vld [vmem:[%s2 + $0x60] sm:$0xff]
  %v1193 = vld [vmem:[%s2 + $0x68] sm:$0xff]
  %v1194 = vld [vmem:[%s2 + $0x70] sm:$0xff]
  %v1195 = vld [vmem:[%s2 + $0x78] sm:$0xff]
  %v1196 = vld [vmem:[%s2 + $0x80] sm:$0xff]
  %v1197 = vld [vmem:[%s2 + $0x88] sm:$0xff]
  %v1198 = vld [vmem:[%s2 + $0x90] sm:$0xff]
  %v1199 = vld [vmem:[%s2 + $0x98] sm:$0xff]
  %v1200 = vld [vmem:[%s2 + $0xa0] sm:$0xff]
  %v1201 = vld [vmem:[%s2 + $0xa8] sm:$0xff]
  %v1202 = vld [vmem:[%s2 + $0xb0] sm:$0xff]
  %v1203 = vld [vmem:[%s2 + $0xb8] sm:$0xff]
  %v1204 = vld [vmem:[%s2 + $0xc0] sm:$0xff]
  %v1205 = vld [vmem:[%s2 + $0xc8] sm:$0xff]
  %v1206 = vld [vmem:[%s2 + $0xd0] sm:$0xff]
  %v1207 = vld [vmem:[%s2 + $0xd8] sm:$0xff]
  %v1208 = vld [vmem:[%s2 + $0xe0] sm:$0xff]
  %v1209 = vld [vmem:[%s2 + $0xe8] sm:$0xff]
  %v1210 = vld [vmem:[%s2 + $0xf0] sm:$0xff]
  %v1211 = vld [vmem:[%s2 + $0xf8] sm:$0xff]
  %v1244 = vunpack.c.l.b16 %v1180
  %v1245 = vunpack.c.h.b16 %v1180
  %v1246 = vunpack.c.l.b16 %v1181
  %v1247 = vunpack.c.h.b16 %v1181
  %v1248 = vunpack.c.l.b16 %v1182
  %v1249 = vunpack.c.h.b16 %v1182
  %v1250 = vunpack.c.l.b16 %v1183
  %v1251 = vunpack.c.h.b16 %v1183
  %v1252 = vunpack.c.l.b16 %v1184
  %v1253 = vunpack.c.h.b16 %v1184
  %v1254 = vunpack.c.l.b16 %v1185
  %v1255 = vunpack.c.h.b16 %v1185
  %v1256 = vunpack.c.l.b16 %v1186
  %v1257 = vunpack.c.h.b16 %v1186
  %v1258 = vunpack.c.l.b16 %v1187
  %v1259 = vunpack.c.h.b16 %v1187
  %v1260 = vunpack.c.l.b16 %v1188
  %v1261 = vunpack.c.h.b16 %v1188
  %v1262 = vunpack.c.l.b16 %v1189
  %v1263 = vunpack.c.h.b16 %v1189
  %v1264 = vunpack.c.l.b16 %v1190
  %v1265 = vunpack.c.h.b16 %v1190
  %v1266 = vunpack.c.l.b16 %v1191
  %v1267 = vunpack.c.h.b16 %v1191
  %v1268 = vunpack.c.l.b16 %v1192
  %v1269 = vunpack.c.h.b16 %v1192
  %v1270 = vunpack.c.l.b16 %v1193
  %v1271 = vunpack.c.h.b16 %v1193
  %v1272 = vunpack.c.l.b16 %v1194
  %v1273 = vunpack.c.h.b16 %v1194
  %v1274 = vunpack.c.l.b16 %v1195
  %v1275 = vunpack.c.h.b16 %v1195
  %v1276 = vunpack.c.l.b16 %v1196
  %v1277 = vunpack.c.h.b16 %v1196
  %v1278 = vunpack.c.l.b16 %v1197
  %v1279 = vunpack.c.h.b16 %v1197
  %v1280 = vunpack.c.l.b16 %v1198
  %v1281 = vunpack.c.h.b16 %v1198
  %v1282 = vunpack.c.l.b16 %v1199
  %v1283 = vunpack.c.h.b16 %v1199
  %v1284 = vunpack.c.l.b16 %v1200
  %v1285 = vunpack.c.h.b16 %v1200
  %v1286 = vunpack.c.l.b16 %v1201
  %v1287 = vunpack.c.h.b16 %v1201
  %v1288 = vunpack.c.l.b16 %v1202
  %v1289 = vunpack.c.h.b16 %v1202
  %v1290 = vunpack.c.l.b16 %v1203
  %v1291 = vunpack.c.h.b16 %v1203
  %v1292 = vunpack.c.l.b16 %v1204
  %v1293 = vunpack.c.h.b16 %v1204
  %v1294 = vunpack.c.l.b16 %v1205
  %v1295 = vunpack.c.h.b16 %v1205
  %v1296 = vunpack.c.l.b16 %v1206
  %v1297 = vunpack.c.h.b16 %v1206
  %v1298 = vunpack.c.l.b16 %v1207
  %v1299 = vunpack.c.h.b16 %v1207
  %v1300 = vunpack.c.l.b16 %v1208
  %v1301 = vunpack.c.h.b16 %v1208
  %v1302 = vunpack.c.l.b16 %v1209
  %v1303 = vunpack.c.h.b16 %v1209
  %v1304 = vunpack.c.l.b16 %v1210
  %v1305 = vunpack.c.h.b16 %v1210
  %v1306 = vunpack.c.l.b16 %v1211
  %v1307 = vunpack.c.h.b16 %v1211
  %v1308 = vpack.c.b16 %v1248, %v1244
  %v1309 = vpack.c.b16 %v1249, %v1245
  %v1310 = vpack.c.b16 %v1250, %v1246
  %v1311 = vpack.c.b16 %v1251, %v1247
  %v1312 = vpack.c.b16 %v1256, %v1252
  %v1313 = vpack.c.b16 %v1257, %v1253
  %v1314 = vpack.c.b16 %v1258, %v1254
  %v1315 = vpack.c.b16 %v1259, %v1255
  %v1316 = vpack.c.b16 %v1264, %v1260
  %v1317 = vpack.c.b16 %v1265, %v1261
  %v1318 = vpack.c.b16 %v1266, %v1262
  %v1319 = vpack.c.b16 %v1267, %v1263
  %v1320 = vpack.c.b16 %v1272, %v1268
  %v1321 = vpack.c.b16 %v1273, %v1269
  %v1322 = vpack.c.b16 %v1274, %v1270
  %v1323 = vpack.c.b16 %v1275, %v1271
  %v1324 = vpack.c.b16 %v1280, %v1276
  %v1325 = vpack.c.b16 %v1281, %v1277
  %v1326 = vpack.c.b16 %v1282, %v1278
  %v1327 = vpack.c.b16 %v1283, %v1279
  %v1328 = vpack.c.b16 %v1288, %v1284
  %v1329 = vpack.c.b16 %v1289, %v1285
  %v1330 = vpack.c.b16 %v1290, %v1286
  %v1331 = vpack.c.b16 %v1291, %v1287
  %v1332 = vpack.c.b16 %v1296, %v1292
  %v1333 = vpack.c.b16 %v1297, %v1293
  %v1334 = vpack.c.b16 %v1298, %v1294
  %v1335 = vpack.c.b16 %v1299, %v1295
  %v1336 = vpack.c.b16 %v1304, %v1300
  %v1337 = vpack.c.b16 %v1305, %v1301
  %v1338 = vpack.c.b16 %v1306, %v1302
  %v1339 = vpack.c.b16 %v1307, %v1303
  %1372 = vmatprep.subr.bf16.mxu0 %v1309
  %1373 = vmatpush1.bf16.msra.mxu0 %v1308
  %1374 = vmatprep.subr.bf16.mxu0 %v1313
  %1375 = vmatpush1.bf16.msra.mxu0 %v1312
  %1376 = vmatprep.subr.bf16.mxu0 %v1317
  %1377 = vmatpush1.bf16.msra.mxu0 %v1316
  %1378 = vmatprep.subr.bf16.mxu0 %v1321
  %1379 = vmatpush1.bf16.msra.mxu0 %v1320
  %1380 = vmatprep.subr.bf16.mxu0 %v1325
  %1381 = vmatpush1.bf16.msra.mxu0 %v1324
  %1382 = vmatprep.subr.bf16.mxu0 %v1329
  %1383 = vmatpush1.bf16.msra.mxu0 %v1328
  %1384 = vmatprep.subr.bf16.mxu0 %v1333
  %1385 = vmatpush1.bf16.msra.mxu0 %v1332
  %1386 = vmatprep.subr.bf16.mxu0 %v1337
  %1387 = vmatpush1.bf16.msra.mxu0 %v1336
  %1388 = vmatprep.subr.bf16.mxu0 0
  %1389 = vmatpush1.bf16.msra.mxu0 0
  %1390 = vmatprep.subr.bf16.mxu0 0
  %1391 = vmatpush1.bf16.msra.mxu0 0
  %1392 = vmatprep.subr.bf16.mxu0 0
  %1393 = vmatpush1.bf16.msra.mxu0 0
  %1394 = vmatprep.subr.bf16.mxu0 0
  %1395 = vmatpush1.bf16.msra.mxu0 0
  %1396 = vmatprep.subr.bf16.mxu0 0
  %1397 = vmatpush1.bf16.msra.mxu0 0
  %1398 = vmatprep.subr.bf16.mxu0 0
  %1399 = vmatpush1.bf16.msra.mxu0 0
  %1400 = vmatprep.subr.bf16.mxu0 0
  %1401 = vmatpush1.bf16.msra.mxu0 0
  %1402 = vmatprep.subr.bf16.mxu0 0
  %1403 = vmatpush1.bf16.msra.mxu0 0
  %1404 = vmatprep.mubr.bf16.mxu0 0
  %1405 = vmatmul.mubr.bf16.gmra.mrb[0].mxu0 %v1172
  %v1406 = vpop.f32.mrb[0].mxu0
  %v1407 = vadd.f32 0.0, %v1406
  %v1408 = vpop.f32.mrb[0].mxu0
  %v1409 = vadd.f32 0.0, %v1408
  %v1410 = vpop.f32.mrb[0].mxu0
  %v1411 = vpop.f32.mrb[0].mxu0
  %1412 = vdwg.mxu0
  %1413 = vmatprep.subr.bf16.mxu0 %v1311
  %1414 = vmatpush1.bf16.msra.mxu0 %v1310
  %1415 = vmatprep.subr.bf16.mxu0 %v1315
  %1416 = vmatpush1.bf16.msra.mxu0 %v1314
  %1417 = vmatprep.subr.bf16.mxu0 %v1319
  %1418 = vmatpush1.bf16.msra.mxu0 %v1318
  %1419 = vmatprep.subr.bf16.mxu0 %v1323
  %1420 = vmatpush1.bf16.msra.mxu0 %v1322
  %1421 = vmatprep.subr.bf16.mxu0 %v1327
  %1422 = vmatpush1.bf16.msra.mxu0 %v1326
  %1423 = vmatprep.subr.bf16.mxu0 %v1331
  %1424 = vmatpush1.bf16.msra.mxu0 %v1330
  %1425 = vmatprep.subr.bf16.mxu0 %v1335
  %1426 = vmatpush1.bf16.msra.mxu0 %v1334
  %1427 = vmatprep.subr.bf16.mxu0 %v1339
  %1428 = vmatpush1.bf16.msra.mxu0 %v1338
  %1429 = vmatprep.subr.bf16.mxu0 0
  %1430 = vmatpush1.bf16.msra.mxu0 0
  %1431 = vmatprep.subr.bf16.mxu0 0
  %1432 = vmatpush1.bf16.msra.mxu0 0
  %1433 = vmatprep.subr.bf16.mxu0 0
  %1434 = vmatpush1.bf16.msra.mxu0 0
  %1435 = vmatprep.subr.bf16.mxu0 0
  %1436 = vmatpush1.bf16.msra.mxu0 0
  %1437 = vmatprep.subr.bf16.mxu0 0
  %1438 = vmatpush1.bf16.msra.mxu0 0
  %1439 = vmatprep.subr.bf16.mxu0 0
  %1440 = vmatpush1.bf16.msra.mxu0 0
  %1441 = vmatprep.subr.bf16.mxu0 0
  %1442 = vmatpush1.bf16.msra.mxu0 0
  %1443 = vmatprep.subr.bf16.mxu0 0
  %1444 = vmatpush1.bf16.msra.mxu0 0
  %1445 = vmatprep.mubr.bf16.mxu0 0
  %1446 = vmatmul.mubr.bf16.gmra.mrb[0].mxu0 %v1172
  %v1447 = vpop.f32.mrb[0].mxu0
  %v1448 = vadd.f32 0.0, %v1447
  %v1449 = vpop.f32.mrb[0].mxu0
  %v1450 = vadd.f32 0.0, %v1449
  %v1451 = vpop.f32.mrb[0].mxu0
  %v1452 = vpop.f32.mrb[0].mxu0
  %1453 = vdwg.mxu0
  %v1454 = vadd.f32 %v1176, %v1407
  %v1455 = vadd.f32 %v1177, %v1409
  %v1456 = vadd.f32 %v1178, %v1448
  %v1457 = vadd.f32 %v1179, %v1450
  %v1458 = vsub.f32 0.0, %v1454
  %v1459 = vmul.f32 %v1458, 1.442695
  %v1460 = vpow.pop %v1459
  %v1461 = vadd.f32 %v1460, 1.0
  %v1462 = vrcp.pop %v1461
  %v1463 = vsub.f32 0.0, %v1455
  %v1464 = vmul.f32 %v1463, 1.442695
  %v1465 = vpow.pop %v1464
  %v1466 = vadd.f32 %v1465, 1.0
  %v1467 = vrcp.pop %v1466
  %v1468 = vtanh.pop %v1456
  %v1469 = vsub.f32 0.0, %v1457
  %v1470 = vmul.f32 %v1469, 1.442695
  %v1471 = vpow.pop %v1470
  %v1472 = vadd.f32 %v1471, 1.0
  %v1473 = vrcp.pop %v1472
  %v1474 = vmul.f32 %v1467, %v1169
  %v1475 = vmul.f32 %v1462, %v1468
  %v1476 = vadd.f32 %v1474, %v1475
  %v1477 = vtanh.pop %v1476
  %v1478 = vmul.f32 %v1473, %v1477
  %v1479 = vpack.c.bf16 %v1478, %v1478
  %s1480 = scalar_lea.vmem [#allocation3], 8
  %1481 = vst [vmem:[%s1480] sm:$0xf] %v1479
  %s1482 = scalar_lea.vmem [#allocation2], 96
  %v1483 = vld [vmem:[%s1482] sm:$0xff]
  %v1484 = vld [vmem:[%s1482 + $0x8] sm:$0xff]
  %v1485 = vld [vmem:[%s1482 + $0x10] sm:$0xff]
  %v1486 = vld [vmem:[%s1482 + $0x18] sm:$0xff]
  %v1487 = vld [vmem:[%s2] sm:$0xff]
  %v1488 = vld [vmem:[%s2 + $0x8] sm:$0xff]
  %v1489 = vld [vmem:[%s2 + $0x10] sm:$0xff]
  %v1490 = vld [vmem:[%s2 + $0x18] sm:$0xff]
  %v1491 = vld [vmem:[%s2 + $0x20] sm:$0xff]
  %v1492 = vld [vmem:[%s2 + $0x28] sm:$0xff]
  %v1493 = vld [vmem:[%s2 + $0x30] sm:$0xff]
  %v1494 = vld [vmem:[%s2 + $0x38] sm:$0xff]
  %v1495 = vld [vmem:[%s2 + $0x40] sm:$0xff]
  %v1496 = vld [vmem:[%s2 + $0x48] sm:$0xff]
  %v1497 = vld [vmem:[%s2 + $0x50] sm:$0xff]
  %v1498 = vld [vmem:[%s2 + $0x58] sm:$0xff]
  %v1499 = vld [vmem:[%s2 + $0x60] sm:$0xff]
  %v1500 = vld [vmem:[%s2 + $0x68] sm:$0xff]
  %v1501 = vld [vmem:[%s2 + $0x70] sm:$0xff]
  %v1502 = vld [vmem:[%s2 + $0x78] sm:$0xff]
  %v1503 = vld [vmem:[%s2 + $0x80] sm:$0xff]
  %v1504 = vld [vmem:[%s2 + $0x88] sm:$0xff]
  %v1505 = vld [vmem:[%s2 + $0x90] sm:$0xff]
  %v1506 = vld [vmem:[%s2 + $0x98] sm:$0xff]
  %v1507 = vld [vmem:[%s2 + $0xa0] sm:$0xff]
  %v1508 = vld [vmem:[%s2 + $0xa8] sm:$0xff]
  %v1509 = vld [vmem:[%s2 + $0xb0] sm:$0xff]
  %v1510 = vld [vmem:[%s2 + $0xb8] sm:$0xff]
  %v1511 = vld [vmem:[%s2 + $0xc0] sm:$0xff]
  %v1512 = vld [vmem:[%s2 + $0xc8] sm:$0xff]
  %v1513 = vld [vmem:[%s2 + $0xd0] sm:$0xff]
  %v1514 = vld [vmem:[%s2 + $0xd8] sm:$0xff]
  %v1515 = vld [vmem:[%s2 + $0xe0] sm:$0xff]
  %v1516 = vld [vmem:[%s2 + $0xe8] sm:$0xff]
  %v1517 = vld [vmem:[%s2 + $0xf0] sm:$0xff]
  %v1518 = vld [vmem:[%s2 + $0xf8] sm:$0xff]
  %v1551 = vunpack.c.l.b16 %v1487
  %v1552 = vunpack.c.h.b16 %v1487
  %v1553 = vunpack.c.l.b16 %v1488
  %v1554 = vunpack.c.h.b16 %v1488
  %v1555 = vunpack.c.l.b16 %v1489
  %v1556 = vunpack.c.h.b16 %v1489
  %v1557 = vunpack.c.l.b16 %v1490
  %v1558 = vunpack.c.h.b16 %v1490
  %v1559 = vunpack.c.l.b16 %v1491
  %v1560 = vunpack.c.h.b16 %v1491
  %v1561 = vunpack.c.l.b16 %v1492
  %v1562 = vunpack.c.h.b16 %v1492
  %v1563 = vunpack.c.l.b16 %v1493
  %v1564 = vunpack.c.h.b16 %v1493
  %v1565 = vunpack.c.l.b16 %v1494
  %v1566 = vunpack.c.h.b16 %v1494
  %v1567 = vunpack.c.l.b16 %v1495
  %v1568 = vunpack.c.h.b16 %v1495
  %v1569 = vunpack.c.l.b16 %v1496
  %v1570 = vunpack.c.h.b16 %v1496
  %v1571 = vunpack.c.l.b16 %v1497
  %v1572 = vunpack.c.h.b16 %v1497
  %v1573 = vunpack.c.l.b16 %v1498
  %v1574 = vunpack.c.h.b16 %v1498
  %v1575 = vunpack.c.l.b16 %v1499
  %v1576 = vunpack.c.h.b16 %v1499
  %v1577 = vunpack.c.l.b16 %v1500
  %v1578 = vunpack.c.h.b16 %v1500
  %v1579 = vunpack.c.l.b16 %v1501
  %v1580 = vunpack.c.h.b16 %v1501
  %v1581 = vunpack.c.l.b16 %v1502
  %v1582 = vunpack.c.h.b16 %v1502
  %v1583 = vunpack.c.l.b16 %v1503
  %v1584 = vunpack.c.h.b16 %v1503
  %v1585 = vunpack.c.l.b16 %v1504
  %v1586 = vunpack.c.h.b16 %v1504
  %v1587 = vunpack.c.l.b16 %v1505
  %v1588 = vunpack.c.h.b16 %v1505
  %v1589 = vunpack.c.l.b16 %v1506
  %v1590 = vunpack.c.h.b16 %v1506
  %v1591 = vunpack.c.l.b16 %v1507
  %v1592 = vunpack.c.h.b16 %v1507
  %v1593 = vunpack.c.l.b16 %v1508
  %v1594 = vunpack.c.h.b16 %v1508
  %v1595 = vunpack.c.l.b16 %v1509
  %v1596 = vunpack.c.h.b16 %v1509
  %v1597 = vunpack.c.l.b16 %v1510
  %v1598 = vunpack.c.h.b16 %v1510
  %v1599 = vunpack.c.l.b16 %v1511
  %v1600 = vunpack.c.h.b16 %v1511
  %v1601 = vunpack.c.l.b16 %v1512
  %v1602 = vunpack.c.h.b16 %v1512
  %v1603 = vunpack.c.l.b16 %v1513
  %v1604 = vunpack.c.h.b16 %v1513
  %v1605 = vunpack.c.l.b16 %v1514
  %v1606 = vunpack.c.h.b16 %v1514
  %v1607 = vunpack.c.l.b16 %v1515
  %v1608 = vunpack.c.h.b16 %v1515
  %v1609 = vunpack.c.l.b16 %v1516
  %v1610 = vunpack.c.h.b16 %v1516
  %v1611 = vunpack.c.l.b16 %v1517
  %v1612 = vunpack.c.h.b16 %v1517
  %v1613 = vunpack.c.l.b16 %v1518
  %v1614 = vunpack.c.h.b16 %v1518
  %v1615 = vpack.c.b16 %v1555, %v1551
  %v1616 = vpack.c.b16 %v1556, %v1552
  %v1617 = vpack.c.b16 %v1557, %v1553
  %v1618 = vpack.c.b16 %v1558, %v1554
  %v1619 = vpack.c.b16 %v1563, %v1559
  %v1620 = vpack.c.b16 %v1564, %v1560
  %v1621 = vpack.c.b16 %v1565, %v1561
  %v1622 = vpack.c.b16 %v1566, %v1562
  %v1623 = vpack.c.b16 %v1571, %v1567
  %v1624 = vpack.c.b16 %v1572, %v1568
  %v1625 = vpack.c.b16 %v1573, %v1569
  %v1626 = vpack.c.b16 %v1574, %v1570
  %v1627 = vpack.c.b16 %v1579, %v1575
  %v1628 = vpack.c.b16 %v1580, %v1576
  %v1629 = vpack.c.b16 %v1581, %v1577
  %v1630 = vpack.c.b16 %v1582, %v1578
  %v1631 = vpack.c.b16 %v1587, %v1583
  %v1632 = vpack.c.b16 %v1588, %v1584
  %v1633 = vpack.c.b16 %v1589, %v1585
  %v1634 = vpack.c.b16 %v1590, %v1586
  %v1635 = vpack.c.b16 %v1595, %v1591
  %v1636 = vpack.c.b16 %v1596, %v1592
  %v1637 = vpack.c.b16 %v1597, %v1593
  %v1638 = vpack.c.b16 %v1598, %v1594
  %v1639 = vpack.c.b16 %v1603, %v1599
  %v1640 = vpack.c.b16 %v1604, %v1600
  %v1641 = vpack.c.b16 %v1605, %v1601
  %v1642 = vpack.c.b16 %v1606, %v1602
  %v1643 = vpack.c.b16 %v1611, %v1607
  %v1644 = vpack.c.b16 %v1612, %v1608
  %v1645 = vpack.c.b16 %v1613, %v1609
  %v1646 = vpack.c.b16 %v1614, %v1610
  %1679 = vmatprep.subr.bf16.mxu0 %v1616
  %1680 = vmatpush1.bf16.msra.mxu0 %v1615
  %1681 = vmatprep.subr.bf16.mxu0 %v1620
  %1682 = vmatpush1.bf16.msra.mxu0 %v1619
  %1683 = vmatprep.subr.bf16.mxu0 %v1624
  %1684 = vmatpush1.bf16.msra.mxu0 %v1623
  %1685 = vmatprep.subr.bf16.mxu0 %v1628
  %1686 = vmatpush1.bf16.msra.mxu0 %v1627
  %1687 = vmatprep.subr.bf16.mxu0 %v1632
  %1688 = vmatpush1.bf16.msra.mxu0 %v1631
  %1689 = vmatprep.subr.bf16.mxu0 %v1636
  %1690 = vmatpush1.bf16.msra.mxu0 %v1635
  %1691 = vmatprep.subr.bf16.mxu0 %v1640
  %1692 = vmatpush1.bf16.msra.mxu0 %v1639
  %1693 = vmatprep.subr.bf16.mxu0 %v1644
  %1694 = vmatpush1.bf16.msra.mxu0 %v1643
  %1695 = vmatprep.subr.bf16.mxu0 0
  %1696 = vmatpush1.bf16.msra.mxu0 0
  %1697 = vmatprep.subr.bf16.mxu0 0
  %1698 = vmatpush1.bf16.msra.mxu0 0
  %1699 = vmatprep.subr.bf16.mxu0 0
  %1700 = vmatpush1.bf16.msra.mxu0 0
  %1701 = vmatprep.subr.bf16.mxu0 0
  %1702 = vmatpush1.bf16.msra.mxu0 0
  %1703 = vmatprep.subr.bf16.mxu0 0
  %1704 = vmatpush1.bf16.msra.mxu0 0
  %1705 = vmatprep.subr.bf16.mxu0 0
  %1706 = vmatpush1.bf16.msra.mxu0 0
  %1707 = vmatprep.subr.bf16.mxu0 0
  %1708 = vmatpush1.bf16.msra.mxu0 0
  %1709 = vmatprep.subr.bf16.mxu0 0
  %1710 = vmatpush1.bf16.msra.mxu0 0
  %1711 = vmatprep.mubr.bf16.mxu0 0
  %1712 = vmatmul.mubr.bf16.gmra.mrb[0].mxu0 %v1479
  %v1713 = vpop.f32.mrb[0].mxu0
  %v1714 = vadd.f32 0.0, %v1713
  %v1715 = vpop.f32.mrb[0].mxu0
  %v1716 = vadd.f32 0.0, %v1715
  %v1717 = vpop.f32.mrb[0].mxu0
  %v1718 = vpop.f32.mrb[0].mxu0
  %1719 = vdwg.mxu0
  %1720 = vmatprep.subr.bf16.mxu0 %v1618
  %1721 = vmatpush1.bf16.msra.mxu0 %v1617
  %1722 = vmatprep.subr.bf16.mxu0 %v1622
  %1723 = vmatpush1.bf16.msra.mxu0 %v1621
  %1724 = vmatprep.subr.bf16.mxu0 %v1626
  %1725 = vmatpush1.bf16.msra.mxu0 %v1625
  %1726 = vmatprep.subr.bf16.mxu0 %v1630
  %1727 = vmatpush1.bf16.msra.mxu0 %v1629
  %1728 = vmatprep.subr.bf16.mxu0 %v1634
  %1729 = vmatpush1.bf16.msra.mxu0 %v1633
  %1730 = vmatprep.subr.bf16.mxu0 %v1638
  %1731 = vmatpush1.bf16.msra.mxu0 %v1637
  %1732 = vmatprep.subr.bf16.mxu0 %v1642
  %1733 = vmatpush1.bf16.msra.mxu0 %v1641
  %1734 = vmatprep.subr.bf16.mxu0 %v1646
  %1735 = vmatpush1.bf16.msra.mxu0 %v1645
  %1736 = vmatprep.subr.bf16.mxu0 0
  %1737 = vmatpush1.bf16.msra.mxu0 0
  %1738 = vmatprep.subr.bf16.mxu0 0
  %1739 = vmatpush1.bf16.msra.mxu0 0
  %1740 = vmatprep.subr.bf16.mxu0 0
  %1741 = vmatpush1.bf16.msra.mxu0 0
  %1742 = vmatprep.subr.bf16.mxu0 0
  %1743 = vmatpush1.bf16.msra.mxu0 0
  %1744 = vmatprep.subr.bf16.mxu0 0
  %1745 = vmatpush1.bf16.msra.mxu0 0
  %1746 = vmatprep.subr.bf16.mxu0 0
  %1747 = vmatpush1.bf16.msra.mxu0 0
  %1748 = vmatprep.subr.bf16.mxu0 0
  %1749 = vmatpush1.bf16.msra.mxu0 0
  %1750 = vmatprep.subr.bf16.mxu0 0
  %1751 = vmatpush1.bf16.msra.mxu0 0
  %1752 = vmatprep.mubr.bf16.mxu0 0
  %1753 = vmatmul.mubr.bf16.gmra.mrb[0].mxu0 %v1479
  %v1754 = vpop.f32.mrb[0].mxu0
  %v1755 = vadd.f32 0.0, %v1754
  %v1756 = vpop.f32.mrb[0].mxu0
  %v1757 = vadd.f32 0.0, %v1756
  %v1758 = vpop.f32.mrb[0].mxu0
  %v1759 = vpop.f32.mrb[0].mxu0
  %1760 = vdwg.mxu0
  %v1761 = vadd.f32 %v1483, %v1714
  %v1762 = vadd.f32 %v1484, %v1716
  %v1763 = vadd.f32 %v1485, %v1755
  %v1764 = vadd.f32 %v1486, %v1757
  %v1765 = vsub.f32 0.0, %v1761
  %v1766 = vmul.f32 %v1765, 1.442695
  %v1767 = vpow.pop %v1766
  %v1768 = vadd.f32 %v1767, 1.0
  %v1769 = vrcp.pop %v1768
  %v1770 = vsub.f32 0.0, %v1762
  %v1771 = vmul.f32 %v1770, 1.442695
  %v1772 = vpow.pop %v1771
  %v1773 = vadd.f32 %v1772, 1.0
  %v1774 = vrcp.pop %v1773
  %v1775 = vtanh.pop %v1763
  %v1776 = vsub.f32 0.0, %v1764
  %v1777 = vmul.f32 %v1776, 1.442695
  %v1778 = vpow.pop %v1777
  %v1779 = vadd.f32 %v1778, 1.0
  %v1780 = vrcp.pop %v1779
  %v1781 = vmul.f32 %v1774, %v1476
  %v1782 = vmul.f32 %v1769, %v1775
  %v1783 = vadd.f32 %v1781, %v1782
  %v1784 = vtanh.pop %v1783
  %v1785 = vmul.f32 %v1780, %v1784
  %v1786 = vpack.c.bf16 %v1785, %v1785
  %s1787 = scalar_lea.vmem [#allocation3], 12
  %1788 = vst [vmem:[%s1787] sm:$0xf] %v1786
  %s1789 = scalar_lea.vmem [#allocation2], 128
  %v1790 = vld [vmem:[%s1789] sm:$0xff]
  %v1791 = vld [vmem:[%s1789 + $0x8] sm:$0xff]
  %v1792 = vld [vmem:[%s1789 + $0x10] sm:$0xff]
  %v1793 = vld [vmem:[%s1789 + $0x18] sm:$0xff]
  %v1794 = vld [vmem:[%s2] sm:$0xff]
  %v1795 = vld [vmem:[%s2 + $0x8] sm:$0xff]
  %v1796 = vld [vmem:[%s2 + $0x10] sm:$0xff]
  %v1797 = vld [vmem:[%s2 + $0x18] sm:$0xff]
  %v1798 = vld [vmem:[%s2 + $0x20] sm:$0xff]
  %v1799 = vld [vmem:[%s2 + $0x28] sm:$0xff]
  %v1800 = vld [vmem:[%s2 + $0x30] sm:$0xff]
  %v1801 = vld [vmem:[%s2 + $0x38] sm:$0xff]
  %v1802 = vld [vmem:[%s2 + $0x40] sm:$0xff]
  %v1803 = vld [vmem:[%s2 + $0x48] sm:$0xff]
  %v1804 = vld [vmem:[%s2 + $0x50] sm:$0xff]
  %v1805 = vld [vmem:[%s2 + $0x58] sm:$0xff]
  %v1806 = vld [vmem:[%s2 + $0x60] sm:$0xff]
  %v1807 = vld [vmem:[%s2 + $0x68] sm:$0xff]
  %v1808 = vld [vmem:[%s2 + $0x70] sm:$0xff]
  %v1809 = vld [vmem:[%s2 + $0x78] sm:$0xff]
  %v1810 = vld [vmem:[%s2 + $0x80] sm:$0xff]
  %v1811 = vld [vmem:[%s2 + $0x88] sm:$0xff]
  %v1812 = vld [vmem:[%s2 + $0x90] sm:$0xff]
  %v1813 = vld [vmem:[%s2 + $0x98] sm:$0xff]
  %v1814 = vld [vmem:[%s2 + $0xa0] sm:$0xff]
  %v1815 = vld [vmem:[%s2 + $0xa8] sm:$0xff]
  %v1816 = vld [vmem:[%s2 + $0xb0] sm:$0xff]
  %v1817 = vld [vmem:[%s2 + $0xb8] sm:$0xff]
  %v1818 = vld [vmem:[%s2 + $0xc0] sm:$0xff]
  %v1819 = vld [vmem:[%s2 + $0xc8] sm:$0xff]
  %v1820 = vld [vmem:[%s2 + $0xd0] sm:$0xff]
  %v1821 = vld [vmem:[%s2 + $0xd8] sm:$0xff]
  %v1822 = vld [vmem:[%s2 + $0xe0] sm:$0xff]
  %v1823 = vld [vmem:[%s2 + $0xe8] sm:$0xff]
  %v1824 = vld [vmem:[%s2 + $0xf0] sm:$0xff]
  %v1825 = vld [vmem:[%s2 + $0xf8] sm:$0xff]
  %v1858 = vunpack.c.l.b16 %v1794
  %v1859 = vunpack.c.h.b16 %v1794
  %v1860 = vunpack.c.l.b16 %v1795
  %v1861 = vunpack.c.h.b16 %v1795
  %v1862 = vunpack.c.l.b16 %v1796
  %v1863 = vunpack.c.h.b16 %v1796
  %v1864 = vunpack.c.l.b16 %v1797
  %v1865 = vunpack.c.h.b16 %v1797
  %v1866 = vunpack.c.l.b16 %v1798
  %v1867 = vunpack.c.h.b16 %v1798
  %v1868 = vunpack.c.l.b16 %v1799
  %v1869 = vunpack.c.h.b16 %v1799
  %v1870 = vunpack.c.l.b16 %v1800
  %v1871 = vunpack.c.h.b16 %v1800
  %v1872 = vunpack.c.l.b16 %v1801
  %v1873 = vunpack.c.h.b16 %v1801
  %v1874 = vunpack.c.l.b16 %v1802
  %v1875 = vunpack.c.h.b16 %v1802
  %v1876 = vunpack.c.l.b16 %v1803
  %v1877 = vunpack.c.h.b16 %v1803
  %v1878 = vunpack.c.l.b16 %v1804
  %v1879 = vunpack.c.h.b16 %v1804
  %v1880 = vunpack.c.l.b16 %v1805
  %v1881 = vunpack.c.h.b16 %v1805
  %v1882 = vunpack.c.l.b16 %v1806
  %v1883 = vunpack.c.h.b16 %v1806
  %v1884 = vunpack.c.l.b16 %v1807
  %v1885 = vunpack.c.h.b16 %v1807
  %v1886 = vunpack.c.l.b16 %v1808
  %v1887 = vunpack.c.h.b16 %v1808
  %v1888 = vunpack.c.l.b16 %v1809
  %v1889 = vunpack.c.h.b16 %v1809
  %v1890 = vunpack.c.l.b16 %v1810
  %v1891 = vunpack.c.h.b16 %v1810
  %v1892 = vunpack.c.l.b16 %v1811
  %v1893 = vunpack.c.h.b16 %v1811
  %v1894 = vunpack.c.l.b16 %v1812
  %v1895 = vunpack.c.h.b16 %v1812
  %v1896 = vunpack.c.l.b16 %v1813
  %v1897 = vunpack.c.h.b16 %v1813
  %v1898 = vunpack.c.l.b16 %v1814
  %v1899 = vunpack.c.h.b16 %v1814
  %v1900 = vunpack.c.l.b16 %v1815
  %v1901 = vunpack.c.h.b16 %v1815
  %v1902 = vunpack.c.l.b16 %v1816
  %v1903 = vunpack.c.h.b16 %v1816
  %v1904 = vunpack.c.l.b16 %v1817
  %v1905 = vunpack.c.h.b16 %v1817
  %v1906 = vunpack.c.l.b16 %v1818
  %v1907 = vunpack.c.h.b16 %v1818
  %v1908 = vunpack.c.l.b16 %v1819
  %v1909 = vunpack.c.h.b16 %v1819
  %v1910 = vunpack.c.l.b16 %v1820
  %v1911 = vunpack.c.h.b16 %v1820
  %v1912 = vunpack.c.l.b16 %v1821
  %v1913 = vunpack.c.h.b16 %v1821
  %v1914 = vunpack.c.l.b16 %v1822
  %v1915 = vunpack.c.h.b16 %v1822
  %v1916 = vunpack.c.l.b16 %v1823
  %v1917 = vunpack.c.h.b16 %v1823
  %v1918 = vunpack.c.l.b16 %v1824
  %v1919 = vunpack.c.h.b16 %v1824
  %v1920 = vunpack.c.l.b16 %v1825
  %v1921 = vunpack.c.h.b16 %v1825
  %v1922 = vpack.c.b16 %v1862, %v1858
  %v1923 = vpack.c.b16 %v1863, %v1859
  %v1924 = vpack.c.b16 %v1864, %v1860
  %v1925 = vpack.c.b16 %v1865, %v1861
  %v1926 = vpack.c.b16 %v1870, %v1866
  %v1927 = vpack.c.b16 %v1871, %v1867
  %v1928 = vpack.c.b16 %v1872, %v1868
  %v1929 = vpack.c.b16 %v1873, %v1869
  %v1930 = vpack.c.b16 %v1878, %v1874
  %v1931 = vpack.c.b16 %v1879, %v1875
  %v1932 = vpack.c.b16 %v1880, %v1876
  %v1933 = vpack.c.b16 %v1881, %v1877
  %v1934 = vpack.c.b16 %v1886, %v1882
  %v1935 = vpack.c.b16 %v1887, %v1883
  %v1936 = vpack.c.b16 %v1888, %v1884
  %v1937 = vpack.c.b16 %v1889, %v1885
  %v1938 = vpack.c.b16 %v1894, %v1890
  %v1939 = vpack.c.b16 %v1895, %v1891
  %v1940 = vpack.c.b16 %v1896, %v1892
  %v1941 = vpack.c.b16 %v1897, %v1893
  %v1942 = vpack.c.b16 %v1902, %v1898
  %v1943 = vpack.c.b16 %v1903, %v1899
  %v1944 = vpack.c.b16 %v1904, %v1900
  %v1945 = vpack.c.b16 %v1905, %v1901
  %v1946 = vpack.c.b16 %v1910, %v1906
  %v1947 = vpack.c.b16 %v1911, %v1907
  %v1948 = vpack.c.b16 %v1912, %v1908
  %v1949 = vpack.c.b16 %v1913, %v1909
  %v1950 = vpack.c.b16 %v1918, %v1914
  %v1951 = vpack.c.b16 %v1919, %v1915
  %v1952 = vpack.c.b16 %v1920, %v1916
  %v1953 = vpack.c.b16 %v1921, %v1917
  %1986 = vmatprep.subr.bf16.mxu0 %v1923
  %1987 = vmatpush1.bf16.msra.mxu0 %v1922
  %1988 = vmatprep.subr.bf16.mxu0 %v1927
  %1989 = vmatpush1.bf16.msra.mxu0 %v1926
  %1990 = vmatprep.subr.bf16.mxu0 %v1931
  %1991 = vmatpush1.bf16.msra.mxu0 %v1930
  %1992 = vmatprep.subr.bf16.mxu0 %v1935
  %1993 = vmatpush1.bf16.msra.mxu0 %v1934
  %1994 = vmatprep.subr.bf16.mxu0 %v1939
  %1995 = vmatpush1.bf16.msra.mxu0 %v1938
  %1996 = vmatprep.subr.bf16.mxu0 %v1943
  %1997 = vmatpush1.bf16.msra.mxu0 %v1942
  %1998 = vmatprep.subr.bf16.mxu0 %v1947
  %1999 = vmatpush1.bf16.msra.mxu0 %v1946
  %2000 = vmatprep.subr.bf16.mxu0 %v1951
  %2001 = vmatpush1.bf16.msra.mxu0 %v1950
  %2002 = vmatprep.subr.bf16.mxu0 0
  %2003 = vmatpush1.bf16.msra.mxu0 0
  %2004 = vmatprep.subr.bf16.mxu0 0
  %2005 = vmatpush1.bf16.msra.mxu0 0
  %2006 = vmatprep.subr.bf16.mxu0 0
  %2007 = vmatpush1.bf16.msra.mxu0 0
  %2008 = vmatprep.subr.bf16.mxu0 0
  %2009 = vmatpush1.bf16.msra.mxu0 0
  %2010 = vmatprep.subr.bf16.mxu0 0
  %2011 = vmatpush1.bf16.msra.mxu0 0
  %2012 = vmatprep.subr.bf16.mxu0 0
  %2013 = vmatpush1.bf16.msra.mxu0 0
  %2014 = vmatprep.subr.bf16.mxu0 0
  %2015 = vmatpush1.bf16.msra.mxu0 0
  %2016 = vmatprep.subr.bf16.mxu0 0
  %2017 = vmatpush1.bf16.msra.mxu0 0
  %2018 = vmatprep.mubr.bf16.mxu0 0
  %2019 = vmatmul.mubr.bf16.gmra.mrb[0].mxu0 %v1786
  %v2020 = vpop.f32.mrb[0].mxu0
  %v2021 = vadd.f32 0.0, %v2020
  %v2022 = vpop.f32.mrb[0].mxu0
  %v2023 = vadd.f32 0.0, %v2022
  %v2024 = vpop.f32.mrb[0].mxu0
  %v2025 = vpop.f32.mrb[0].mxu0
  %2026 = vdwg.mxu0
  %2027 = vmatprep.subr.bf16.mxu0 %v1925
  %2028 = vmatpush1.bf16.msra.mxu0 %v1924
  %2029 = vmatprep.subr.bf16.mxu0 %v1929
  %2030 = vmatpush1.bf16.msra.mxu0 %v1928
  %2031 = vmatprep.subr.bf16.mxu0 %v1933
  %2032 = vmatpush1.bf16.msra.mxu0 %v1932
  %2033 = vmatprep.subr.bf16.mxu0 %v1937
  %2034 = vmatpush1.bf16.msra.mxu0 %v1936
  %2035 = vmatprep.subr.bf16.mxu0 %v1941
  %2036 = vmatpush1.bf16.msra.mxu0 %v1940
  %2037 = vmatprep.subr.bf16.mxu0 %v1945
  %2038 = vmatpush1.bf16.msra.mxu0 %v1944
  %2039 = vmatprep.subr.bf16.mxu0 %v1949
  %2040 = vmatpush1.bf16.msra.mxu0 %v1948
  %2041 = vmatprep.subr.bf16.mxu0 %v1953
  %2042 = vmatpush1.bf16.msra.mxu0 %v1952
  %2043 = vmatprep.subr.bf16.mxu0 0
  %2044 = vmatpush1.bf16.msra.mxu0 0
  %2045 = vmatprep.subr.bf16.mxu0 0
  %2046 = vmatpush1.bf16.msra.mxu0 0
  %2047 = vmatprep.subr.bf16.mxu0 0
  %2048 = vmatpush1.bf16.msra.mxu0 0
  %2049 = vmatprep.subr.bf16.mxu0 0
  %2050 = vmatpush1.bf16.msra.mxu0 0
  %2051 = vmatprep.subr.bf16.mxu0 0
  %2052 = vmatpush1.bf16.msra.mxu0 0
  %2053 = vmatprep.subr.bf16.mxu0 0
  %2054 = vmatpush1.bf16.msra.mxu0 0
  %2055 = vmatprep.subr.bf16.mxu0 0
  %2056 = vmatpush1.bf16.msra.mxu0 0
  %2057 = vmatprep.subr.bf16.mxu0 0
  %2058 = vmatpush1.bf16.msra.mxu0 0
  %2059 = vmatprep.mubr.bf16.mxu0 0
  %2060 = vmatmul.mubr.bf16.gmra.mrb[0].mxu0 %v1786
  %v2061 = vpop.f32.mrb[0].mxu0
  %v2062 = vadd.f32 0.0, %v2061
  %v2063 = vpop.f32.mrb[0].mxu0
  %v2064 = vadd.f32 0.0, %v2063
  %v2065 = vpop.f32.mrb[0].mxu0
  %v2066 = vpop.f32.mrb[0].mxu0
  %2067 = vdwg.mxu0
  %v2068 = vadd.f32 %v1790, %v2021
  %v2069 = vadd.f32 %v1791, %v2023
  %v2070 = vadd.f32 %v1792, %v2062
  %v2071 = vadd.f32 %v1793, %v2064
  %v2072 = vsub.f32 0.0, %v2068
  %v2073 = vmul.f32 %v2072, 1.442695
  %v2074 = vpow.pop %v2073
  %v2075 = vadd.f32 %v2074, 1.0
  %v2076 = vrcp.pop %v2075
  %v2077 = vsub.f32 0.0, %v2069
  %v2078 = vmul.f32 %v2077, 1.442695
  %v2079 = vpow.pop %v2078
  %v2080 = vadd.f32 %v2079, 1.0
  %v2081 = vrcp.pop %v2080
  %v2082 = vtanh.pop %v2070
  %v2083 = vsub.f32 0.0, %v2071
  %v2084 = vmul.f32 %v2083, 1.442695
  %v2085 = vpow.pop %v2084
  %v2086 = vadd.f32 %v2085, 1.0
  %v2087 = vrcp.pop %v2086
  %v2088 = vmul.f32 %v2081, %v1783
  %v2089 = vmul.f32 %v2076, %v2082
  %v2090 = vadd.f32 %v2088, %v2089
  %v2091 = vtanh.pop %v2090
  %v2092 = vmul.f32 %v2087, %v2091
  %v2093 = vpack.c.bf16 %v2092, %v2092
  %s2094 = scalar_lea.vmem [#allocation3], 16
  %2095 = vst [vmem:[%s2094] sm:$0xf] %v2093
  %s2096 = scalar_lea.vmem [#allocation2], 160
  %v2097 = vld [vmem:[%s2096] sm:$0xff]
  %v2098 = vld [vmem:[%s2096 + $0x8] sm:$0xff]
  %v2099 = vld [vmem:[%s2096 + $0x10] sm:$0xff]
  %v2100 = vld [vmem:[%s2096 + $0x18] sm:$0xff]
  %v2101 = vld [vmem:[%s2] sm:$0xff]
  %v2102 = vld [vmem:[%s2 + $0x8] sm:$0xff]
  %v2103 = vld [vmem:[%s2 + $0x10] sm:$0xff]
  %v2104 = vld [vmem:[%s2 + $0x18] sm:$0xff]
  %v2105 = vld [vmem:[%s2 + $0x20] sm:$0xff]
  %v2106 = vld [vmem:[%s2 + $0x28] sm:$0xff]
  %v2107 = vld [vmem:[%s2 + $0x30] sm:$0xff]
  %v2108 = vld [vmem:[%s2 + $0x38] sm:$0xff]
  %v2109 = vld [vmem:[%s2 + $0x40] sm:$0xff]
  %v2110 = vld [vmem:[%s2 + $0x48] sm:$0xff]
  %v2111 = vld [vmem:[%s2 + $0x50] sm:$0xff]
  %v2112 = vld [vmem:[%s2 + $0x58] sm:$0xff]
  %v2113 = vld [vmem:[%s2 + $0x60] sm:$0xff]
  %v2114 = vld [vmem:[%s2 + $0x68] sm:$0xff]
  %v2115 = vld [vmem:[%s2 + $0x70] sm:$0xff]
  %v2116 = vld [vmem:[%s2 + $0x78] sm:$0xff]
  %v2117 = vld [vmem:[%s2 + $0x80] sm:$0xff]
  %v2118 = vld [vmem:[%s2 + $0x88] sm:$0xff]
  %v2119 = vld [vmem:[%s2 + $0x90] sm:$0xff]
  %v2120 = vld [vmem:[%s2 + $0x98] sm:$0xff]
  %v2121 = vld [vmem:[%s2 + $0xa0] sm:$0xff]
  %v2122 = vld [vmem:[%s2 + $0xa8] sm:$0xff]
  %v2123 = vld [vmem:[%s2 + $0xb0] sm:$0xff]
  %v2124 = vld [vmem:[%s2 + $0xb8] sm:$0xff]
  %v2125 = vld [vmem:[%s2 + $0xc0] sm:$0xff]
  %v2126 = vld [vmem:[%s2 + $0xc8] sm:$0xff]
  %v2127 = vld [vmem:[%s2 + $0xd0] sm:$0xff]
  %v2128 = vld [vmem:[%s2 + $0xd8] sm:$0xff]
  %v2129 = vld [vmem:[%s2 + $0xe0] sm:$0xff]
  %v2130 = vld [vmem:[%s2 + $0xe8] sm:$0xff]
  %v2131 = vld [vmem:[%s2 + $0xf0] sm:$0xff]
  %v2132 = vld [vmem:[%s2 + $0xf8] sm:$0xff]
  %v2165 = vunpack.c.l.b16 %v2101
  %v2166 = vunpack.c.h.b16 %v2101
  %v2167 = vunpack.c.l.b16 %v2102
  %v2168 = vunpack.c.h.b16 %v2102
  %v2169 = vunpack.c.l.b16 %v2103
  %v2170 = vunpack.c.h.b16 %v2103
  %v2171 = vunpack.c.l.b16 %v2104
  %v2172 = vunpack.c.h.b16 %v2104
  %v2173 = vunpack.c.l.b16 %v2105
  %v2174 = vunpack.c.h.b16 %v2105
  %v2175 = vunpack.c.l.b16 %v2106
  %v2176 = vunpack.c.h.b16 %v2106
  %v2177 = vunpack.c.l.b16 %v2107
  %v2178 = vunpack.c.h.b16 %v2107
  %v2179 = vunpack.c.l.b16 %v2108
  %v2180 = vunpack.c.h.b16 %v2108
  %v2181 = vunpack.c.l.b16 %v2109
  %v2182 = vunpack.c.h.b16 %v2109
  %v2183 = vunpack.c.l.b16 %v2110
  %v2184 = vunpack.c.h.b16 %v2110
  %v2185 = vunpack.c.l.b16 %v2111
  %v2186 = vunpack.c.h.b16 %v2111
  %v2187 = vunpack.c.l.b16 %v2112
  %v2188 = vunpack.c.h.b16 %v2112
  %v2189 = vunpack.c.l.b16 %v2113
  %v2190 = vunpack.c.h.b16 %v2113
  %v2191 = vunpack.c.l.b16 %v2114
  %v2192 = vunpack.c.h.b16 %v2114
  %v2193 = vunpack.c.l.b16 %v2115
  %v2194 = vunpack.c.h.b16 %v2115
  %v2195 = vunpack.c.l.b16 %v2116
  %v2196 = vunpack.c.h.b16 %v2116
  %v2197 = vunpack.c.l.b16 %v2117
  %v2198 = vunpack.c.h.b16 %v2117
  %v2199 = vunpack.c.l.b16 %v2118
  %v2200 = vunpack.c.h.b16 %v2118
  %v2201 = vunpack.c.l.b16 %v2119
  %v2202 = vunpack.c.h.b16 %v2119
  %v2203 = vunpack.c.l.b16 %v2120
  %v2204 = vunpack.c.h.b16 %v2120
  %v2205 = vunpack.c.l.b16 %v2121
  %v2206 = vunpack.c.h.b16 %v2121
  %v2207 = vunpack.c.l.b16 %v2122
  %v2208 = vunpack.c.h.b16 %v2122
  %v2209 = vunpack.c.l.b16 %v2123
  %v2210 = vunpack.c.h.b16 %v2123
  %v2211 = vunpack.c.l.b16 %v2124
  %v2212 = vunpack.c.h.b16 %v2124
  %v2213 = vunpack.c.l.b16 %v2125
  %v2214 = vunpack.c.h.b16 %v2125
  %v2215 = vunpack.c.l.b16 %v2126
  %v2216 = vunpack.c.h.b16 %v2126
  %v2217 = vunpack.c.l.b16 %v2127
  %v2218 = vunpack.c.h.b16 %v2127
  %v2219 = vunpack.c.l.b16 %v2128
  %v2220 = vunpack.c.h.b16 %v2128
  %v2221 = vunpack.c.l.b16 %v2129
  %v2222 = vunpack.c.h.b16 %v2129
  %v2223 = vunpack.c.l.b16 %v2130
  %v2224 = vunpack.c.h.b16 %v2130
  %v2225 = vunpack.c.l.b16 %v2131
  %v2226 = vunpack.c.h.b16 %v2131
  %v2227 = vunpack.c.l.b16 %v2132
  %v2228 = vunpack.c.h.b16 %v2132
  %v2229 = vpack.c.b16 %v2169, %v2165
  %v2230 = vpack.c.b16 %v2170, %v2166
  %v2231 = vpack.c.b16 %v2171, %v2167
  %v2232 = vpack.c.b16 %v2172, %v2168
  %v2233 = vpack.c.b16 %v2177, %v2173
  %v2234 = vpack.c.b16 %v2178, %v2174
  %v2235 = vpack.c.b16 %v2179, %v2175
  %v2236 = vpack.c.b16 %v2180, %v2176
  %v2237 = vpack.c.b16 %v2185, %v2181
  %v2238 = vpack.c.b16 %v2186, %v2182
  %v2239 = vpack.c.b16 %v2187, %v2183
  %v2240 = vpack.c.b16 %v2188, %v2184
  %v2241 = vpack.c.b16 %v2193, %v2189
  %v2242 = vpack.c.b16 %v2194, %v2190
  %v2243 = vpack.c.b16 %v2195, %v2191
  %v2244 = vpack.c.b16 %v2196, %v2192
  %v2245 = vpack.c.b16 %v2201, %v2197
  %v2246 = vpack.c.b16 %v2202, %v2198
  %v2247 = vpack.c.b16 %v2203, %v2199
  %v2248 = vpack.c.b16 %v2204, %v2200
  %v2249 = vpack.c.b16 %v2209, %v2205
  %v2250 = vpack.c.b16 %v2210, %v2206
  %v2251 = vpack.c.b16 %v2211, %v2207
  %v2252 = vpack.c.b16 %v2212, %v2208
  %v2253 = vpack.c.b16 %v2217, %v2213
  %v2254 = vpack.c.b16 %v2218, %v2214
  %v2255 = vpack.c.b16 %v2219, %v2215
  %v2256 = vpack.c.b16 %v2220, %v2216
  %v2257 = vpack.c.b16 %v2225, %v2221
  %v2258 = vpack.c.b16 %v2226, %v2222
  %v2259 = vpack.c.b16 %v2227, %v2223
  %v2260 = vpack.c.b16 %v2228, %v2224
  %2293 = vmatprep.subr.bf16.mxu0 %v2230
  %2294 = vmatpush1.bf16.msra.mxu0 %v2229
  %2295 = vmatprep.subr.bf16.mxu0 %v2234
  %2296 = vmatpush1.bf16.msra.mxu0 %v2233
  %2297 = vmatprep.subr.bf16.mxu0 %v2238
  %2298 = vmatpush1.bf16.msra.mxu0 %v2237
  %2299 = vmatprep.subr.bf16.mxu0 %v2242
  %2300 = vmatpush1.bf16.msra.mxu0 %v2241
  %2301 = vmatprep.subr.bf16.mxu0 %v2246
  %2302 = vmatpush1.bf16.msra.mxu0 %v2245
  %2303 = vmatprep.subr.bf16.mxu0 %v2250
  %2304 = vmatpush1.bf16.msra.mxu0 %v2249
  %2305 = vmatprep.subr.bf16.mxu0 %v2254
  %2306 = vmatpush1.bf16.msra.mxu0 %v2253
  %2307 = vmatprep.subr.bf16.mxu0 %v2258
  %2308 = vmatpush1.bf16.msra.mxu0 %v2257
  %2309 = vmatprep.subr.bf16.mxu0 0
  %2310 = vmatpush1.bf16.msra.mxu0 0
  %2311 = vmatprep.subr.bf16.mxu0 0
  %2312 = vmatpush1.bf16.msra.mxu0 0
  %2313 = vmatprep.subr.bf16.mxu0 0
  %2314 = vmatpush1.bf16.msra.mxu0 0
  %2315 = vmatprep.subr.bf16.mxu0 0
  %2316 = vmatpush1.bf16.msra.mxu0 0
  %2317 = vmatprep.subr.bf16.mxu0 0
  %2318 = vmatpush1.bf16.msra.mxu0 0
  %2319 = vmatprep.subr.bf16.mxu0 0
  %2320 = vmatpush1.bf16.msra.mxu0 0
  %2321 = vmatprep.subr.bf16.mxu0 0
  %2322 = vmatpush1.bf16.msra.mxu0 0
  %2323 = vmatprep.subr.bf16.mxu0 0
  %2324 = vmatpush1.bf16.msra.mxu0 0
  %2325 = vmatprep.mubr.bf16.mxu0 0
  %2326 = vmatmul.mubr.bf16.gmra.mrb[0].mxu0 %v2093
  %v2327 = vpop.f32.mrb[0].mxu0
  %v2328 = vadd.f32 0.0, %v2327
  %v2329 = vpop.f32.mrb[0].mxu0
  %v2330 = vadd.f32 0.0, %v2329
  %v2331 = vpop.f32.mrb[0].mxu0
  %v2332 = vpop.f32.mrb[0].mxu0
  %2333 = vdwg.mxu0
  %2334 = vmatprep.subr.bf16.mxu0 %v2232
  %2335 = vmatpush1.bf16.msra.mxu0 %v2231
  %2336 = vmatprep.subr.bf16.mxu0 %v2236
  %2337 = vmatpush1.bf16.msra.mxu0 %v2235
  %2338 = vmatprep.subr.bf16.mxu0 %v2240
  %2339 = vmatpush1.bf16.msra.mxu0 %v2239
  %2340 = vmatprep.subr.bf16.mxu0 %v2244
  %2341 = vmatpush1.bf16.msra.mxu0 %v2243
  %2342 = vmatprep.subr.bf16.mxu0 %v2248
  %2343 = vmatpush1.bf16.msra.mxu0 %v2247
  %2344 = vmatprep.subr.bf16.mxu0 %v2252
  %2345 = vmatpush1.bf16.msra.mxu0 %v2251
  %2346 = vmatprep.subr.bf16.mxu0 %v2256
  %2347 = vmatpush1.bf16.msra.mxu0 %v2255
  %2348 = vmatprep.subr.bf16.mxu0 %v2260
  %2349 = vmatpush1.bf16.msra.mxu0 %v2259
  %2350 = vmatprep.subr.bf16.mxu0 0
  %2351 = vmatpush1.bf16.msra.mxu0 0
  %2352 = vmatprep.subr.bf16.mxu0 0
  %2353 = vmatpush1.bf16.msra.mxu0 0
  %2354 = vmatprep.subr.bf16.mxu0 0
  %2355 = vmatpush1.bf16.msra.mxu0 0
  %2356 = vmatprep.subr.bf16.mxu0 0
  %2357 = vmatpush1.bf16.msra.mxu0 0
  %2358 = vmatprep.subr.bf16.mxu0 0
  %2359 = vmatpush1.bf16.msra.mxu0 0
  %2360 = vmatprep.subr.bf16.mxu0 0
  %2361 = vmatpush1.bf16.msra.mxu0 0
  %2362 = vmatprep.subr.bf16.mxu0 0
  %2363 = vmatpush1.bf16.msra.mxu0 0
  %2364 = vmatprep.subr.bf16.mxu0 0
  %2365 = vmatpush1.bf16.msra.mxu0 0
  %2366 = vmatprep.mubr.bf16.mxu0 0
  %2367 = vmatmul.mubr.bf16.gmra.mrb[0].mxu0 %v2093
  %v2368 = vpop.f32.mrb[0].mxu0
  %v2369 = vadd.f32 0.0, %v2368
  %v2370 = vpop.f32.mrb[0].mxu0
  %v2371 = vadd.f32 0.0, %v2370
  %v2372 = vpop.f32.mrb[0].mxu0
  %v2373 = vpop.f32.mrb[0].mxu0
  %2374 = vdwg.mxu0
  %v2375 = vadd.f32 %v2097, %v2328
  %v2376 = vadd.f32 %v2098, %v2330
  %v2377 = vadd.f32 %v2099, %v2369
  %v2378 = vadd.f32 %v2100, %v2371
  %v2379 = vsub.f32 0.0, %v2375
  %v2380 = vmul.f32 %v2379, 1.442695
  %v2381 = vpow.pop %v2380
  %v2382 = vadd.f32 %v2381, 1.0
  %v2383 = vrcp.pop %v2382
  %v2384 = vsub.f32 0.0, %v2376
  %v2385 = vmul.f32 %v2384, 1.442695
  %v2386 = vpow.pop %v2385
  %v2387 = vadd.f32 %v2386, 1.0
  %v2388 = vrcp.pop %v2387
  %v2389 = vtanh.pop %v2377
  %v2390 = vsub.f32 0.0, %v2378
  %v2391 = vmul.f32 %v2390, 1.442695
  %v2392 = vpow.pop %v2391
  %v2393 = vadd.f32 %v2392, 1.0
  %v2394 = vrcp.pop %v2393
  %v2395 = vmul.f32 %v2388, %v2090
  %v2396 = vmul.f32 %v2383, %v2389
  %v2397 = vadd.f32 %v2395, %v2396
  %v2398 = vtanh.pop %v2397
  %v2399 = vmul.f32 %v2394, %v2398
  %v2400 = vpack.c.bf16 %v2399, %v2399
  %s2401 = scalar_lea.vmem [#allocation3], 20
  %2402 = vst [vmem:[%s2401] sm:$0xf] %v2400
  %s2403 = scalar_lea.vmem [#allocation2], 192
  %v2404 = vld [vmem:[%s2403] sm:$0xff]
  %v2405 = vld [vmem:[%s2403 + $0x8] sm:$0xff]
  %v2406 = vld [vmem:[%s2403 + $0x10] sm:$0xff]
  %v2407 = vld [vmem:[%s2403 + $0x18] sm:$0xff]
  %v2408 = vld [vmem:[%s2] sm:$0xff]
  %v2409 = vld [vmem:[%s2 + $0x8] sm:$0xff]
  %v2410 = vld [vmem:[%s2 + $0x10] sm:$0xff]
  %v2411 = vld [vmem:[%s2 + $0x18] sm:$0xff]
  %v2412 = vld [vmem:[%s2 + $0x20] sm:$0xff]
  %v2413 = vld [vmem:[%s2 + $0x28] sm:$0xff]
  %v2414 = vld [vmem:[%s2 + $0x30] sm:$0xff]
  %v2415 = vld [vmem:[%s2 + $0x38] sm:$0xff]
  %v2416 = vld [vmem:[%s2 + $0x40] sm:$0xff]
  %v2417 = vld [vmem:[%s2 + $0x48] sm:$0xff]
  %v2418 = vld [vmem:[%s2 + $0x50] sm:$0xff]
  %v2419 = vld [vmem:[%s2 + $0x58] sm:$0xff]
  %v2420 = vld [vmem:[%s2 + $0x60] sm:$0xff]
  %v2421 = vld [vmem:[%s2 + $0x68] sm:$0xff]
  %v2422 = vld [vmem:[%s2 + $0x70] sm:$0xff]
  %v2423 = vld [vmem:[%s2 + $0x78] sm:$0xff]
  %v2424 = vld [vmem:[%s2 + $0x80] sm:$0xff]
  %v2425 = vld [vmem:[%s2 + $0x88] sm:$0xff]
  %v2426 = vld [vmem:[%s2 + $0x90] sm:$0xff]
  %v2427 = vld [vmem:[%s2 + $0x98] sm:$0xff]
  %v2428 = vld [vmem:[%s2 + $0xa0] sm:$0xff]
  %v2429 = vld [vmem:[%s2 + $0xa8] sm:$0xff]
  %v2430 = vld [vmem:[%s2 + $0xb0] sm:$0xff]
  %v2431 = vld [vmem:[%s2 + $0xb8] sm:$0xff]
  %v2432 = vld [vmem:[%s2 + $0xc0] sm:$0xff]
  %v2433 = vld [vmem:[%s2 + $0xc8] sm:$0xff]
  %v2434 = vld [vmem:[%s2 + $0xd0] sm:$0xff]
  %v2435 = vld [vmem:[%s2 + $0xd8] sm:$0xff]
  %v2436 = vld [vmem:[%s2 + $0xe0] sm:$0xff]
  %v2437 = vld [vmem:[%s2 + $0xe8] sm:$0xff]
  %v2438 = vld [vmem:[%s2 + $0xf0] sm:$0xff]
  %v2439 = vld [vmem:[%s2 + $0xf8] sm:$0xff]
  %v2472 = vunpack.c.l.b16 %v2408
  %v2473 = vunpack.c.h.b16 %v2408
  %v2474 = vunpack.c.l.b16 %v2409
  %v2475 = vunpack.c.h.b16 %v2409
  %v2476 = vunpack.c.l.b16 %v2410
  %v2477 = vunpack.c.h.b16 %v2410
  %v2478 = vunpack.c.l.b16 %v2411
  %v2479 = vunpack.c.h.b16 %v2411
  %v2480 = vunpack.c.l.b16 %v2412
  %v2481 = vunpack.c.h.b16 %v2412
  %v2482 = vunpack.c.l.b16 %v2413
  %v2483 = vunpack.c.h.b16 %v2413
  %v2484 = vunpack.c.l.b16 %v2414
  %v2485 = vunpack.c.h.b16 %v2414
  %v2486 = vunpack.c.l.b16 %v2415
  %v2487 = vunpack.c.h.b16 %v2415
  %v2488 = vunpack.c.l.b16 %v2416
  %v2489 = vunpack.c.h.b16 %v2416
  %v2490 = vunpack.c.l.b16 %v2417
  %v2491 = vunpack.c.h.b16 %v2417
  %v2492 = vunpack.c.l.b16 %v2418
  %v2493 = vunpack.c.h.b16 %v2418
  %v2494 = vunpack.c.l.b16 %v2419
  %v2495 = vunpack.c.h.b16 %v2419
  %v2496 = vunpack.c.l.b16 %v2420
  %v2497 = vunpack.c.h.b16 %v2420
  %v2498 = vunpack.c.l.b16 %v2421
  %v2499 = vunpack.c.h.b16 %v2421
  %v2500 = vunpack.c.l.b16 %v2422
  %v2501 = vunpack.c.h.b16 %v2422
  %v2502 = vunpack.c.l.b16 %v2423
  %v2503 = vunpack.c.h.b16 %v2423
  %v2504 = vunpack.c.l.b16 %v2424
  %v2505 = vunpack.c.h.b16 %v2424
  %v2506 = vunpack.c.l.b16 %v2425
  %v2507 = vunpack.c.h.b16 %v2425
  %v2508 = vunpack.c.l.b16 %v2426
  %v2509 = vunpack.c.h.b16 %v2426
  %v2510 = vunpack.c.l.b16 %v2427
  %v2511 = vunpack.c.h.b16 %v2427
  %v2512 = vunpack.c.l.b16 %v2428
  %v2513 = vunpack.c.h.b16 %v2428
  %v2514 = vunpack.c.l.b16 %v2429
  %v2515 = vunpack.c.h.b16 %v2429
  %v2516 = vunpack.c.l.b16 %v2430
  %v2517 = vunpack.c.h.b16 %v2430
  %v2518 = vunpack.c.l.b16 %v2431
  %v2519 = vunpack.c.h.b16 %v2431
  %v2520 = vunpack.c.l.b16 %v2432
  %v2521 = vunpack.c.h.b16 %v2432
  %v2522 = vunpack.c.l.b16 %v2433
  %v2523 = vunpack.c.h.b16 %v2433
  %v2524 = vunpack.c.l.b16 %v2434
  %v2525 = vunpack.c.h.b16 %v2434
  %v2526 = vunpack.c.l.b16 %v2435
  %v2527 = vunpack.c.h.b16 %v2435
  %v2528 = vunpack.c.l.b16 %v2436
  %v2529 = vunpack.c.h.b16 %v2436
  %v2530 = vunpack.c.l.b16 %v2437
  %v2531 = vunpack.c.h.b16 %v2437
  %v2532 = vunpack.c.l.b16 %v2438
  %v2533 = vunpack.c.h.b16 %v2438
  %v2534 = vunpack.c.l.b16 %v2439
  %v2535 = vunpack.c.h.b16 %v2439
  %v2536 = vpack.c.b16 %v2476, %v2472
  %v2537 = vpack.c.b16 %v2477, %v2473
  %v2538 = vpack.c.b16 %v2478, %v2474
  %v2539 = vpack.c.b16 %v2479, %v2475
  %v2540 = vpack.c.b16 %v2484, %v2480
  %v2541 = vpack.c.b16 %v2485, %v2481
  %v2542 = vpack.c.b16 %v2486, %v2482
  %v2543 = vpack.c.b16 %v2487, %v2483
  %v2544 = vpack.c.b16 %v2492, %v2488
  %v2545 = vpack.c.b16 %v2493, %v2489
  %v2546 = vpack.c.b16 %v2494, %v2490
  %v2547 = vpack.c.b16 %v2495, %v2491
  %v2548 = vpack.c.b16 %v2500, %v2496
  %v2549 = vpack.c.b16 %v2501, %v2497
  %v2550 = vpack.c.b16 %v2502, %v2498
  %v2551 = vpack.c.b16 %v2503, %v2499
  %v2552 = vpack.c.b16 %v2508, %v2504
  %v2553 = vpack.c.b16 %v2509, %v2505
  %v2554 = vpack.c.b16 %v2510, %v2506
  %v2555 = vpack.c.b16 %v2511, %v2507
  %v2556 = vpack.c.b16 %v2516, %v2512
  %v2557 = vpack.c.b16 %v2517, %v2513
  %v2558 = vpack.c.b16 %v2518, %v2514
  %v2559 = vpack.c.b16 %v2519, %v2515
  %v2560 = vpack.c.b16 %v2524, %v2520
  %v2561 = vpack.c.b16 %v2525, %v2521
  %v2562 = vpack.c.b16 %v2526, %v2522
  %v2563 = vpack.c.b16 %v2527, %v2523
  %v2564 = vpack.c.b16 %v2532, %v2528
  %v2565 = vpack.c.b16 %v2533, %v2529
  %v2566 = vpack.c.b16 %v2534, %v2530
  %v2567 = vpack.c.b16 %v2535, %v2531
  %2600 = vmatprep.subr.bf16.mxu0 %v2537
  %2601 = vmatpush1.bf16.msra.mxu0 %v2536
  %2602 = vmatprep.subr.bf16.mxu0 %v2541
  %2603 = vmatpush1.bf16.msra.mxu0 %v2540
  %2604 = vmatprep.subr.bf16.mxu0 %v2545
  %2605 = vmatpush1.bf16.msra.mxu0 %v2544
  %2606 = vmatprep.subr.bf16.mxu0 %v2549
  %2607 = vmatpush1.bf16.msra.mxu0 %v2548
  %2608 = vmatprep.subr.bf16.mxu0 %v2553
  %2609 = vmatpush1.bf16.msra.mxu0 %v2552
  %2610 = vmatprep.subr.bf16.mxu0 %v2557
  %2611 = vmatpush1.bf16.msra.mxu0 %v2556
  %2612 = vmatprep.subr.bf16.mxu0 %v2561
  %2613 = vmatpush1.bf16.msra.mxu0 %v2560
  %2614 = vmatprep.subr.bf16.mxu0 %v2565
  %2615 = vmatpush1.bf16.msra.mxu0 %v2564
  %2616 = vmatprep.subr.bf16.mxu0 0
  %2617 = vmatpush1.bf16.msra.mxu0 0
  %2618 = vmatprep.subr.bf16.mxu0 0
  %2619 = vmatpush1.bf16.msra.mxu0 0
  %2620 = vmatprep.subr.bf16.mxu0 0
  %2621 = vmatpush1.bf16.msra.mxu0 0
  %2622 = vmatprep.subr.bf16.mxu0 0
  %2623 = vmatpush1.bf16.msra.mxu0 0
  %2624 = vmatprep.subr.bf16.mxu0 0
  %2625 = vmatpush1.bf16.msra.mxu0 0
  %2626 = vmatprep.subr.bf16.mxu0 0
  %2627 = vmatpush1.bf16.msra.mxu0 0
  %2628 = vmatprep.subr.bf16.mxu0 0
  %2629 = vmatpush1.bf16.msra.mxu0 0
  %2630 = vmatprep.subr.bf16.mxu0 0
  %2631 = vmatpush1.bf16.msra.mxu0 0
  %2632 = vmatprep.mubr.bf16.mxu0 0
  %2633 = vmatmul.mubr.bf16.gmra.mrb[0].mxu0 %v2400
  %v2634 = vpop.f32.mrb[0].mxu0
  %v2635 = vadd.f32 0.0, %v2634
  %v2636 = vpop.f32.mrb[0].mxu0
  %v2637 = vadd.f32 0.0, %v2636
  %v2638 = vpop.f32.mrb[0].mxu0
  %v2639 = vpop.f32.mrb[0].mxu0
  %2640 = vdwg.mxu0
  %2641 = vmatprep.subr.bf16.mxu0 %v2539
  %2642 = vmatpush1.bf16.msra.mxu0 %v2538
  %2643 = vmatprep.subr.bf16.mxu0 %v2543
  %2644 = vmatpush1.bf16.msra.mxu0 %v2542
  %2645 = vmatprep.subr.bf16.mxu0 %v2547
  %2646 = vmatpush1.bf16.msra.mxu0 %v2546
  %2647 = vmatprep.subr.bf16.mxu0 %v2551
  %2648 = vmatpush1.bf16.msra.mxu0 %v2550
  %2649 = vmatprep.subr.bf16.mxu0 %v2555
  %2650 = vmatpush1.bf16.msra.mxu0 %v2554
  %2651 = vmatprep.subr.bf16.mxu0 %v2559
  %2652 = vmatpush1.bf16.msra.mxu0 %v2558
  %2653 = vmatprep.subr.bf16.mxu0 %v2563
  %2654 = vmatpush1.bf16.msra.mxu0 %v2562
  %2655 = vmatprep.subr.bf16.mxu0 %v2567
  %2656 = vmatpush1.bf16.msra.mxu0 %v2566
  %2657 = vmatprep.subr.bf16.mxu0 0
  %2658 = vmatpush1.bf16.msra.mxu0 0
  %2659 = vmatprep.subr.bf16.mxu0 0
  %2660 = vmatpush1.bf16.msra.mxu0 0
  %2661 = vmatprep.subr.bf16.mxu0 0
  %2662 = vmatpush1.bf16.msra.mxu0 0
  %2663 = vmatprep.subr.bf16.mxu0 0
  %2664 = vmatpush1.bf16.msra.mxu0 0
  %2665 = vmatprep.subr.bf16.mxu0 0
  %2666 = vmatpush1.bf16.msra.mxu0 0
  %2667 = vmatprep.subr.bf16.mxu0 0
  %2668 = vmatpush1.bf16.msra.mxu0 0
  %2669 = vmatprep.subr.bf16.mxu0 0
  %2670 = vmatpush1.bf16.msra.mxu0 0
  %2671 = vmatprep.subr.bf16.mxu0 0
  %2672 = vmatpush1.bf16.msra.mxu0 0
  %2673 = vmatprep.mubr.bf16.mxu0 0
  %2674 = vmatmul.mubr.bf16.gmra.mrb[0].mxu0 %v2400
  %v2675 = vpop.f32.mrb[0].mxu0
  %v2676 = vadd.f32 0.0, %v2675
  %v2677 = vpop.f32.mrb[0].mxu0
  %v2678 = vadd.f32 0.0, %v2677
  %v2679 = vpop.f32.mrb[0].mxu0
  %v2680 = vpop.f32.mrb[0].mxu0
  %2681 = vdwg.mxu0
  %v2682 = vadd.f32 %v2404, %v2635
  %v2683 = vadd.f32 %v2405, %v2637
  %v2684 = vadd.f32 %v2406, %v2676
  %v2685 = vadd.f32 %v2407, %v2678
  %v2686 = vsub.f32 0.0, %v2682
  %v2687 = vmul.f32 %v2686, 1.442695
  %v2688 = vpow.pop %v2687
  %v2689 = vadd.f32 %v2688, 1.0
  %v2690 = vrcp.pop %v2689
  %v2691 = vsub.f32 0.0, %v2683
  %v2692 = vmul.f32 %v2691, 1.442695
  %v2693 = vpow.pop %v2692
  %v2694 = vadd.f32 %v2693, 1.0
  %v2695 = vrcp.pop %v2694
  %v2696 = vtanh.pop %v2684
  %v2697 = vsub.f32 0.0, %v2685
  %v2698 = vmul.f32 %v2697, 1.442695
  %v2699 = vpow.pop %v2698
  %v2700 = vadd.f32 %v2699, 1.0
  %v2701 = vrcp.pop %v2700
  %v2702 = vmul.f32 %v2695, %v2397
  %v2703 = vmul.f32 %v2690, %v2696
  %v2704 = vadd.f32 %v2702, %v2703
  %v2705 = vtanh.pop %v2704
  %v2706 = vmul.f32 %v2701, %v2705
  %v2707 = vpack.c.bf16 %v2706, %v2706
  %s2708 = scalar_lea.vmem [#allocation3], 24
  %2709 = vst [vmem:[%s2708] sm:$0xf] %v2707
  %s2710 = scalar_lea.vmem [#allocation2], 224
  %v2711 = vld [vmem:[%s2710] sm:$0xff]
  %v2712 = vld [vmem:[%s2710 + $0x8] sm:$0xff]
  %v2713 = vld [vmem:[%s2710 + $0x10] sm:$0xff]
  %v2714 = vld [vmem:[%s2710 + $0x18] sm:$0xff]
  %v2715 = vld [vmem:[%s2] sm:$0xff]
  %v2716 = vld [vmem:[%s2 + $0x8] sm:$0xff]
  %v2717 = vld [vmem:[%s2 + $0x10] sm:$0xff]
  %v2718 = vld [vmem:[%s2 + $0x18] sm:$0xff]
  %v2719 = vld [vmem:[%s2 + $0x20] sm:$0xff]
  %v2720 = vld [vmem:[%s2 + $0x28] sm:$0xff]
  %v2721 = vld [vmem:[%s2 + $0x30] sm:$0xff]
  %v2722 = vld [vmem:[%s2 + $0x38] sm:$0xff]
  %v2723 = vld [vmem:[%s2 + $0x40] sm:$0xff]
  %v2724 = vld [vmem:[%s2 + $0x48] sm:$0xff]
  %v2725 = vld [vmem:[%s2 + $0x50] sm:$0xff]
  %v2726 = vld [vmem:[%s2 + $0x58] sm:$0xff]
  %v2727 = vld [vmem:[%s2 + $0x60] sm:$0xff]
  %v2728 = vld [vmem:[%s2 + $0x68] sm:$0xff]
  %v2729 = vld [vmem:[%s2 + $0x70] sm:$0xff]
  %v2730 = vld [vmem:[%s2 + $0x78] sm:$0xff]
  %v2731 = vld [vmem:[%s2 + $0x80] sm:$0xff]
  %v2732 = vld [vmem:[%s2 + $0x88] sm:$0xff]
  %v2733 = vld [vmem:[%s2 + $0x90] sm:$0xff]
  %v2734 = vld [vmem:[%s2 + $0x98] sm:$0xff]
  %v2735 = vld [vmem:[%s2 + $0xa0] sm:$0xff]
  %v2736 = vld [vmem:[%s2 + $0xa8] sm:$0xff]
  %v2737 = vld [vmem:[%s2 + $0xb0] sm:$0xff]
  %v2738 = vld [vmem:[%s2 + $0xb8] sm:$0xff]
  %v2739 = vld [vmem:[%s2 + $0xc0] sm:$0xff]
  %v2740 = vld [vmem:[%s2 + $0xc8] sm:$0xff]
  %v2741 = vld [vmem:[%s2 + $0xd0] sm:$0xff]
  %v2742 = vld [vmem:[%s2 + $0xd8] sm:$0xff]
  %v2743 = vld [vmem:[%s2 + $0xe0] sm:$0xff]
  %v2744 = vld [vmem:[%s2 + $0xe8] sm:$0xff]
  %v2745 = vld [vmem:[%s2 + $0xf0] sm:$0xff]
  %v2746 = vld [vmem:[%s2 + $0xf8] sm:$0xff]
  %v2779 = vunpack.c.l.b16 %v2715
  %v2780 = vunpack.c.h.b16 %v2715
  %v2781 = vunpack.c.l.b16 %v2716
  %v2782 = vunpack.c.h.b16 %v2716
  %v2783 = vunpack.c.l.b16 %v2717
  %v2784 = vunpack.c.h.b16 %v2717
  %v2785 = vunpack.c.l.b16 %v2718
  %v2786 = vunpack.c.h.b16 %v2718
  %v2787 = vunpack.c.l.b16 %v2719
  %v2788 = vunpack.c.h.b16 %v2719
  %v2789 = vunpack.c.l.b16 %v2720
  %v2790 = vunpack.c.h.b16 %v2720
  %v2791 = vunpack.c.l.b16 %v2721
  %v2792 = vunpack.c.h.b16 %v2721
  %v2793 = vunpack.c.l.b16 %v2722
  %v2794 = vunpack.c.h.b16 %v2722
  %v2795 = vunpack.c.l.b16 %v2723
  %v2796 = vunpack.c.h.b16 %v2723
  %v2797 = vunpack.c.l.b16 %v2724
  %v2798 = vunpack.c.h.b16 %v2724
  %v2799 = vunpack.c.l.b16 %v2725
  %v2800 = vunpack.c.h.b16 %v2725
  %v2801 = vunpack.c.l.b16 %v2726
  %v2802 = vunpack.c.h.b16 %v2726
  %v2803 = vunpack.c.l.b16 %v2727
  %v2804 = vunpack.c.h.b16 %v2727
  %v2805 = vunpack.c.l.b16 %v2728
  %v2806 = vunpack.c.h.b16 %v2728
  %v2807 = vunpack.c.l.b16 %v2729
  %v2808 = vunpack.c.h.b16 %v2729
  %v2809 = vunpack.c.l.b16 %v2730
  %v2810 = vunpack.c.h.b16 %v2730
  %v2811 = vunpack.c.l.b16 %v2731
  %v2812 = vunpack.c.h.b16 %v2731
  %v2813 = vunpack.c.l.b16 %v2732
  %v2814 = vunpack.c.h.b16 %v2732
  %v2815 = vunpack.c.l.b16 %v2733
  %v2816 = vunpack.c.h.b16 %v2733
  %v2817 = vunpack.c.l.b16 %v2734
  %v2818 = vunpack.c.h.b16 %v2734
  %v2819 = vunpack.c.l.b16 %v2735
  %v2820 = vunpack.c.h.b16 %v2735
  %v2821 = vunpack.c.l.b16 %v2736
  %v2822 = vunpack.c.h.b16 %v2736
  %v2823 = vunpack.c.l.b16 %v2737
  %v2824 = vunpack.c.h.b16 %v2737
  %v2825 = vunpack.c.l.b16 %v2738
  %v2826 = vunpack.c.h.b16 %v2738
  %v2827 = vunpack.c.l.b16 %v2739
  %v2828 = vunpack.c.h.b16 %v2739
  %v2829 = vunpack.c.l.b16 %v2740
  %v2830 = vunpack.c.h.b16 %v2740
  %v2831 = vunpack.c.l.b16 %v2741
  %v2832 = vunpack.c.h.b16 %v2741
  %v2833 = vunpack.c.l.b16 %v2742
  %v2834 = vunpack.c.h.b16 %v2742
  %v2835 = vunpack.c.l.b16 %v2743
  %v2836 = vunpack.c.h.b16 %v2743
  %v2837 = vunpack.c.l.b16 %v2744
  %v2838 = vunpack.c.h.b16 %v2744
  %v2839 = vunpack.c.l.b16 %v2745
  %v2840 = vunpack.c.h.b16 %v2745
  %v2841 = vunpack.c.l.b16 %v2746
  %v2842 = vunpack.c.h.b16 %v2746
  %v2843 = vpack.c.b16 %v2783, %v2779
  %v2844 = vpack.c.b16 %v2784, %v2780
  %v2845 = vpack.c.b16 %v2785, %v2781
  %v2846 = vpack.c.b16 %v2786, %v2782
  %v2847 = vpack.c.b16 %v2791, %v2787
  %v2848 = vpack.c.b16 %v2792, %v2788
  %v2849 = vpack.c.b16 %v2793, %v2789
  %v2850 = vpack.c.b16 %v2794, %v2790
  %v2851 = vpack.c.b16 %v2799, %v2795
  %v2852 = vpack.c.b16 %v2800, %v2796
  %v2853 = vpack.c.b16 %v2801, %v2797
  %v2854 = vpack.c.b16 %v2802, %v2798
  %v2855 = vpack.c.b16 %v2807, %v2803
  %v2856 = vpack.c.b16 %v2808, %v2804
  %v2857 = vpack.c.b16 %v2809, %v2805
  %v2858 = vpack.c.b16 %v2810, %v2806
  %v2859 = vpack.c.b16 %v2815, %v2811
  %v2860 = vpack.c.b16 %v2816, %v2812
  %v2861 = vpack.c.b16 %v2817, %v2813
  %v2862 = vpack.c.b16 %v2818, %v2814
  %v2863 = vpack.c.b16 %v2823, %v2819
  %v2864 = vpack.c.b16 %v2824, %v2820
  %v2865 = vpack.c.b16 %v2825, %v2821
  %v2866 = vpack.c.b16 %v2826, %v2822
  %v2867 = vpack.c.b16 %v2831, %v2827
  %v2868 = vpack.c.b16 %v2832, %v2828
  %v2869 = vpack.c.b16 %v2833, %v2829
  %v2870 = vpack.c.b16 %v2834, %v2830
  %v2871 = vpack.c.b16 %v2839, %v2835
  %v2872 = vpack.c.b16 %v2840, %v2836
  %v2873 = vpack.c.b16 %v2841, %v2837
  %v2874 = vpack.c.b16 %v2842, %v2838
  %2907 = vmatprep.subr.bf16.mxu0 %v2844
  %2908 = vmatpush1.bf16.msra.mxu0 %v2843
  %2909 = vmatprep.subr.bf16.mxu0 %v2848
  %2910 = vmatpush1.bf16.msra.mxu0 %v2847
  %2911 = vmatprep.subr.bf16.mxu0 %v2852
  %2912 = vmatpush1.bf16.msra.mxu0 %v2851
  %2913 = vmatprep.subr.bf16.mxu0 %v2856
  %2914 = vmatpush1.bf16.msra.mxu0 %v2855
  %2915 = vmatprep.subr.bf16.mxu0 %v2860
  %2916 = vmatpush1.bf16.msra.mxu0 %v2859
  %2917 = vmatprep.subr.bf16.mxu0 %v2864
  %2918 = vmatpush1.bf16.msra.mxu0 %v2863
  %2919 = vmatprep.subr.bf16.mxu0 %v2868
  %2920 = vmatpush1.bf16.msra.mxu0 %v2867
  %2921 = vmatprep.subr.bf16.mxu0 %v2872
  %2922 = vmatpush1.bf16.msra.mxu0 %v2871
  %2923 = vmatprep.subr.bf16.mxu0 0
  %2924 = vmatpush1.bf16.msra.mxu0 0
  %2925 = vmatprep.subr.bf16.mxu0 0
  %2926 = vmatpush1.bf16.msra.mxu0 0
  %2927 = vmatprep.subr.bf16.mxu0 0
  %2928 = vmatpush1.bf16.msra.mxu0 0
  %2929 = vmatprep.subr.bf16.mxu0 0
  %2930 = vmatpush1.bf16.msra.mxu0 0
  %2931 = vmatprep.subr.bf16.mxu0 0
  %2932 = vmatpush1.bf16.msra.mxu0 0
  %2933 = vmatprep.subr.bf16.mxu0 0
  %2934 = vmatpush1.bf16.msra.mxu0 0
  %2935 = vmatprep.subr.bf16.mxu0 0
  %2936 = vmatpush1.bf16.msra.mxu0 0
  %2937 = vmatprep.subr.bf16.mxu0 0
  %2938 = vmatpush1.bf16.msra.mxu0 0
  %2939 = vmatprep.mubr.bf16.mxu0 0
  %2940 = vmatmul.mubr.bf16.gmra.mrb[0].mxu0 %v2707
  %v2941 = vpop.f32.mrb[0].mxu0
  %v2942 = vadd.f32 0.0, %v2941
  %v2943 = vpop.f32.mrb[0].mxu0
  %v2944 = vadd.f32 0.0, %v2943
  %v2945 = vpop.f32.mrb[0].mxu0
  %v2946 = vpop.f32.mrb[0].mxu0
  %2947 = vdwg.mxu0
  %2948 = vmatprep.subr.bf16.mxu0 %v2846
  %2949 = vmatpush1.bf16.msra.mxu0 %v2845
  %2950 = vmatprep.subr.bf16.mxu0 %v2850
  %2951 = vmatpush1.bf16.msra.mxu0 %v2849
  %2952 = vmatprep.subr.bf16.mxu0 %v2854
  %2953 = vmatpush1.bf16.msra.mxu0 %v2853
  %2954 = vmatprep.subr.bf16.mxu0 %v2858
  %2955 = vmatpush1.bf16.msra.mxu0 %v2857
  %2956 = vmatprep.subr.bf16.mxu0 %v2862
  %2957 = vmatpush1.bf16.msra.mxu0 %v2861
  %2958 = vmatprep.subr.bf16.mxu0 %v2866
  %2959 = vmatpush1.bf16.msra.mxu0 %v2865
  %2960 = vmatprep.subr.bf16.mxu0 %v2870
  %2961 = vmatpush1.bf16.msra.mxu0 %v2869
  %2962 = vmatprep.subr.bf16.mxu0 %v2874
  %2963 = vmatpush1.bf16.msra.mxu0 %v2873
  %2964 = vmatprep.subr.bf16.mxu0 0
  %2965 = vmatpush1.bf16.msra.mxu0 0
  %2966 = vmatprep.subr.bf16.mxu0 0
  %2967 = vmatpush1.bf16.msra.mxu0 0
  %2968 = vmatprep.subr.bf16.mxu0 0
  %2969 = vmatpush1.bf16.msra.mxu0 0
  %2970 = vmatprep.subr.bf16.mxu0 0
  %2971 = vmatpush1.bf16.msra.mxu0 0
  %2972 = vmatprep.subr.bf16.mxu0 0
  %2973 = vmatpush1.bf16.msra.mxu0 0
  %2974 = vmatprep.subr.bf16.mxu0 0
  %2975 = vmatpush1.bf16.msra.mxu0 0
  %2976 = vmatprep.subr.bf16.mxu0 0
  %2977 = vmatpush1.bf16.msra.mxu0 0
  %2978 = vmatprep.subr.bf16.mxu0 0
  %2979 = vmatpush1.bf16.msra.mxu0 0
  %2980 = vmatprep.mubr.bf16.mxu0 0
  %2981 = vmatmul.mubr.bf16.gmra.mrb[0].mxu0 %v2707
  %v2982 = vpop.f32.mrb[0].mxu0
  %v2983 = vadd.f32 0.0, %v2982
  %v2984 = vpop.f32.mrb[0].mxu0
  %v2985 = vadd.f32 0.0, %v2984
  %v2986 = vpop.f32.mrb[0].mxu0
  %v2987 = vpop.f32.mrb[0].mxu0
  %2988 = vdwg.mxu0
  %v2989 = vadd.f32 %v2711, %v2942
  %v2990 = vadd.f32 %v2712, %v2944
  %v2991 = vadd.f32 %v2713, %v2983
  %v2992 = vadd.f32 %v2714, %v2985
  %v2993 = vsub.f32 0.0, %v2989
  %v2994 = vmul.f32 %v2993, 1.442695
  %v2995 = vpow.pop %v2994
  %v2996 = vadd.f32 %v2995, 1.0
  %v2997 = vrcp.pop %v2996
  %v2998 = vsub.f32 0.0, %v2990
  %v2999 = vmul.f32 %v2998, 1.442695
  %v3000 = vpow.pop %v2999
  %v3001 = vadd.f32 %v3000, 1.0
  %v3002 = vrcp.pop %v3001
  %v3003 = vtanh.pop %v2991
  %v3004 = vsub.f32 0.0, %v2992
  %v3005 = vmul.f32 %v3004, 1.442695
  %v3006 = vpow.pop %v3005
  %v3007 = vadd.f32 %v3006, 1.0
  %v3008 = vrcp.pop %v3007
  %v3009 = vmul.f32 %v3002, %v2704
  %v3010 = vmul.f32 %v2997, %v3003
  %v3011 = vadd.f32 %v3009, %v3010
  %v3012 = vtanh.pop %v3011
  %v3013 = vmul.f32 %v3008, %v3012
  %v3014 = vpack.c.bf16 %v3013, %v3013
  %s3015 = scalar_lea.vmem [#allocation3], 28
  %3016 = vst [vmem:[%s3015] sm:$0xf] %v3014
  %3017 = vst [vmem:[#allocation4] sm:$0xf] %v3014
  %3018 = vst [vmem:[#allocation5] sm:$0xff] %v3011
  %v3019 = vld [vmem:[#allocation3] sm:$0xf]
  %v3020 = vld [vmem:[#allocation3 + $0x4] sm:$0xf]
  %v3021 = vld [vmem:[#allocation3 + $0x8] sm:$0xf]
  %v3022 = vld [vmem:[#allocation3 + $0xc] sm:$0xf]
  %v3023 = vld [vmem:[#allocation3 + $0x10] sm:$0xf]
  %v3024 = vld [vmem:[#allocation3 + $0x14] sm:$0xf]
  %v3025 = vld [vmem:[#allocation3 + $0x18] sm:$0xf]
  %v3026 = vld [vmem:[#allocation3 + $0x1c] sm:$0xf]
  %v3027 = vld [vmem:[%s4] sm:$0xff]
  %v3028 = vld [vmem:[%s4 + $0x8] sm:$0xff]
  %v3029 = vld [vmem:[%s4 + $0x10] sm:$0xff]
  %v3030 = vld [vmem:[%s4 + $0x18] sm:$0xff]
  %v3031 = vld [vmem:[%s4 + $0x20] sm:$0xff]
  %v3032 = vld [vmem:[%s4 + $0x28] sm:$0xff]
  %v3033 = vld [vmem:[%s4 + $0x30] sm:$0xff]
  %v3034 = vld [vmem:[%s4 + $0x38] sm:$0xff]
  %v3035 = vld [vmem:[%s4 + $0x40] sm:$0xff]
  %v3036 = vld [vmem:[%s4 + $0x48] sm:$0xff]
  %v3037 = vld [vmem:[%s4 + $0x50] sm:$0xff]
  %v3038 = vld [vmem:[%s4 + $0x58] sm:$0xff]
  %v3039 = vld [vmem:[%s4 + $0x60] sm:$0xff]
  %v3040 = vld [vmem:[%s4 + $0x68] sm:$0xff]
  %v3041 = vld [vmem:[%s4 + $0x70] sm:$0xff]
  %v3042 = vld [vmem:[%s4 + $0x78] sm:$0xff]
  %v3043 = vld [vmem:[%s4 + $0x80] sm:$0xff]
  %v3044 = vld [vmem:[%s4 + $0x88] sm:$0xff]
  %v3045 = vld [vmem:[%s4 + $0x90] sm:$0xff]
  %v3046 = vld [vmem:[%s4 + $0x98] sm:$0xff]
  %v3047 = vld [vmem:[%s4 + $0xa0] sm:$0xff]
  %v3048 = vld [vmem:[%s4 + $0xa8] sm:$0xff]
  %v3049 = vld [vmem:[%s4 + $0xb0] sm:$0xff]
  %v3050 = vld [vmem:[%s4 + $0xb8] sm:$0xff]
  %v3051 = vld [vmem:[%s4 + $0xc0] sm:$0xff]
  %v3052 = vld [vmem:[%s4 + $0xc8] sm:$0xff]
  %v3053 = vld [vmem:[%s4 + $0xd0] sm:$0xff]
  %v3054 = vld [vmem:[%s4 + $0xd8] sm:$0xff]
  %v3055 = vld [vmem:[%s4 + $0xe0] sm:$0xff]
  %v3056 = vld [vmem:[%s4 + $0xe8] sm:$0xff]
  %v3057 = vld [vmem:[%s4 + $0xf0] sm:$0xff]
  %v3058 = vld [vmem:[%s4 + $0xf8] sm:$0xff]
  %v3059 = vld [vmem:[%s6] sm:$0xf]
  %v3061 = vlaneseq
  %v3062 = vshrl.u32 %v3061, 7
  %v3063 = vsub.s32 0, %v3062
  %v3064 = vrot.slane %v3059, %v3063
  %v3065 = vlaneseq
  %v3066 = vshrl.u32 %v3065, 7
  %v3067 = vsub.s32 1, %v3066
  %v3068 = vrot.slane %v3059, %v3067
  %v3069 = vlaneseq
  %v3070 = vshrl.u32 %v3069, 7
  %v3071 = vsub.s32 2, %v3070
  %v3072 = vrot.slane %v3059, %v3071
  %v3073 = vlaneseq
  %v3074 = vshrl.u32 %v3073, 7
  %v3075 = vsub.s32 3, %v3074
  %v3076 = vrot.slane %v3059, %v3075
  %v3089 = vunpack.c.l.b16 %v3019
  %v3090 = vunpack.c.l.b16 %v3020
  %v3091 = vunpack.c.l.b16 %v3021
  %v3092 = vunpack.c.l.b16 %v3022
  %v3093 = vunpack.c.l.b16 %v3023
  %v3094 = vunpack.c.l.b16 %v3024
  %v3095 = vunpack.c.l.b16 %v3025
  %v3096 = vunpack.c.l.b16 %v3026
  %v3097 = vpack.c.b16 %v3090, %v3089
  %v3098 = vpack.c.b16 %v3092, %v3091
  %v3099 = vpack.c.b16 %v3094, %v3093
  %v3100 = vpack.c.b16 %v3096, %v3095
  %v3137 = vunpack.c.l.b16 %v3027
  %v3138 = vunpack.c.h.b16 %v3027
  %v3139 = vunpack.c.l.b16 %v3028
  %v3140 = vunpack.c.h.b16 %v3028
  %v3141 = vunpack.c.l.b16 %v3029
  %v3142 = vunpack.c.h.b16 %v3029
  %v3143 = vunpack.c.l.b16 %v3030
  %v3144 = vunpack.c.h.b16 %v3030
  %v3145 = vunpack.c.l.b16 %v3031
  %v3146 = vunpack.c.h.b16 %v3031
  %v3147 = vunpack.c.l.b16 %v3032
  %v3148 = vunpack.c.h.b16 %v3032
  %v3149 = vunpack.c.l.b16 %v3033
  %v3150 = vunpack.c.h.b16 %v3033
  %v3151 = vunpack.c.l.b16 %v3034
  %v3152 = vunpack.c.h.b16 %v3034
  %v3153 = vunpack.c.l.b16 %v3035
  %v3154 = vunpack.c.h.b16 %v3035
  %v3155 = vunpack.c.l.b16 %v3036
  %v3156 = vunpack.c.h.b16 %v3036
  %v3157 = vunpack.c.l.b16 %v3037
  %v3158 = vunpack.c.h.b16 %v3037
  %v3159 = vunpack.c.l.b16 %v3038
  %v3160 = vunpack.c.h.b16 %v3038
  %v3161 = vunpack.c.l.b16 %v3039
  %v3162 = vunpack.c.h.b16 %v3039
  %v3163 = vunpack.c.l.b16 %v3040
  %v3164 = vunpack.c.h.b16 %v3040
  %v3165 = vunpack.c.l.b16 %v3041
  %v3166 = vunpack.c.h.b16 %v3041
  %v3167 = vunpack.c.l.b16 %v3042
  %v3168 = vunpack.c.h.b16 %v3042
  %v3169 = vunpack.c.l.b16 %v3043
  %v3170 = vunpack.c.h.b16 %v3043
  %v3171 = vunpack.c.l.b16 %v3044
  %v3172 = vunpack.c.h.b16 %v3044
  %v3173 = vunpack.c.l.b16 %v3045
  %v3174 = vunpack.c.h.b16 %v3045
  %v3175 = vunpack.c.l.b16 %v3046
  %v3176 = vunpack.c.h.b16 %v3046
  %v3177 = vunpack.c.l.b16 %v3047
  %v3178 = vunpack.c.h.b16 %v3047
  %v3179 = vunpack.c.l.b16 %v3048
  %v3180 = vunpack.c.h.b16 %v3048
  %v3181 = vunpack.c.l.b16 %v3049
  %v3182 = vunpack.c.h.b16 %v3049
  %v3183 = vunpack.c.l.b16 %v3050
  %v3184 = vunpack.c.h.b16 %v3050
  %v3185 = vunpack.c.l.b16 %v3051
  %v3186 = vunpack.c.h.b16 %v3051
  %v3187 = vunpack.c.l.b16 %v3052
  %v3188 = vunpack.c.h.b16 %v3052
  %v3189 = vunpack.c.l.b16 %v3053
  %v3190 = vunpack.c.h.b16 %v3053
  %v3191 = vunpack.c.l.b16 %v3054
  %v3192 = vunpack.c.h.b16 %v3054
  %v3193 = vunpack.c.l.b16 %v3055
  %v3194 = vunpack.c.h.b16 %v3055
  %v3195 = vunpack.c.l.b16 %v3056
  %v3196 = vunpack.c.h.b16 %v3056
  %v3197 = vunpack.c.l.b16 %v3057
  %v3198 = vunpack.c.h.b16 %v3057
  %v3199 = vunpack.c.l.b16 %v3058
  %v3200 = vunpack.c.h.b16 %v3058
  %v3201 = vpack.c.b16 %v3141, %v3137
  %v3202 = vpack.c.b16 %v3142, %v3138
  %v3203 = vpack.c.b16 %v3143, %v3139
  %v3204 = vpack.c.b16 %v3144, %v3140
  %v3205 = vpack.c.b16 %v3149, %v3145
  %v3206 = vpack.c.b16 %v3150, %v3146
  %v3207 = vpack.c.b16 %v3151, %v3147
  %v3208 = vpack.c.b16 %v3152, %v3148
  %v3209 = vpack.c.b16 %v3157, %v3153
  %v3210 = vpack.c.b16 %v3158, %v3154
  %v3211 = vpack.c.b16 %v3159, %v3155
  %v3212 = vpack.c.b16 %v3160, %v3156
  %v3213 = vpack.c.b16 %v3165, %v3161
  %v3214 = vpack.c.b16 %v3166, %v3162
  %v3215 = vpack.c.b16 %v3167, %v3163
  %v3216 = vpack.c.b16 %v3168, %v3164
  %v3217 = vpack.c.b16 %v3173, %v3169
  %v3218 = vpack.c.b16 %v3174, %v3170
  %v3219 = vpack.c.b16 %v3175, %v3171
  %v3220 = vpack.c.b16 %v3176, %v3172
  %v3221 = vpack.c.b16 %v3181, %v3177
  %v3222 = vpack.c.b16 %v3182, %v3178
  %v3223 = vpack.c.b16 %v3183, %v3179
  %v3224 = vpack.c.b16 %v3184, %v3180
  %v3225 = vpack.c.b16 %v3189, %v3185
  %v3226 = vpack.c.b16 %v3190, %v3186
  %v3227 = vpack.c.b16 %v3191, %v3187
  %v3228 = vpack.c.b16 %v3192, %v3188
  %v3229 = vpack.c.b16 %v3197, %v3193
  %v3230 = vpack.c.b16 %v3198, %v3194
  %v3231 = vpack.c.b16 %v3199, %v3195
  %v3232 = vpack.c.b16 %v3200, %v3196
  %3265 = vmatprep.subr.bf16.mxu0 %v3202
  %3266 = vmatpush1.bf16.msra.mxu0 %v3201
  %3267 = vmatprep.subr.bf16.mxu0 %v3206
  %3268 = vmatpush1.bf16.msra.mxu0 %v3205
  %3269 = vmatprep.subr.bf16.mxu0 %v3210
  %3270 = vmatpush1.bf16.msra.mxu0 %v3209
  %3271 = vmatprep.subr.bf16.mxu0 %v3214
  %3272 = vmatpush1.bf16.msra.mxu0 %v3213
  %3273 = vmatprep.subr.bf16.mxu0 %v3218
  %3274 = vmatpush1.bf16.msra.mxu0 %v3217
  %3275 = vmatprep.subr.bf16.mxu0 %v3222
  %3276 = vmatpush1.bf16.msra.mxu0 %v3221
  %3277 = vmatprep.subr.bf16.mxu0 %v3226
  %3278 = vmatpush1.bf16.msra.mxu0 %v3225
  %3279 = vmatprep.subr.bf16.mxu0 %v3230
  %3280 = vmatpush1.bf16.msra.mxu0 %v3229
  %3281 = vmatprep.subr.bf16.mxu0 0
  %3282 = vmatpush1.bf16.msra.mxu0 0
  %3283 = vmatprep.subr.bf16.mxu0 0
  %3284 = vmatpush1.bf16.msra.mxu0 0
  %3285 = vmatprep.subr.bf16.mxu0 0
  %3286 = vmatpush1.bf16.msra.mxu0 0
  %3287 = vmatprep.subr.bf16.mxu0 0
  %3288 = vmatpush1.bf16.msra.mxu0 0
  %3289 = vmatprep.subr.bf16.mxu0 0
  %3290 = vmatpush1.bf16.msra.mxu0 0
  %3291 = vmatprep.subr.bf16.mxu0 0
  %3292 = vmatpush1.bf16.msra.mxu0 0
  %3293 = vmatprep.subr.bf16.mxu0 0
  %3294 = vmatpush1.bf16.msra.mxu0 0
  %3295 = vmatprep.subr.bf16.mxu0 0
  %3296 = vmatpush1.bf16.msra.mxu0 0
  %3297 = vmatprep.mubr.bf16.mxu0 0
  %3298 = vmatmul.mubr.bf16.gmra.mrb[0].mxu0 %v3097
  %v3299 = vpop.f32.mrb[0].mxu0
  %v3300 = vadd.f32 %v3064, %v3299
  %v3301 = vpop.f32.mrb[0].mxu0
  %v3302 = vadd.f32 %v3068, %v3301
  %v3303 = vpop.f32.mrb[0].mxu0
  %v3304 = vadd.f32 %v3064, %v3303
  %v3305 = vpop.f32.mrb[0].mxu0
  %v3306 = vadd.f32 %v3068, %v3305
  %3307 = vmatprep.mubr.bf16.mxu0 0
  %3308 = vmatmul.mubr.bf16.gmra.mrb[0].mxu0 %v3098
  %v3309 = vpop.f32.mrb[0].mxu0
  %v3310 = vadd.f32 %v3064, %v3309
  %v3311 = vpop.f32.mrb[0].mxu0
  %v3312 = vadd.f32 %v3068, %v3311
  %v3313 = vpop.f32.mrb[0].mxu0
  %v3314 = vadd.f32 %v3064, %v3313
  %v3315 = vpop.f32.mrb[0].mxu0
  %v3316 = vadd.f32 %v3068, %v3315
  %3317 = vmatprep.mubr.bf16.mxu0 0
  %3318 = vmatmul.mubr.bf16.gmra.mrb[0].mxu0 %v3099
  %v3319 = vpop.f32.mrb[0].mxu0
  %v3320 = vadd.f32 %v3064, %v3319
  %v3321 = vpop.f32.mrb[0].mxu0
  %v3322 = vadd.f32 %v3068, %v3321
  %v3323 = vpop.f32.mrb[0].mxu0
  %v3324 = vadd.f32 %v3064, %v3323
  %v3325 = vpop.f32.mrb[0].mxu0
  %v3326 = vadd.f32 %v3068, %v3325
  %3327 = vmatprep.mubr.bf16.mxu0 0
  %3328 = vmatmul.mubr.bf16.gmra.mrb[0].mxu0 %v3100
  %v3329 = vpop.f32.mrb[0].mxu0
  %v3330 = vadd.f32 %v3064, %v3329
  %v3331 = vpop.f32.mrb[0].mxu0
  %v3332 = vadd.f32 %v3068, %v3331
  %v3333 = vpop.f32.mrb[0].mxu0
  %v3334 = vadd.f32 %v3064, %v3333
  %v3335 = vpop.f32.mrb[0].mxu0
  %v3336 = vadd.f32 %v3068, %v3335
  %3337 = vdwg.mxu0
  %3338 = vmatprep.subr.bf16.mxu0 %v3204
  %3339 = vmatpush1.bf16.msra.mxu0 %v3203
  %3340 = vmatprep.subr.bf16.mxu0 %v3208
  %3341 = vmatpush1.bf16.msra.mxu0 %v3207
  %3342 = vmatprep.subr.bf16.mxu0 %v3212
  %3343 = vmatpush1.bf16.msra.mxu0 %v3211
  %3344 = vmatprep.subr.bf16.mxu0 %v3216
  %3345 = vmatpush1.bf16.msra.mxu0 %v3215
  %3346 = vmatprep.subr.bf16.mxu0 %v3220
  %3347 = vmatpush1.bf16.msra.mxu0 %v3219
  %3348 = vmatprep.subr.bf16.mxu0 %v3224
  %3349 = vmatpush1.bf16.msra.mxu0 %v3223
  %3350 = vmatprep.subr.bf16.mxu0 %v3228
  %3351 = vmatpush1.bf16.msra.mxu0 %v3227
  %3352 = vmatprep.subr.bf16.mxu0 %v3232
  %3353 = vmatpush1.bf16.msra.mxu0 %v3231
  %3354 = vmatprep.subr.bf16.mxu0 0
  %3355 = vmatpush1.bf16.msra.mxu0 0
  %3356 = vmatprep.subr.bf16.mxu0 0
  %3357 = vmatpush1.bf16.msra.mxu0 0
  %3358 = vmatprep.subr.bf16.mxu0 0
  %3359 = vmatpush1.bf16.msra.mxu0 0
  %3360 = vmatprep.subr.bf16.mxu0 0
  %3361 = vmatpush1.bf16.msra.mxu0 0
  %3362 = vmatprep.subr.bf16.mxu0 0
  %3363 = vmatpush1.bf16.msra.mxu0 0
  %3364 = vmatprep.subr.bf16.mxu0 0
  %3365 = vmatpush1.bf16.msra.mxu0 0
  %3366 = vmatprep.subr.bf16.mxu0 0
  %3367 = vmatpush1.bf16.msra.mxu0 0
  %3368 = vmatprep.subr.bf16.mxu0 0
  %3369 = vmatpush1.bf16.msra.mxu0 0
  %3370 = vmatprep.mubr.bf16.mxu0 0
  %3371 = vmatmul.mubr.bf16.gmra.mrb[0].mxu0 %v3097
  %v3372 = vpop.f32.mrb[0].mxu0
  %v3373 = vadd.f32 %v3072, %v3372
  %v3374 = vpop.f32.mrb[0].mxu0
  %v3375 = vadd.f32 %v3076, %v3374
  %v3376 = vpop.f32.mrb[0].mxu0
  %v3377 = vadd.f32 %v3072, %v3376
  %v3378 = vpop.f32.mrb[0].mxu0
  %v3379 = vadd.f32 %v3076, %v3378
  %3380 = vmatprep.mubr.bf16.mxu0 0
  %3381 = vmatmul.mubr.bf16.gmra.mrb[0].mxu0 %v3098
  %v3382 = vpop.f32.mrb[0].mxu0
  %v3383 = vadd.f32 %v3072, %v3382
  %v3384 = vpop.f32.mrb[0].mxu0
  %v3385 = vadd.f32 %v3076, %v3384
  %v3386 = vpop.f32.mrb[0].mxu0
  %v3387 = vadd.f32 %v3072, %v3386
  %v3388 = vpop.f32.mrb[0].mxu0
  %v3389 = vadd.f32 %v3076, %v3388
  %3390 = vmatprep.mubr.bf16.mxu0 0
  %3391 = vmatmul.mubr.bf16.gmra.mrb[0].mxu0 %v3099
  %v3392 = vpop.f32.mrb[0].mxu0
  %v3393 = vadd.f32 %v3072, %v3392
  %v3394 = vpop.f32.mrb[0].mxu0
  %v3395 = vadd.f32 %v3076, %v3394
  %v3396 = vpop.f32.mrb[0].mxu0
  %v3397 = vadd.f32 %v3072, %v3396
  %v3398 = vpop.f32.mrb[0].mxu0
  %v3399 = vadd.f32 %v3076, %v3398
  %3400 = vmatprep.mubr.bf16.mxu0 0
  %3401 = vmatmul.mubr.bf16.gmra.mrb[0].mxu0 %v3100
  %v3402 = vpop.f32.mrb[0].mxu0
  %v3403 = vadd.f32 %v3072, %v3402
  %v3404 = vpop.f32.mrb[0].mxu0
  %v3405 = vadd.f32 %v3076, %v3404
  %v3406 = vpop.f32.mrb[0].mxu0
  %v3407 = vadd.f32 %v3072, %v3406
  %v3408 = vpop.f32.mrb[0].mxu0
  %v3409 = vadd.f32 %v3076, %v3408
  %3410 = vdwg.mxu0
  %3411 = vst [vmem:[#allocation2] sm:$0xff] %v3300
  %3412 = vst [vmem:[#allocation2 + $0x8] sm:$0xff] %v3302
  %3413 = vst [vmem:[#allocation2 + $0x10] sm:$0xff] %v3373
  %3414 = vst [vmem:[#allocation2 + $0x18] sm:$0xff] %v3375
  %3415 = vst [vmem:[#allocation2 + $0x20] sm:$0xff] %v3304
  %3416 = vst [vmem:[#allocation2 + $0x28] sm:$0xff] %v3306
  %3417 = vst [vmem:[#allocation2 + $0x30] sm:$0xff] %v3377
  %3418 = vst [vmem:[#allocation2 + $0x38] sm:$0xff] %v3379
  %3419 = vst [vmem:[#allocation2 + $0x40] sm:$0xff] %v3310
  %3420 = vst [vmem:[#allocation2 + $0x48] sm:$0xff] %v3312
  %3421 = vst [vmem:[#allocation2 + $0x50] sm:$0xff] %v3383
  %3422 = vst [vmem:[#allocation2 + $0x58] sm:$0xff] %v3385
  %3423 = vst [vmem:[#allocation2 + $0x60] sm:$0xff] %v3314
  %3424 = vst [vmem:[#allocation2 + $0x68] sm:$0xff] %v3316
  %3425 = vst [vmem:[#allocation2 + $0x70] sm:$0xff] %v3387
  %3426 = vst [vmem:[#allocation2 + $0x78] sm:$0xff] %v3389
  %3427 = vst [vmem:[#allocation2 + $0x80] sm:$0xff] %v3320
  %3428 = vst [vmem:[#allocation2 + $0x88] sm:$0xff] %v3322
  %3429 = vst [vmem:[#allocation2 + $0x90] sm:$0xff] %v3393
  %3430 = vst [vmem:[#allocation2 + $0x98] sm:$0xff] %v3395
  %3431 = vst [vmem:[#allocation2 + $0xa0] sm:$0xff] %v3324
  %3432 = vst [vmem:[#allocation2 + $0xa8] sm:$0xff] %v3326
  %3433 = vst [vmem:[#allocation2 + $0xb0] sm:$0xff] %v3397
  %3434 = vst [vmem:[#allocation2 + $0xb8] sm:$0xff] %v3399
  %3435 = vst [vmem:[#allocation2 + $0xc0] sm:$0xff] %v3330
  %3436 = vst [vmem:[#allocation2 + $0xc8] sm:$0xff] %v3332
  %3437 = vst [vmem:[#allocation2 + $0xd0] sm:$0xff] %v3403
  %3438 = vst [vmem:[#allocation2 + $0xd8] sm:$0xff] %v3405
  %3439 = vst [vmem:[#allocation2 + $0xe0] sm:$0xff] %v3334
  %3440 = vst [vmem:[#allocation2 + $0xe8] sm:$0xff] %v3336
  %3441 = vst [vmem:[#allocation2 + $0xf0] sm:$0xff] %v3407
  %3442 = vst [vmem:[#allocation2 + $0xf8] sm:$0xff] %v3409
  %v3443 = vld [vmem:[#allocation6] sm:$0xf]
  %v3444 = vld [vmem:[#allocation7] sm:$0xff]
  %v3445 = vld [vmem:[#allocation2] sm:$0xff]
  %v3446 = vld [vmem:[#allocation2 + $0x8] sm:$0xff]
  %v3447 = vld [vmem:[#allocation2 + $0x10] sm:$0xff]
  %v3448 = vld [vmem:[#allocation2 + $0x18] sm:$0xff]
  %v3449 = vld [vmem:[%s5] sm:$0xff]
  %v3450 = vld [vmem:[%s5 + $0x8] sm:$0xff]
  %v3451 = vld [vmem:[%s5 + $0x10] sm:$0xff]
  %v3452 = vld [vmem:[%s5 + $0x18] sm:$0xff]
  %v3453 = vld [vmem:[%s5 + $0x20] sm:$0xff]
  %v3454 = vld [vmem:[%s5 + $0x28] sm:$0xff]
  %v3455 = vld [vmem:[%s5 + $0x30] sm:$0xff]
  %v3456 = vld [vmem:[%s5 + $0x38] sm:$0xff]
  %v3457 = vld [vmem:[%s5 + $0x40] sm:$0xff]
  %v3458 = vld [vmem:[%s5 + $0x48] sm:$0xff]
  %v3459 = vld [vmem:[%s5 + $0x50] sm:$0xff]
  %v3460 = vld [vmem:[%s5 + $0x58] sm:$0xff]
  %v3461 = vld [vmem:[%s5 + $0x60] sm:$0xff]
  %v3462 = vld [vmem:[%s5 + $0x68] sm:$0xff]
  %v3463 = vld [vmem:[%s5 + $0x70] sm:$0xff]
  %v3464 = vld [vmem:[%s5 + $0x78] sm:$0xff]
  %v3465 = vld [vmem:[%s5 + $0x80] sm:$0xff]
  %v3466 = vld [vmem:[%s5 + $0x88] sm:$0xff]
  %v3467 = vld [vmem:[%s5 + $0x90] sm:$0xff]
  %v3468 = vld [vmem:[%s5 + $0x98] sm:$0xff]
  %v3469 = vld [vmem:[%s5 + $0xa0] sm:$0xff]
  %v3470 = vld [vmem:[%s5 + $0xa8] sm:$0xff]
  %v3471 = vld [vmem:[%s5 + $0xb0] sm:$0xff]
  %v3472 = vld [vmem:[%s5 + $0xb8] sm:$0xff]
  %v3473 = vld [vmem:[%s5 + $0xc0] sm:$0xff]
  %v3474 = vld [vmem:[%s5 + $0xc8] sm:$0xff]
  %v3475 = vld [vmem:[%s5 + $0xd0] sm:$0xff]
  %v3476 = vld [vmem:[%s5 + $0xd8] sm:$0xff]
  %v3477 = vld [vmem:[%s5 + $0xe0] sm:$0xff]
  %v3478 = vld [vmem:[%s5 + $0xe8] sm:$0xff]
  %v3479 = vld [vmem:[%s5 + $0xf0] sm:$0xff]
  %v3480 = vld [vmem:[%s5 + $0xf8] sm:$0xff]
  %v3513 = vunpack.c.l.b16 %v3449
  %v3514 = vunpack.c.h.b16 %v3449
  %v3515 = vunpack.c.l.b16 %v3450
  %v3516 = vunpack.c.h.b16 %v3450
  %v3517 = vunpack.c.l.b16 %v3451
  %v3518 = vunpack.c.h.b16 %v3451
  %v3519 = vunpack.c.l.b16 %v3452
  %v3520 = vunpack.c.h.b16 %v3452
  %v3521 = vunpack.c.l.b16 %v3453
  %v3522 = vunpack.c.h.b16 %v3453
  %v3523 = vunpack.c.l.b16 %v3454
  %v3524 = vunpack.c.h.b16 %v3454
  %v3525 = vunpack.c.l.b16 %v3455
  %v3526 = vunpack.c.h.b16 %v3455
  %v3527 = vunpack.c.l.b16 %v3456
  %v3528 = vunpack.c.h.b16 %v3456
  %v3529 = vunpack.c.l.b16 %v3457
  %v3530 = vunpack.c.h.b16 %v3457
  %v3531 = vunpack.c.l.b16 %v3458
  %v3532 = vunpack.c.h.b16 %v3458
  %v3533 = vunpack.c.l.b16 %v3459
  %v3534 = vunpack.c.h.b16 %v3459
  %v3535 = vunpack.c.l.b16 %v3460
  %v3536 = vunpack.c.h.b16 %v3460
  %v3537 = vunpack.c.l.b16 %v3461
  %v3538 = vunpack.c.h.b16 %v3461
  %v3539 = vunpack.c.l.b16 %v3462
  %v3540 = vunpack.c.h.b16 %v3462
  %v3541 = vunpack.c.l.b16 %v3463
  %v3542 = vunpack.c.h.b16 %v3463
  %v3543 = vunpack.c.l.b16 %v3464
  %v3544 = vunpack.c.h.b16 %v3464
  %v3545 = vunpack.c.l.b16 %v3465
  %v3546 = vunpack.c.h.b16 %v3465
  %v3547 = vunpack.c.l.b16 %v3466
  %v3548 = vunpack.c.h.b16 %v3466
  %v3549 = vunpack.c.l.b16 %v3467
  %v3550 = vunpack.c.h.b16 %v3467
  %v3551 = vunpack.c.l.b16 %v3468
  %v3552 = vunpack.c.h.b16 %v3468
  %v3553 = vunpack.c.l.b16 %v3469
  %v3554 = vunpack.c.h.b16 %v3469
  %v3555 = vunpack.c.l.b16 %v3470
  %v3556 = vunpack.c.h.b16 %v3470
  %v3557 = vunpack.c.l.b16 %v3471
  %v3558 = vunpack.c.h.b16 %v3471
  %v3559 = vunpack.c.l.b16 %v3472
  %v3560 = vunpack.c.h.b16 %v3472
  %v3561 = vunpack.c.l.b16 %v3473
  %v3562 = vunpack.c.h.b16 %v3473
  %v3563 = vunpack.c.l.b16 %v3474
  %v3564 = vunpack.c.h.b16 %v3474
  %v3565 = vunpack.c.l.b16 %v3475
  %v3566 = vunpack.c.h.b16 %v3475
  %v3567 = vunpack.c.l.b16 %v3476
  %v3568 = vunpack.c.h.b16 %v3476
  %v3569 = vunpack.c.l.b16 %v3477
  %v3570 = vunpack.c.h.b16 %v3477
  %v3571 = vunpack.c.l.b16 %v3478
  %v3572 = vunpack.c.h.b16 %v3478
  %v3573 = vunpack.c.l.b16 %v3479
  %v3574 = vunpack.c.h.b16 %v3479
  %v3575 = vunpack.c.l.b16 %v3480
  %v3576 = vunpack.c.h.b16 %v3480
  %v3577 = vpack.c.b16 %v3517, %v3513
  %v3578 = vpack.c.b16 %v3518, %v3514
  %v3579 = vpack.c.b16 %v3519, %v3515
  %v3580 = vpack.c.b16 %v3520, %v3516
  %v3581 = vpack.c.b16 %v3525, %v3521
  %v3582 = vpack.c.b16 %v3526, %v3522
  %v3583 = vpack.c.b16 %v3527, %v3523
  %v3584 = vpack.c.b16 %v3528, %v3524
  %v3585 = vpack.c.b16 %v3533, %v3529
  %v3586 = vpack.c.b16 %v3534, %v3530
  %v3587 = vpack.c.b16 %v3535, %v3531
  %v3588 = vpack.c.b16 %v3536, %v3532
  %v3589 = vpack.c.b16 %v3541, %v3537
  %v3590 = vpack.c.b16 %v3542, %v3538
  %v3591 = vpack.c.b16 %v3543, %v3539
  %v3592 = vpack.c.b16 %v3544, %v3540
  %v3593 = vpack.c.b16 %v3549, %v3545
  %v3594 = vpack.c.b16 %v3550, %v3546
  %v3595 = vpack.c.b16 %v3551, %v3547
  %v3596 = vpack.c.b16 %v3552, %v3548
  %v3597 = vpack.c.b16 %v3557, %v3553
  %v3598 = vpack.c.b16 %v3558, %v3554
  %v3599 = vpack.c.b16 %v3559, %v3555
  %v3600 = vpack.c.b16 %v3560, %v3556
  %v3601 = vpack.c.b16 %v3565, %v3561
  %v3602 = vpack.c.b16 %v3566, %v3562
  %v3603 = vpack.c.b16 %v3567, %v3563
  %v3604 = vpack.c.b16 %v3568, %v3564
  %v3605 = vpack.c.b16 %v3573, %v3569
  %v3606 = vpack.c.b16 %v3574, %v3570
  %v3607 = vpack.c.b16 %v3575, %v3571
  %v3608 = vpack.c.b16 %v3576, %v3572
  %3641 = vmatprep.subr.bf16.mxu0 %v3578
  %3642 = vmatpush1.bf16.msra.mxu0 %v3577
  %3643 = vmatprep.subr.bf16.mxu0 %v3582
  %3644 = vmatpush1.bf16.msra.mxu0 %v3581
  %3645 = vmatprep.subr.bf16.mxu0 %v3586
  %3646 = vmatpush1.bf16.msra.mxu0 %v3585
  %3647 = vmatprep.subr.bf16.mxu0 %v3590
  %3648 = vmatpush1.bf16.msra.mxu0 %v3589
  %3649 = vmatprep.subr.bf16.mxu0 %v3594
  %3650 = vmatpush1.bf16.msra.mxu0 %v3593
  %3651 = vmatprep.subr.bf16.mxu0 %v3598
  %3652 = vmatpush1.bf16.msra.mxu0 %v3597
  %3653 = vmatprep.subr.bf16.mxu0 %v3602
  %3654 = vmatpush1.bf16.msra.mxu0 %v3601
  %3655 = vmatprep.subr.bf16.mxu0 %v3606
  %3656 = vmatpush1.bf16.msra.mxu0 %v3605
  %3657 = vmatprep.subr.bf16.mxu0 0
  %3658 = vmatpush1.bf16.msra.mxu0 0
  %3659 = vmatprep.subr.bf16.mxu0 0
  %3660 = vmatpush1.bf16.msra.mxu0 0
  %3661 = vmatprep.subr.bf16.mxu0 0
  %3662 = vmatpush1.bf16.msra.mxu0 0
  %3663 = vmatprep.subr.bf16.mxu0 0
  %3664 = vmatpush1.bf16.msra.mxu0 0
  %3665 = vmatprep.subr.bf16.mxu0 0
  %3666 = vmatpush1.bf16.msra.mxu0 0
  %3667 = vmatprep.subr.bf16.mxu0 0
  %3668 = vmatpush1.bf16.msra.mxu0 0
  %3669 = vmatprep.subr.bf16.mxu0 0
  %3670 = vmatpush1.bf16.msra.mxu0 0
  %3671 = vmatprep.subr.bf16.mxu0 0
  %3672 = vmatpush1.bf16.msra.mxu0 0
  %3673 = vmatprep.mubr.bf16.mxu0 0
  %3674 = vmatmul.mubr.bf16.gmra.mrb[0].mxu0 %v3443
  %v3675 = vpop.f32.mrb[0].mxu0
  %v3676 = vadd.f32 0.0, %v3675
  %v3677 = vpop.f32.mrb[0].mxu0
  %v3678 = vadd.f32 0.0, %v3677
  %v3679 = vpop.f32.mrb[0].mxu0
  %v3680 = vpop.f32.mrb[0].mxu0
  %3681 = vdwg.mxu0
  %3682 = vmatprep.subr.bf16.mxu0 %v3580
  %3683 = vmatpush1.bf16.msra.mxu0 %v3579
  %3684 = vmatprep.subr.bf16.mxu0 %v3584
  %3685 = vmatpush1.bf16.msra.mxu0 %v3583
  %3686 = vmatprep.subr.bf16.mxu0 %v3588
  %3687 = vmatpush1.bf16.msra.mxu0 %v3587
  %3688 = vmatprep.subr.bf16.mxu0 %v3592
  %3689 = vmatpush1.bf16.msra.mxu0 %v3591
  %3690 = vmatprep.subr.bf16.mxu0 %v3596
  %3691 = vmatpush1.bf16.msra.mxu0 %v3595
  %3692 = vmatprep.subr.bf16.mxu0 %v3600
  %3693 = vmatpush1.bf16.msra.mxu0 %v3599
  %3694 = vmatprep.subr.bf16.mxu0 %v3604
  %3695 = vmatpush1.bf16.msra.mxu0 %v3603
  %3696 = vmatprep.subr.bf16.mxu0 %v3608
  %3697 = vmatpush1.bf16.msra.mxu0 %v3607
  %3698 = vmatprep.subr.bf16.mxu0 0
  %3699 = vmatpush1.bf16.msra.mxu0 0
  %3700 = vmatprep.subr.bf16.mxu0 0
  %3701 = vmatpush1.bf16.msra.mxu0 0
  %3702 = vmatprep.subr.bf16.mxu0 0
  %3703 = vmatpush1.bf16.msra.mxu0 0
  %3704 = vmatprep.subr.bf16.mxu0 0
  %3705 = vmatpush1.bf16.msra.mxu0 0
  %3706 = vmatprep.subr.bf16.mxu0 0
  %3707 = vmatpush1.bf16.msra.mxu0 0
  %3708 = vmatprep.subr.bf16.mxu0 0
  %3709 = vmatpush1.bf16.msra.mxu0 0
  %3710 = vmatprep.subr.bf16.mxu0 0
  %3711 = vmatpush1.bf16.msra.mxu0 0
  %3712 = vmatprep.subr.bf16.mxu0 0
  %3713 = vmatpush1.bf16.msra.mxu0 0
  %3714 = vmatprep.mubr.bf16.mxu0 0
  %3715 = vmatmul.mubr.bf16.gmra.mrb[0].mxu0 %v3443
  %v3716 = vpop.f32.mrb[0].mxu0
  %v3717 = vadd.f32 0.0, %v3716
  %v3718 = vpop.f32.mrb[0].mxu0
  %v3719 = vadd.f32 0.0, %v3718
  %v3720 = vpop.f32.mrb[0].mxu0
  %v3721 = vpop.f32.mrb[0].mxu0
  %3722 = vdwg.mxu0
  %v3723 = vadd.f32 %v3445, %v3676
  %v3724 = vadd.f32 %v3446, %v3678
  %v3725 = vadd.f32 %v3447, %v3717
  %v3726 = vadd.f32 %v3448, %v3719
  %v3727 = vsub.f32 0.0, %v3723
  %v3728 = vmul.f32 %v3727, 1.442695
  %v3729 = vpow.pop %v3728
  %v3730 = vadd.f32 %v3729, 1.0
  %v3731 = vrcp.pop %v3730
  %v3732 = vsub.f32 0.0, %v3724
  %v3733 = vmul.f32 %v3732, 1.442695
  %v3734 = vpow.pop %v3733
  %v3735 = vadd.f32 %v3734, 1.0
  %v3736 = vrcp.pop %v3735
  %v3737 = vtanh.pop %v3725
  %v3738 = vsub.f32 0.0, %v3726
  %v3739 = vmul.f32 %v3738, 1.442695
  %v3740 = vpow.pop %v3739
  %v3741 = vadd.f32 %v3740, 1.0
  %v3742 = vrcp.pop %v3741
  %v3743 = vmul.f32 %v3736, %v3444
  %v3744 = vmul.f32 %v3731, %v3737
  %v3745 = vadd.f32 %v3743, %v3744
  %v3746 = vtanh.pop %v3745
  %v3747 = vmul.f32 %v3742, %v3746
  %v3748 = vpack.c.bf16 %v3747, %v3747
  %v3749 = vld [vmem:[%s868] sm:$0xff]
  %v3750 = vld [vmem:[%s868 + $0x8] sm:$0xff]
  %v3751 = vld [vmem:[%s868 + $0x10] sm:$0xff]
  %v3752 = vld [vmem:[%s868 + $0x18] sm:$0xff]
  %3753 = vmatprep.subr.bf16.mxu0 %v3578
  %3754 = vmatpush1.bf16.msra.mxu0 %v3577
  %3755 = vmatprep.subr.bf16.mxu0 %v3582
  %3756 = vmatpush1.bf16.msra.mxu0 %v3581
  %3757 = vmatprep.subr.bf16.mxu0 %v3586
  %3758 = vmatpush1.bf16.msra.mxu0 %v3585
  %3759 = vmatprep.subr.bf16.mxu0 %v3590
  %3760 = vmatpush1.bf16.msra.mxu0 %v3589
  %3761 = vmatprep.subr.bf16.mxu0 %v3594
  %3762 = vmatpush1.bf16.msra.mxu0 %v3593
  %3763 = vmatprep.subr.bf16.mxu0 %v3598
  %3764 = vmatpush1.bf16.msra.mxu0 %v3597
  %3765 = vmatprep.subr.bf16.mxu0 %v3602
  %3766 = vmatpush1.bf16.msra.mxu0 %v3601
  %3767 = vmatprep.subr.bf16.mxu0 %v3606
  %3768 = vmatpush1.bf16.msra.mxu0 %v3605
  %3769 = vmatprep.subr.bf16.mxu0 0
  %3770 = vmatpush1.bf16.msra.mxu0 0
  %3771 = vmatprep.subr.bf16.mxu0 0
  %3772 = vmatpush1.bf16.msra.mxu0 0
  %3773 = vmatprep.subr.bf16.mxu0 0
  %3774 = vmatpush1.bf16.msra.mxu0 0
  %3775 = vmatprep.subr.bf16.mxu0 0
  %3776 = vmatpush1.bf16.msra.mxu0 0
  %3777 = vmatprep.subr.bf16.mxu0 0
  %3778 = vmatpush1.bf16.msra.mxu0 0
  %3779 = vmatprep.subr.bf16.mxu0 0
  %3780 = vmatpush1.bf16.msra.mxu0 0
  %3781 = vmatprep.subr.bf16.mxu0 0
  %3782 = vmatpush1.bf16.msra.mxu0 0
  %3783 = vmatprep.subr.bf16.mxu0 0
  %3784 = vmatpush1.bf16.msra.mxu0 0
  %3785 = vmatprep.mubr.bf16.mxu0 0
  %3786 = vmatmul.mubr.bf16.gmra.mrb[0].mxu0 %v3748
  %v3787 = vpop.f32.mrb[0].mxu0
  %v3788 = vadd.f32 0.0, %v3787
  %v3789 = vpop.f32.mrb[0].mxu0
  %v3790 = vadd.f32 0.0, %v3789
  %v3791 = vpop.f32.mrb[0].mxu0
  %v3792 = vpop.f32.mrb[0].mxu0
  %3793 = vdwg.mxu0
  %3794 = vmatprep.subr.bf16.mxu0 %v3580
  %3795 = vmatpush1.bf16.msra.mxu0 %v3579
  %3796 = vmatprep.subr.bf16.mxu0 %v3584
  %3797 = vmatpush1.bf16.msra.mxu0 %v3583
  %3798 = vmatprep.subr.bf16.mxu0 %v3588
  %3799 = vmatpush1.bf16.msra.mxu0 %v3587
  %3800 = vmatprep.subr.bf16.mxu0 %v3592
  %3801 = vmatpush1.bf16.msra.mxu0 %v3591
  %3802 = vmatprep.subr.bf16.mxu0 %v3596
  %3803 = vmatpush1.bf16.msra.mxu0 %v3595
  %3804 = vmatprep.subr.bf16.mxu0 %v3600
  %3805 = vmatpush1.bf16.msra.mxu0 %v3599
  %3806 = vmatprep.subr.bf16.mxu0 %v3604
  %3807 = vmatpush1.bf16.msra.mxu0 %v3603
  %3808 = vmatprep.subr.bf16.mxu0 %v3608
  %3809 = vmatpush1.bf16.msra.mxu0 %v3607
  %3810 = vmatprep.subr.bf16.mxu0 0
  %3811 = vmatpush1.bf16.msra.mxu0 0
  %3812 = vmatprep.subr.bf16.mxu0 0
  %3813 = vmatpush1.bf16.msra.mxu0 0
  %3814 = vmatprep.subr.bf16.mxu0 0
  %3815 = vmatpush1.bf16.msra.mxu0 0
  %3816 = vmatprep.subr.bf16.mxu0 0
  %3817 = vmatpush1.bf16.msra.mxu0 0
  %3818 = vmatprep.subr.bf16.mxu0 0
  %3819 = vmatpush1.bf16.msra.mxu0 0
  %3820 = vmatprep.subr.bf16.mxu0 0
  %3821 = vmatpush1.bf16.msra.mxu0 0
  %3822 = vmatprep.subr.bf16.mxu0 0
  %3823 = vmatpush1.bf16.msra.mxu0 0
  %3824 = vmatprep.subr.bf16.mxu0 0
  %3825 = vmatpush1.bf16.msra.mxu0 0
  %3826 = vmatprep.mubr.bf16.mxu0 0
  %3827 = vmatmul.mubr.bf16.gmra.mrb[0].mxu0 %v3748
  %v3828 = vpop.f32.mrb[0].mxu0
  %v3829 = vadd.f32 0.0, %v3828
  %v3830 = vpop.f32.mrb[0].mxu0
  %v3831 = vadd.f32 0.0, %v3830
  %v3832 = vpop.f32.mrb[0].mxu0
  %v3833 = vpop.f32.mrb[0].mxu0
  %3834 = vdwg.mxu0
  %v3835 = vadd.f32 %v3749, %v3788
  %v3836 = vadd.f32 %v3750, %v3790
  %v3837 = vadd.f32 %v3751, %v3829
  %v3838 = vadd.f32 %v3752, %v3831
  %v3839 = vsub.f32 0.0, %v3835
  %v3840 = vmul.f32 %v3839, 1.442695
  %v3841 = vpow.pop %v3840
  %v3842 = vadd.f32 %v3841, 1.0
  %v3843 = vrcp.pop %v3842
  %v3844 = vsub.f32 0.0, %v3836
  %v3845 = vmul.f32 %v3844, 1.442695
  %v3846 = vpow.pop %v3845
  %v3847 = vadd.f32 %v3846, 1.0
  %v3848 = vrcp.pop %v3847
  %v3849 = vtanh.pop %v3837
  %v3850 = vsub.f32 0.0, %v3838
  %v3851 = vmul.f32 %v3850, 1.442695
  %v3852 = vpow.pop %v3851
  %v3853 = vadd.f32 %v3852, 1.0
  %v3854 = vrcp.pop %v3853
  %v3855 = vmul.f32 %v3848, %v3745
  %v3856 = vmul.f32 %v3843, %v3849
  %v3857 = vadd.f32 %v3855, %v3856
  %v3858 = vtanh.pop %v3857
  %v3859 = vmul.f32 %v3854, %v3858
  %v3860 = vpack.c.bf16 %v3859, %v3859
  %v3861 = vld [vmem:[%s1175] sm:$0xff]
  %v3862 = vld [vmem:[%s1175 + $0x8] sm:$0xff]
  %v3863 = vld [vmem:[%s1175 + $0x10] sm:$0xff]
  %v3864 = vld [vmem:[%s1175 + $0x18] sm:$0xff]
  %3865 = vmatprep.subr.bf16.mxu0 %v3578
  %3866 = vmatpush1.bf16.msra.mxu0 %v3577
  %3867 = vmatprep.subr.bf16.mxu0 %v3582
  %3868 = vmatpush1.bf16.msra.mxu0 %v3581
  %3869 = vmatprep.subr.bf16.mxu0 %v3586
  %3870 = vmatpush1.bf16.msra.mxu0 %v3585
  %3871 = vmatprep.subr.bf16.mxu0 %v3590
  %3872 = vmatpush1.bf16.msra.mxu0 %v3589
  %3873 = vmatprep.subr.bf16.mxu0 %v3594
  %3874 = vmatpush1.bf16.msra.mxu0 %v3593
  %3875 = vmatprep.subr.bf16.mxu0 %v3598
  %3876 = vmatpush1.bf16.msra.mxu0 %v3597
  %3877 = vmatprep.subr.bf16.mxu0 %v3602
  %3878 = vmatpush1.bf16.msra.mxu0 %v3601
  %3879 = vmatprep.subr.bf16.mxu0 %v3606
  %3880 = vmatpush1.bf16.msra.mxu0 %v3605
  %3881 = vmatprep.subr.bf16.mxu0 0
  %3882 = vmatpush1.bf16.msra.mxu0 0
  %3883 = vmatprep.subr.bf16.mxu0 0
  %3884 = vmatpush1.bf16.msra.mxu0 0
  %3885 = vmatprep.subr.bf16.mxu0 0
  %3886 = vmatpush1.bf16.msra.mxu0 0
  %3887 = vmatprep.subr.bf16.mxu0 0
  %3888 = vmatpush1.bf16.msra.mxu0 0
  %3889 = vmatprep.subr.bf16.mxu0 0
  %3890 = vmatpush1.bf16.msra.mxu0 0
  %3891 = vmatprep.subr.bf16.mxu0 0
  %3892 = vmatpush1.bf16.msra.mxu0 0
  %3893 = vmatprep.subr.bf16.mxu0 0
  %3894 = vmatpush1.bf16.msra.mxu0 0
  %3895 = vmatprep.subr.bf16.mxu0 0
  %3896 = vmatpush1.bf16.msra.mxu0 0
  %3897 = vmatprep.mubr.bf16.mxu0 0
  %3898 = vmatmul.mubr.bf16.gmra.mrb[0].mxu0 %v3860
  %v3899 = vpop.f32.mrb[0].mxu0
  %v3900 = vadd.f32 0.0, %v3899
  %v3901 = vpop.f32.mrb[0].mxu0
  %v3902 = vadd.f32 0.0, %v3901
  %v3903 = vpop.f32.mrb[0].mxu0
  %v3904 = vpop.f32.mrb[0].mxu0
  %3905 = vdwg.mxu0
  %3906 = vmatprep.subr.bf16.mxu0 %v3580
  %3907 = vmatpush1.bf16.msra.mxu0 %v3579
  %3908 = vmatprep.subr.bf16.mxu0 %v3584
  %3909 = vmatpush1.bf16.msra.mxu0 %v3583
  %3910 = vmatprep.subr.bf16.mxu0 %v3588
  %3911 = vmatpush1.bf16.msra.mxu0 %v3587
  %3912 = vmatprep.subr.bf16.mxu0 %v3592
  %3913 = vmatpush1.bf16.msra.mxu0 %v3591
  %3914 = vmatprep.subr.bf16.mxu0 %v3596
  %3915 = vmatpush1.bf16.msra.mxu0 %v3595
  %3916 = vmatprep.subr.bf16.mxu0 %v3600
  %3917 = vmatpush1.bf16.msra.mxu0 %v3599
  %3918 = vmatprep.subr.bf16.mxu0 %v3604
  %3919 = vmatpush1.bf16.msra.mxu0 %v3603
  %3920 = vmatprep.subr.bf16.mxu0 %v3608
  %3921 = vmatpush1.bf16.msra.mxu0 %v3607
  %3922 = vmatprep.subr.bf16.mxu0 0
  %3923 = vmatpush1.bf16.msra.mxu0 0
  %3924 = vmatprep.subr.bf16.mxu0 0
  %3925 = vmatpush1.bf16.msra.mxu0 0
  %3926 = vmatprep.subr.bf16.mxu0 0
  %3927 = vmatpush1.bf16.msra.mxu0 0
  %3928 = vmatprep.subr.bf16.mxu0 0
  %3929 = vmatpush1.bf16.msra.mxu0 0
  %3930 = vmatprep.subr.bf16.mxu0 0
  %3931 = vmatpush1.bf16.msra.mxu0 0
  %3932 = vmatprep.subr.bf16.mxu0 0
  %3933 = vmatpush1.bf16.msra.mxu0 0
  %3934 = vmatprep.subr.bf16.mxu0 0
  %3935 = vmatpush1.bf16.msra.mxu0 0
  %3936 = vmatprep.subr.bf16.mxu0 0
  %3937 = vmatpush1.bf16.msra.mxu0 0
  %3938 = vmatprep.mubr.bf16.mxu0 0
  %3939 = vmatmul.mubr.bf16.gmra.mrb[0].mxu0 %v3860
  %v3940 = vpop.f32.mrb[0].mxu0
  %v3941 = vadd.f32 0.0, %v3940
  %v3942 = vpop.f32.mrb[0].mxu0
  %v3943 = vadd.f32 0.0, %v3942
  %v3944 = vpop.f32.mrb[0].mxu0
  %v3945 = vpop.f32.mrb[0].mxu0
  %3946 = vdwg.mxu0
  %v3947 = vadd.f32 %v3861, %v3900
  %v3948 = vadd.f32 %v3862, %v3902
  %v3949 = vadd.f32 %v3863, %v3941
  %v3950 = vadd.f32 %v3864, %v3943
  %v3951 = vsub.f32 0.0, %v3947
  %v3952 = vmul.f32 %v3951, 1.442695
  %v3953 = vpow.pop %v3952
  %v3954 = vadd.f32 %v3953, 1.0
  %v3955 = vrcp.pop %v3954
  %v3956 = vsub.f32 0.0, %v3948
  %v3957 = vmul.f32 %v3956, 1.442695
  %v3958 = vpow.pop %v3957
  %v3959 = vadd.f32 %v3958, 1.0
  %v3960 = vrcp.pop %v3959
  %v3961 = vtanh.pop %v3949
  %v3962 = vsub.f32 0.0, %v3950
  %v3963 = vmul.f32 %v3962, 1.442695
  %v3964 = vpow.pop %v3963
  %v3965 = vadd.f32 %v3964, 1.0
  %v3966 = vrcp.pop %v3965
  %v3967 = vmul.f32 %v3960, %v3857
  %v3968 = vmul.f32 %v3955, %v3961
  %v3969 = vadd.f32 %v3967, %v3968
  %v3970 = vtanh.pop %v3969
  %v3971 = vmul.f32 %v3966, %v3970
  %v3972 = vpack.c.bf16 %v3971, %v3971
  %v3973 = vld [vmem:[%s1482] sm:$0xff]
  %v3974 = vld [vmem:[%s1482 + $0x8] sm:$0xff]
  %v3975 = vld [vmem:[%s1482 + $0x10] sm:$0xff]
  %v3976 = vld [vmem:[%s1482 + $0x18] sm:$0xff]
  %3977 = vmatprep.subr.bf16.mxu0 %v3578
  %3978 = vmatpush1.bf16.msra.mxu0 %v3577
  %3979 = vmatprep.subr.bf16.mxu0 %v3582
  %3980 = vmatpush1.bf16.msra.mxu0 %v3581
  %3981 = vmatprep.subr.bf16.mxu0 %v3586
  %3982 = vmatpush1.bf16.msra.mxu0 %v3585
  %3983 = vmatprep.subr.bf16.mxu0 %v3590
  %3984 = vmatpush1.bf16.msra.mxu0 %v3589
  %3985 = vmatprep.subr.bf16.mxu0 %v3594
  %3986 = vmatpush1.bf16.msra.mxu0 %v3593
  %3987 = vmatprep.subr.bf16.mxu0 %v3598
  %3988 = vmatpush1.bf16.msra.mxu0 %v3597
  %3989 = vmatprep.subr.bf16.mxu0 %v3602
  %3990 = vmatpush1.bf16.msra.mxu0 %v3601
  %3991 = vmatprep.subr.bf16.mxu0 %v3606
  %3992 = vmatpush1.bf16.msra.mxu0 %v3605
  %3993 = vmatprep.subr.bf16.mxu0 0
  %3994 = vmatpush1.bf16.msra.mxu0 0
  %3995 = vmatprep.subr.bf16.mxu0 0
  %3996 = vmatpush1.bf16.msra.mxu0 0
  %3997 = vmatprep.subr.bf16.mxu0 0
  %3998 = vmatpush1.bf16.msra.mxu0 0
  %3999 = vmatprep.subr.bf16.mxu0 0
  %4000 = vmatpush1.bf16.msra.mxu0 0
  %4001 = vmatprep.subr.bf16.mxu0 0
  %4002 = vmatpush1.bf16.msra.mxu0 0
  %4003 = vmatprep.subr.bf16.mxu0 0
  %4004 = vmatpush1.bf16.msra.mxu0 0
  %4005 = vmatprep.subr.bf16.mxu0 0
  %4006 = vmatpush1.bf16.msra.mxu0 0
  %4007 = vmatprep.subr.bf16.mxu0 0
  %4008 = vmatpush1.bf16.msra.mxu0 0
  %4009 = vmatprep.mubr.bf16.mxu0 0
  %4010 = vmatmul.mubr.bf16.gmra.mrb[0].mxu0 %v3972
  %v4011 = vpop.f32.mrb[0].mxu0
  %v4012 = vadd.f32 0.0, %v4011
  %v4013 = vpop.f32.mrb[0].mxu0
  %v4014 = vadd.f32 0.0, %v4013
  %v4015 = vpop.f32.mrb[0].mxu0
  %v4016 = vpop.f32.mrb[0].mxu0
  %4017 = vdwg.mxu0
  %4018 = vmatprep.subr.bf16.mxu0 %v3580
  %4019 = vmatpush1.bf16.msra.mxu0 %v3579
  %4020 = vmatprep.subr.bf16.mxu0 %v3584
  %4021 = vmatpush1.bf16.msra.mxu0 %v3583
  %4022 = vmatprep.subr.bf16.mxu0 %v3588
  %4023 = vmatpush1.bf16.msra.mxu0 %v3587
  %4024 = vmatprep.subr.bf16.mxu0 %v3592
  %4025 = vmatpush1.bf16.msra.mxu0 %v3591
  %4026 = vmatprep.subr.bf16.mxu0 %v3596
  %4027 = vmatpush1.bf16.msra.mxu0 %v3595
  %4028 = vmatprep.subr.bf16.mxu0 %v3600
  %4029 = vmatpush1.bf16.msra.mxu0 %v3599
  %4030 = vmatprep.subr.bf16.mxu0 %v3604
  %4031 = vmatpush1.bf16.msra.mxu0 %v3603
  %4032 = vmatprep.subr.bf16.mxu0 %v3608
  %4033 = vmatpush1.bf16.msra.mxu0 %v3607
  %4034 = vmatprep.subr.bf16.mxu0 0
  %4035 = vmatpush1.bf16.msra.mxu0 0
  %4036 = vmatprep.subr.bf16.mxu0 0
  %4037 = vmatpush1.bf16.msra.mxu0 0
  %4038 = vmatprep.subr.bf16.mxu0 0
  %4039 = vmatpush1.bf16.msra.mxu0 0
  %4040 = vmatprep.subr.bf16.mxu0 0
  %4041 = vmatpush1.bf16.msra.mxu0 0
  %4042 = vmatprep.subr.bf16.mxu0 0
  %4043 = vmatpush1.bf16.msra.mxu0 0
  %4044 = vmatprep.subr.bf16.mxu0 0
  %4045 = vmatpush1.bf16.msra.mxu0 0
  %4046 = vmatprep.subr.bf16.mxu0 0
  %4047 = vmatpush1.bf16.msra.mxu0 0
  %4048 = vmatprep.subr.bf16.mxu0 0
  %4049 = vmatpush1.bf16.msra.mxu0 0
  %4050 = vmatprep.mubr.bf16.mxu0 0
  %4051 = vmatmul.mubr.bf16.gmra.mrb[0].mxu0 %v3972
  %v4052 = vpop.f32.mrb[0].mxu0
  %v4053 = vadd.f32 0.0, %v4052
  %v4054 = vpop.f32.mrb[0].mxu0
  %v4055 = vadd.f32 0.0, %v4054
  %v4056 = vpop.f32.mrb[0].mxu0
  %v4057 = vpop.f32.mrb[0].mxu0
  %4058 = vdwg.mxu0
  %v4059 = vadd.f32 %v3973, %v4012
  %v4060 = vadd.f32 %v3974, %v4014
  %v4061 = vadd.f32 %v3975, %v4053
  %v4062 = vadd.f32 %v3976, %v4055
  %v4063 = vsub.f32 0.0, %v4059
  %v4064 = vmul.f32 %v4063, 1.442695
  %v4065 = vpow.pop %v4064
  %v4066 = vadd.f32 %v4065, 1.0
  %v4067 = vrcp.pop %v4066
  %v4068 = vsub.f32 0.0, %v4060
  %v4069 = vmul.f32 %v4068, 1.442695
  %v4070 = vpow.pop %v4069
  %v4071 = vadd.f32 %v4070, 1.0
  %v4072 = vrcp.pop %v4071
  %v4073 = vtanh.pop %v4061
  %v4074 = vsub.f32 0.0, %v4062
  %v4075 = vmul.f32 %v4074, 1.442695
  %v4076 = vpow.pop %v4075
  %v4077 = vadd.f32 %v4076, 1.0
  %v4078 = vrcp.pop %v4077
  %v4079 = vmul.f32 %v4072, %v3969
  %v4080 = vmul.f32 %v4067, %v4073
  %v4081 = vadd.f32 %v4079, %v4080
  %v4082 = vtanh.pop %v4081
  %v4083 = vmul.f32 %v4078, %v4082
  %v4084 = vpack.c.bf16 %v4083, %v4083
  %v4085 = vld [vmem:[%s1789] sm:$0xff]
  %v4086 = vld [vmem:[%s1789 + $0x8] sm:$0xff]
  %v4087 = vld [vmem:[%s1789 + $0x10] sm:$0xff]
  %v4088 = vld [vmem:[%s1789 + $0x18] sm:$0xff]
  %4089 = vmatprep.subr.bf16.mxu0 %v3578
  %4090 = vmatpush1.bf16.msra.mxu0 %v3577
  %4091 = vmatprep.subr.bf16.mxu0 %v3582
  %4092 = vmatpush1.bf16.msra.mxu0 %v3581
  %4093 = vmatprep.subr.bf16.mxu0 %v3586
  %4094 = vmatpush1.bf16.msra.mxu0 %v3585
  %4095 = vmatprep.subr.bf16.mxu0 %v3590
  %4096 = vmatpush1.bf16.msra.mxu0 %v3589
  %4097 = vmatprep.subr.bf16.mxu0 %v3594
  %4098 = vmatpush1.bf16.msra.mxu0 %v3593
  %4099 = vmatprep.subr.bf16.mxu0 %v3598
  %4100 = vmatpush1.bf16.msra.mxu0 %v3597
  %4101 = vmatprep.subr.bf16.mxu0 %v3602
  %4102 = vmatpush1.bf16.msra.mxu0 %v3601
  %4103 = vmatprep.subr.bf16.mxu0 %v3606
  %4104 = vmatpush1.bf16.msra.mxu0 %v3605
  %4105 = vmatprep.subr.bf16.mxu0 0
  %4106 = vmatpush1.bf16.msra.mxu0 0
  %4107 = vmatprep.subr.bf16.mxu0 0
  %4108 = vmatpush1.bf16.msra.mxu0 0
  %4109 = vmatprep.subr.bf16.mxu0 0
  %4110 = vmatpush1.bf16.msra.mxu0 0
  %4111 = vmatprep.subr.bf16.mxu0 0
  %4112 = vmatpush1.bf16.msra.mxu0 0
  %4113 = vmatprep.subr.bf16.mxu0 0
  %4114 = vmatpush1.bf16.msra.mxu0 0
  %4115 = vmatprep.subr.bf16.mxu0 0
  %4116 = vmatpush1.bf16.msra.mxu0 0
  %4117 = vmatprep.subr.bf16.mxu0 0
  %4118 = vmatpush1.bf16.msra.mxu0 0
  %4119 = vmatprep.subr.bf16.mxu0 0
  %4120 = vmatpush1.bf16.msra.mxu0 0
  %4121 = vmatprep.mubr.bf16.mxu0 0
  %4122 = vmatmul.mubr.bf16.gmra.mrb[0].mxu0 %v4084
  %v4123 = vpop.f32.mrb[0].mxu0
  %v4124 = vadd.f32 0.0, %v4123
  %v4125 = vpop.f32.mrb[0].mxu0
  %v4126 = vadd.f32 0.0, %v4125
  %v4127 = vpop.f32.mrb[0].mxu0
  %v4128 = vpop.f32.mrb[0].mxu0
  %4129 = vdwg.mxu0
  %4130 = vmatprep.subr.bf16.mxu0 %v3580
  %4131 = vmatpush1.bf16.msra.mxu0 %v3579
  %4132 = vmatprep.subr.bf16.mxu0 %v3584
  %4133 = vmatpush1.bf16.msra.mxu0 %v3583
  %4134 = vmatprep.subr.bf16.mxu0 %v3588
  %4135 = vmatpush1.bf16.msra.mxu0 %v3587
  %4136 = vmatprep.subr.bf16.mxu0 %v3592
  %4137 = vmatpush1.bf16.msra.mxu0 %v3591
  %4138 = vmatprep.subr.bf16.mxu0 %v3596
  %4139 = vmatpush1.bf16.msra.mxu0 %v3595
  %4140 = vmatprep.subr.bf16.mxu0 %v3600
  %4141 = vmatpush1.bf16.msra.mxu0 %v3599
  %4142 = vmatprep.subr.bf16.mxu0 %v3604
  %4143 = vmatpush1.bf16.msra.mxu0 %v3603
  %4144 = vmatprep.subr.bf16.mxu0 %v3608
  %4145 = vmatpush1.bf16.msra.mxu0 %v3607
  %4146 = vmatprep.subr.bf16.mxu0 0
  %4147 = vmatpush1.bf16.msra.mxu0 0
  %4148 = vmatprep.subr.bf16.mxu0 0
  %4149 = vmatpush1.bf16.msra.mxu0 0
  %4150 = vmatprep.subr.bf16.mxu0 0
  %4151 = vmatpush1.bf16.msra.mxu0 0
  %4152 = vmatprep.subr.bf16.mxu0 0
  %4153 = vmatpush1.bf16.msra.mxu0 0
  %4154 = vmatprep.subr.bf16.mxu0 0
  %4155 = vmatpush1.bf16.msra.mxu0 0
  %4156 = vmatprep.subr.bf16.mxu0 0
  %4157 = vmatpush1.bf16.msra.mxu0 0
  %4158 = vmatprep.subr.bf16.mxu0 0
  %4159 = vmatpush1.bf16.msra.mxu0 0
  %4160 = vmatprep.subr.bf16.mxu0 0
  %4161 = vmatpush1.bf16.msra.mxu0 0
  %4162 = vmatprep.mubr.bf16.mxu0 0
  %4163 = vmatmul.mubr.bf16.gmra.mrb[0].mxu0 %v4084
  %v4164 = vpop.f32.mrb[0].mxu0
  %v4165 = vadd.f32 0.0, %v4164
  %v4166 = vpop.f32.mrb[0].mxu0
  %v4167 = vadd.f32 0.0, %v4166
  %v4168 = vpop.f32.mrb[0].mxu0
  %v4169 = vpop.f32.mrb[0].mxu0
  %4170 = vdwg.mxu0
  %v4171 = vadd.f32 %v4085, %v4124
  %v4172 = vadd.f32 %v4086, %v4126
  %v4173 = vadd.f32 %v4087, %v4165
  %v4174 = vadd.f32 %v4088, %v4167
  %v4175 = vsub.f32 0.0, %v4171
  %v4176 = vmul.f32 %v4175, 1.442695
  %v4177 = vpow.pop %v4176
  %v4178 = vadd.f32 %v4177, 1.0
  %v4179 = vrcp.pop %v4178
  %v4180 = vsub.f32 0.0, %v4172
  %v4181 = vmul.f32 %v4180, 1.442695
  %v4182 = vpow.pop %v4181
  %v4183 = vadd.f32 %v4182, 1.0
  %v4184 = vrcp.pop %v4183
  %v4185 = vtanh.pop %v4173
  %v4186 = vsub.f32 0.0, %v4174
  %v4187 = vmul.f32 %v4186, 1.442695
  %v4188 = vpow.pop %v4187
  %v4189 = vadd.f32 %v4188, 1.0
  %v4190 = vrcp.pop %v4189
  %v4191 = vmul.f32 %v4184, %v4081
  %v4192 = vmul.f32 %v4179, %v4185
  %v4193 = vadd.f32 %v4191, %v4192
  %v4194 = vtanh.pop %v4193
  %v4195 = vmul.f32 %v4190, %v4194
  %v4196 = vpack.c.bf16 %v4195, %v4195
  %v4197 = vld [vmem:[%s2096] sm:$0xff]
  %v4198 = vld [vmem:[%s2096 + $0x8] sm:$0xff]
  %v4199 = vld [vmem:[%s2096 + $0x10] sm:$0xff]
  %v4200 = vld [vmem:[%s2096 + $0x18] sm:$0xff]
  %4201 = vmatprep.subr.bf16.mxu0 %v3578
  %4202 = vmatpush1.bf16.msra.mxu0 %v3577
  %4203 = vmatprep.subr.bf16.mxu0 %v3582
  %4204 = vmatpush1.bf16.msra.mxu0 %v3581
  %4205 = vmatprep.subr.bf16.mxu0 %v3586
  %4206 = vmatpush1.bf16.msra.mxu0 %v3585
  %4207 = vmatprep.subr.bf16.mxu0 %v3590
  %4208 = vmatpush1.bf16.msra.mxu0 %v3589
  %4209 = vmatprep.subr.bf16.mxu0 %v3594
  %4210 = vmatpush1.bf16.msra.mxu0 %v3593
  %4211 = vmatprep.subr.bf16.mxu0 %v3598
  %4212 = vmatpush1.bf16.msra.mxu0 %v3597
  %4213 = vmatprep.subr.bf16.mxu0 %v3602
  %4214 = vmatpush1.bf16.msra.mxu0 %v3601
  %4215 = vmatprep.subr.bf16.mxu0 %v3606
  %4216 = vmatpush1.bf16.msra.mxu0 %v3605
  %4217 = vmatprep.subr.bf16.mxu0 0
  %4218 = vmatpush1.bf16.msra.mxu0 0
  %4219 = vmatprep.subr.bf16.mxu0 0
  %4220 = vmatpush1.bf16.msra.mxu0 0
  %4221 = vmatprep.subr.bf16.mxu0 0
  %4222 = vmatpush1.bf16.msra.mxu0 0
  %4223 = vmatprep.subr.bf16.mxu0 0
  %4224 = vmatpush1.bf16.msra.mxu0 0
  %4225 = vmatprep.subr.bf16.mxu0 0
  %4226 = vmatpush1.bf16.msra.mxu0 0
  %4227 = vmatprep.subr.bf16.mxu0 0
  %4228 = vmatpush1.bf16.msra.mxu0 0
  %4229 = vmatprep.subr.bf16.mxu0 0
  %4230 = vmatpush1.bf16.msra.mxu0 0
  %4231 = vmatprep.subr.bf16.mxu0 0
  %4232 = vmatpush1.bf16.msra.mxu0 0
  %4233 = vmatprep.mubr.bf16.mxu0 0
  %4234 = vmatmul.mubr.bf16.gmra.mrb[0].mxu0 %v4196
  %v4235 = vpop.f32.mrb[0].mxu0
  %v4236 = vadd.f32 0.0, %v4235
  %v4237 = vpop.f32.mrb[0].mxu0
  %v4238 = vadd.f32 0.0, %v4237
  %v4239 = vpop.f32.mrb[0].mxu0
  %v4240 = vpop.f32.mrb[0].mxu0
  %4241 = vdwg.mxu0
  %4242 = vmatprep.subr.bf16.mxu0 %v3580
  %4243 = vmatpush1.bf16.msra.mxu0 %v3579
  %4244 = vmatprep.subr.bf16.mxu0 %v3584
  %4245 = vmatpush1.bf16.msra.mxu0 %v3583
  %4246 = vmatprep.subr.bf16.mxu0 %v3588
  %4247 = vmatpush1.bf16.msra.mxu0 %v3587
  %4248 = vmatprep.subr.bf16.mxu0 %v3592
  %4249 = vmatpush1.bf16.msra.mxu0 %v3591
  %4250 = vmatprep.subr.bf16.mxu0 %v3596
  %4251 = vmatpush1.bf16.msra.mxu0 %v3595
  %4252 = vmatprep.subr.bf16.mxu0 %v3600
  %4253 = vmatpush1.bf16.msra.mxu0 %v3599
  %4254 = vmatprep.subr.bf16.mxu0 %v3604
  %4255 = vmatpush1.bf16.msra.mxu0 %v3603
  %4256 = vmatprep.subr.bf16.mxu0 %v3608
  %4257 = vmatpush1.bf16.msra.mxu0 %v3607
  %4258 = vmatprep.subr.bf16.mxu0 0
  %4259 = vmatpush1.bf16.msra.mxu0 0
  %4260 = vmatprep.subr.bf16.mxu0 0
  %4261 = vmatpush1.bf16.msra.mxu0 0
  %4262 = vmatprep.subr.bf16.mxu0 0
  %4263 = vmatpush1.bf16.msra.mxu0 0
  %4264 = vmatprep.subr.bf16.mxu0 0
  %4265 = vmatpush1.bf16.msra.mxu0 0
  %4266 = vmatprep.subr.bf16.mxu0 0
  %4267 = vmatpush1.bf16.msra.mxu0 0
  %4268 = vmatprep.subr.bf16.mxu0 0
  %4269 = vmatpush1.bf16.msra.mxu0 0
  %4270 = vmatprep.subr.bf16.mxu0 0
  %4271 = vmatpush1.bf16.msra.mxu0 0
  %4272 = vmatprep.subr.bf16.mxu0 0
  %4273 = vmatpush1.bf16.msra.mxu0 0
  %4274 = vmatprep.mubr.bf16.mxu0 0
  %4275 = vmatmul.mubr.bf16.gmra.mrb[0].mxu0 %v4196
  %v4276 = vpop.f32.mrb[0].mxu0
  %v4277 = vadd.f32 0.0, %v4276
  %v4278 = vpop.f32.mrb[0].mxu0
  %v4279 = vadd.f32 0.0, %v4278
  %v4280 = vpop.f32.mrb[0].mxu0
  %v4281 = vpop.f32.mrb[0].mxu0
  %4282 = vdwg.mxu0
  %v4283 = vadd.f32 %v4197, %v4236
  %v4284 = vadd.f32 %v4198, %v4238
  %v4285 = vadd.f32 %v4199, %v4277
  %v4286 = vadd.f32 %v4200, %v4279
  %v4287 = vsub.f32 0.0, %v4283
  %v4288 = vmul.f32 %v4287, 1.442695
  %v4289 = vpow.pop %v4288
  %v4290 = vadd.f32 %v4289, 1.0
  %v4291 = vrcp.pop %v4290
  %v4292 = vsub.f32 0.0, %v4284
  %v4293 = vmul.f32 %v4292, 1.442695
  %v4294 = vpow.pop %v4293
  %v4295 = vadd.f32 %v4294, 1.0
  %v4296 = vrcp.pop %v4295
  %v4297 = vtanh.pop %v4285
  %v4298 = vsub.f32 0.0, %v4286
  %v4299 = vmul.f32 %v4298, 1.442695
  %v4300 = vpow.pop %v4299
  %v4301 = vadd.f32 %v4300, 1.0
  %v4302 = vrcp.pop %v4301
  %v4303 = vmul.f32 %v4296, %v4193
  %v4304 = vmul.f32 %v4291, %v4297
  %v4305 = vadd.f32 %v4303, %v4304
  %v4306 = vtanh.pop %v4305
  %v4307 = vmul.f32 %v4302, %v4306
  %v4308 = vpack.c.bf16 %v4307, %v4307
  %v4309 = vld [vmem:[%s2403] sm:$0xff]
  %v4310 = vld [vmem:[%s2403 + $0x8] sm:$0xff]
  %v4311 = vld [vmem:[%s2403 + $0x10] sm:$0xff]
  %v4312 = vld [vmem:[%s2403 + $0x18] sm:$0xff]
  %4313 = vmatprep.subr.bf16.mxu0 %v3578
  %4314 = vmatpush1.bf16.msra.mxu0 %v3577
  %4315 = vmatprep.subr.bf16.mxu0 %v3582
  %4316 = vmatpush1.bf16.msra.mxu0 %v3581
  %4317 = vmatprep.subr.bf16.mxu0 %v3586
  %4318 = vmatpush1.bf16.msra.mxu0 %v3585
  %4319 = vmatprep.subr.bf16.mxu0 %v3590
  %4320 = vmatpush1.bf16.msra.mxu0 %v3589
  %4321 = vmatprep.subr.bf16.mxu0 %v3594
  %4322 = vmatpush1.bf16.msra.mxu0 %v3593
  %4323 = vmatprep.subr.bf16.mxu0 %v3598
  %4324 = vmatpush1.bf16.msra.mxu0 %v3597
  %4325 = vmatprep.subr.bf16.mxu0 %v3602
  %4326 = vmatpush1.bf16.msra.mxu0 %v3601
  %4327 = vmatprep.subr.bf16.mxu0 %v3606
  %4328 = vmatpush1.bf16.msra.mxu0 %v3605
  %4329 = vmatprep.subr.bf16.mxu0 0
  %4330 = vmatpush1.bf16.msra.mxu0 0
  %4331 = vmatprep.subr.bf16.mxu0 0
  %4332 = vmatpush1.bf16.msra.mxu0 0
  %4333 = vmatprep.subr.bf16.mxu0 0
  %4334 = vmatpush1.bf16.msra.mxu0 0
  %4335 = vmatprep.subr.bf16.mxu0 0
  %4336 = vmatpush1.bf16.msra.mxu0 0
  %4337 = vmatprep.subr.bf16.mxu0 0
  %4338 = vmatpush1.bf16.msra.mxu0 0
  %4339 = vmatprep.subr.bf16.mxu0 0
  %4340 = vmatpush1.bf16.msra.mxu0 0
  %4341 = vmatprep.subr.bf16.mxu0 0
  %4342 = vmatpush1.bf16.msra.mxu0 0
  %4343 = vmatprep.subr.bf16.mxu0 0
  %4344 = vmatpush1.bf16.msra.mxu0 0
  %4345 = vmatprep.mubr.bf16.mxu0 0
  %4346 = vmatmul.mubr.bf16.gmra.mrb[0].mxu0 %v4308
  %v4347 = vpop.f32.mrb[0].mxu0
  %v4348 = vadd.f32 0.0, %v4347
  %v4349 = vpop.f32.mrb[0].mxu0
  %v4350 = vadd.f32 0.0, %v4349
  %v4351 = vpop.f32.mrb[0].mxu0
  %v4352 = vpop.f32.mrb[0].mxu0
  %4353 = vdwg.mxu0
  %4354 = vmatprep.subr.bf16.mxu0 %v3580
  %4355 = vmatpush1.bf16.msra.mxu0 %v3579
  %4356 = vmatprep.subr.bf16.mxu0 %v3584
  %4357 = vmatpush1.bf16.msra.mxu0 %v3583
  %4358 = vmatprep.subr.bf16.mxu0 %v3588
  %4359 = vmatpush1.bf16.msra.mxu0 %v3587
  %4360 = vmatprep.subr.bf16.mxu0 %v3592
  %4361 = vmatpush1.bf16.msra.mxu0 %v3591
  %4362 = vmatprep.subr.bf16.mxu0 %v3596
  %4363 = vmatpush1.bf16.msra.mxu0 %v3595
  %4364 = vmatprep.subr.bf16.mxu0 %v3600
  %4365 = vmatpush1.bf16.msra.mxu0 %v3599
  %4366 = vmatprep.subr.bf16.mxu0 %v3604
  %4367 = vmatpush1.bf16.msra.mxu0 %v3603
  %4368 = vmatprep.subr.bf16.mxu0 %v3608
  %4369 = vmatpush1.bf16.msra.mxu0 %v3607
  %4370 = vmatprep.subr.bf16.mxu0 0
  %4371 = vmatpush1.bf16.msra.mxu0 0
  %4372 = vmatprep.subr.bf16.mxu0 0
  %4373 = vmatpush1.bf16.msra.mxu0 0
  %4374 = vmatprep.subr.bf16.mxu0 0
  %4375 = vmatpush1.bf16.msra.mxu0 0
  %4376 = vmatprep.subr.bf16.mxu0 0
  %4377 = vmatpush1.bf16.msra.mxu0 0
  %4378 = vmatprep.subr.bf16.mxu0 0
  %4379 = vmatpush1.bf16.msra.mxu0 0
  %4380 = vmatprep.subr.bf16.mxu0 0
  %4381 = vmatpush1.bf16.msra.mxu0 0
  %4382 = vmatprep.subr.bf16.mxu0 0
  %4383 = vmatpush1.bf16.msra.mxu0 0
  %4384 = vmatprep.subr.bf16.mxu0 0
  %4385 = vmatpush1.bf16.msra.mxu0 0
  %4386 = vmatprep.mubr.bf16.mxu0 0
  %4387 = vmatmul.mubr.bf16.gmra.mrb[0].mxu0 %v4308
  %v4388 = vpop.f32.mrb[0].mxu0
  %v4389 = vadd.f32 0.0, %v4388
  %v4390 = vpop.f32.mrb[0].mxu0
  %v4391 = vadd.f32 0.0, %v4390
  %v4392 = vpop.f32.mrb[0].mxu0
  %v4393 = vpop.f32.mrb[0].mxu0
  %4394 = vdwg.mxu0
  %v4395 = vadd.f32 %v4309, %v4348
  %v4396 = vadd.f32 %v4310, %v4350
  %v4397 = vadd.f32 %v4311, %v4389
  %v4398 = vadd.f32 %v4312, %v4391
  %v4399 = vsub.f32 0.0, %v4395
  %v4400 = vmul.f32 %v4399, 1.442695
  %v4401 = vpow.pop %v4400
  %v4402 = vadd.f32 %v4401, 1.0
  %v4403 = vrcp.pop %v4402
  %v4404 = vsub.f32 0.0, %v4396
  %v4405 = vmul.f32 %v4404, 1.442695
  %v4406 = vpow.pop %v4405
  %v4407 = vadd.f32 %v4406, 1.0
  %v4408 = vrcp.pop %v4407
  %v4409 = vtanh.pop %v4397
  %v4410 = vsub.f32 0.0, %v4398
  %v4411 = vmul.f32 %v4410, 1.442695
  %v4412 = vpow.pop %v4411
  %v4413 = vadd.f32 %v4412, 1.0
  %v4414 = vrcp.pop %v4413
  %v4415 = vmul.f32 %v4408, %v4305
  %v4416 = vmul.f32 %v4403, %v4409
  %v4417 = vadd.f32 %v4415, %v4416
  %v4418 = vtanh.pop %v4417
  %v4419 = vmul.f32 %v4414, %v4418
  %v4420 = vpack.c.bf16 %v4419, %v4419
  %v4421 = vld [vmem:[%s2710] sm:$0xff]
  %v4422 = vld [vmem:[%s2710 + $0x8] sm:$0xff]
  %v4423 = vld [vmem:[%s2710 + $0x10] sm:$0xff]
  %v4424 = vld [vmem:[%s2710 + $0x18] sm:$0xff]
  %4425 = vmatprep.subr.bf16.mxu0 %v3578
  %4426 = vmatpush1.bf16.msra.mxu0 %v3577
  %4427 = vmatprep.subr.bf16.mxu0 %v3582
  %4428 = vmatpush1.bf16.msra.mxu0 %v3581
  %4429 = vmatprep.subr.bf16.mxu0 %v3586
  %4430 = vmatpush1.bf16.msra.mxu0 %v3585
  %4431 = vmatprep.subr.bf16.mxu0 %v3590
  %4432 = vmatpush1.bf16.msra.mxu0 %v3589
  %4433 = vmatprep.subr.bf16.mxu0 %v3594
  %4434 = vmatpush1.bf16.msra.mxu0 %v3593
  %4435 = vmatprep.subr.bf16.mxu0 %v3598
  %4436 = vmatpush1.bf16.msra.mxu0 %v3597
  %4437 = vmatprep.subr.bf16.mxu0 %v3602
  %4438 = vmatpush1.bf16.msra.mxu0 %v3601
  %4439 = vmatprep.subr.bf16.mxu0 %v3606
  %4440 = vmatpush1.bf16.msra.mxu0 %v3605
  %4441 = vmatprep.subr.bf16.mxu0 0
  %4442 = vmatpush1.bf16.msra.mxu0 0
  %4443 = vmatprep.subr.bf16.mxu0 0
  %4444 = vmatpush1.bf16.msra.mxu0 0
  %4445 = vmatprep.subr.bf16.mxu0 0
  %4446 = vmatpush1.bf16.msra.mxu0 0
  %4447 = vmatprep.subr.bf16.mxu0 0
  %4448 = vmatpush1.bf16.msra.mxu0 0
  %4449 = vmatprep.subr.bf16.mxu0 0
  %4450 = vmatpush1.bf16.msra.mxu0 0
  %4451 = vmatprep.subr.bf16.mxu0 0
  %4452 = vmatpush1.bf16.msra.mxu0 0
  %4453 = vmatprep.subr.bf16.mxu0 0
  %4454 = vmatpush1.bf16.msra.mxu0 0
  %4455 = vmatprep.subr.bf16.mxu0 0
  %4456 = vmatpush1.bf16.msra.mxu0 0
  %4457 = vmatprep.mubr.bf16.mxu0 0
  %4458 = vmatmul.mubr.bf16.gmra.mrb[0].mxu0 %v4420
  %v4459 = vpop.f32.mrb[0].mxu0
  %v4460 = vadd.f32 0.0, %v4459
  %v4461 = vpop.f32.mrb[0].mxu0
  %v4462 = vadd.f32 0.0, %v4461
  %v4463 = vpop.f32.mrb[0].mxu0
  %v4464 = vpop.f32.mrb[0].mxu0
  %4465 = vdwg.mxu0
  %4466 = vmatprep.subr.bf16.mxu0 %v3580
  %4467 = vmatpush1.bf16.msra.mxu0 %v3579
  %4468 = vmatprep.subr.bf16.mxu0 %v3584
  %4469 = vmatpush1.bf16.msra.mxu0 %v3583
  %4470 = vmatprep.subr.bf16.mxu0 %v3588
  %4471 = vmatpush1.bf16.msra.mxu0 %v3587
  %4472 = vmatprep.subr.bf16.mxu0 %v3592
  %4473 = vmatpush1.bf16.msra.mxu0 %v3591
  %4474 = vmatprep.subr.bf16.mxu0 %v3596
  %4475 = vmatpush1.bf16.msra.mxu0 %v3595
  %4476 = vmatprep.subr.bf16.mxu0 %v3600
  %4477 = vmatpush1.bf16.msra.mxu0 %v3599
  %4478 = vmatprep.subr.bf16.mxu0 %v3604
  %4479 = vmatpush1.bf16.msra.mxu0 %v3603
  %4480 = vmatprep.subr.bf16.mxu0 %v3608
  %4481 = vmatpush1.bf16.msra.mxu0 %v3607
  %4482 = vmatprep.subr.bf16.mxu0 0
  %4483 = vmatpush1.bf16.msra.mxu0 0
  %4484 = vmatprep.subr.bf16.mxu0 0
  %4485 = vmatpush1.bf16.msra.mxu0 0
  %4486 = vmatprep.subr.bf16.mxu0 0
  %4487 = vmatpush1.bf16.msra.mxu0 0
  %4488 = vmatprep.subr.bf16.mxu0 0
  %4489 = vmatpush1.bf16.msra.mxu0 0
  %4490 = vmatprep.subr.bf16.mxu0 0
  %4491 = vmatpush1.bf16.msra.mxu0 0
  %4492 = vmatprep.subr.bf16.mxu0 0
  %4493 = vmatpush1.bf16.msra.mxu0 0
  %4494 = vmatprep.subr.bf16.mxu0 0
  %4495 = vmatpush1.bf16.msra.mxu0 0
  %4496 = vmatprep.subr.bf16.mxu0 0
  %4497 = vmatpush1.bf16.msra.mxu0 0
  %4498 = vmatprep.mubr.bf16.mxu0 0
  %4499 = vmatmul.mubr.bf16.gmra.mrb[0].mxu0 %v4420
  %v4500 = vpop.f32.mrb[0].mxu0
  %v4501 = vadd.f32 0.0, %v4500
  %v4502 = vpop.f32.mrb[0].mxu0
  %v4503 = vadd.f32 0.0, %v4502
  %v4504 = vpop.f32.mrb[0].mxu0
  %v4505 = vpop.f32.mrb[0].mxu0
  %4506 = vdwg.mxu0
  %v4507 = vadd.f32 %v4421, %v4460
  %v4508 = vadd.f32 %v4422, %v4462
  %v4509 = vadd.f32 %v4423, %v4501
  %v4510 = vadd.f32 %v4424, %v4503
  %v4511 = vsub.f32 0.0, %v4507
  %v4512 = vmul.f32 %v4511, 1.442695
  %v4513 = vpow.pop %v4512
  %v4514 = vadd.f32 %v4513, 1.0
  %v4515 = vrcp.pop %v4514
  %v4516 = vsub.f32 0.0, %v4508
  %v4517 = vmul.f32 %v4516, 1.442695
  %v4518 = vpow.pop %v4517
  %v4519 = vadd.f32 %v4518, 1.0
  %v4520 = vrcp.pop %v4519
  %v4521 = vtanh.pop %v4509
  %v4522 = vsub.f32 0.0, %v4510
  %v4523 = vmul.f32 %v4522, 1.442695
  %v4524 = vpow.pop %v4523
  %v4525 = vadd.f32 %v4524, 1.0
  %v4526 = vrcp.pop %v4525
  %v4527 = vmul.f32 %v4520, %v4417
  %v4528 = vmul.f32 %v4515, %v4521
  %v4529 = vadd.f32 %v4527, %v4528
  %v4530 = vtanh.pop %v4529
  %v4531 = vmul.f32 %v4526, %v4530
  %v4532 = vpack.c.bf16 %v4531, %v4531
  %4533 = vst [vmem:[#allocation6] sm:$0xf] %v4532
  %4534 = vst [vmem:[#allocation7] sm:$0xff] %v4529
  // Predicated region
  $region42: #{_lambda_.1} parent=0 // pred_check
    %p4535 = pneg %p33
  $region43: #{_lambda_.1} parent=0 // pred_check_branch
    %4537 = sbr.rel (%p4535) target = $region45
  $region44: #{_lambda_.1} parent=0 // pred_region
    %v4538 = vld [vmem:[#allocation6] sm:$0xf]
    %v4539 = vld [vmem:[%s7] sm:$0xf]
    %v4540 = vld [vmem:[%s7 + $0x4] sm:$0xf]
    %v4541 = vld [vmem:[%s7 + $0x8] sm:$0xf]
    %v4542 = vld [vmem:[%s7 + $0xc] sm:$0xf]
    %v4543 = vld [vmem:[%s7 + $0x10] sm:$0xf]
    %v4544 = vld [vmem:[%s7 + $0x14] sm:$0xf]
    %v4545 = vld [vmem:[%s7 + $0x18] sm:$0xf]
    %v4546 = vld [vmem:[%s7 + $0x1c] sm:$0xf]
    %v4547 = vld [vmem:[%s7 + $0x20] sm:$0xf]
    %v4548 = vld [vmem:[%s7 + $0x24] sm:$0xf]
    %v4549 = vld [vmem:[%s7 + $0x28] sm:$0xf]
    %v4550 = vld [vmem:[%s7 + $0x2c] sm:$0xf]
    %v4551 = vld [vmem:[%s7 + $0x30] sm:$0xf]
    %v4552 = vld [vmem:[%s7 + $0x34] sm:$0xf]
    %v4553 = vld [vmem:[%s7 + $0x38] sm:$0xf]
    %v4554 = vld [vmem:[%s7 + $0x3c] sm:$0xf]
    %v4555 = vld [vmem:[%s8] sm:$0x1]
    %v4557 = vlaneseq
    %v4558 = vshrl.u32 %v4557, 7
    %v4559 = vsub.s32 0, %v4558
    %v4560 = vrot.slane %v4555, %v4559
    %v4578 = vunpack.c.l.b16 %v4539
    %v4579 = vunpack.c.l.b16 %v4540
    %v4580 = vunpack.c.l.b16 %v4541
    %v4581 = vunpack.c.l.b16 %v4542
    %v4582 = vunpack.c.l.b16 %v4543
    %v4583 = vunpack.c.l.b16 %v4544
    %v4584 = vunpack.c.l.b16 %v4545
    %v4585 = vunpack.c.l.b16 %v4546
    %v4586 = vunpack.c.l.b16 %v4547
    %v4587 = vunpack.c.l.b16 %v4548
    %v4588 = vunpack.c.l.b16 %v4549
    %v4589 = vunpack.c.l.b16 %v4550
    %v4590 = vunpack.c.l.b16 %v4551
    %v4591 = vunpack.c.l.b16 %v4552
    %v4592 = vunpack.c.l.b16 %v4553
    %v4593 = vunpack.c.l.b16 %v4554
    %v4594 = vpack.c.b16 %v4579, %v4578
    %v4595 = vpack.c.b16 %v4581, %v4580
    %v4596 = vpack.c.b16 %v4583, %v4582
    %v4597 = vpack.c.b16 %v4585, %v4584
    %v4598 = vpack.c.b16 %v4587, %v4586
    %v4599 = vpack.c.b16 %v4589, %v4588
    %v4600 = vpack.c.b16 %v4591, %v4590
    %v4601 = vpack.c.b16 %v4593, %v4592
    %4610 = vmatprep.subr.bf16.mxu0 0
    %4611 = vmatpush1.bf16.msra.mxu0 %v4594
    %4612 = vmatprep.subr.bf16.mxu0 0
    %4613 = vmatpush1.bf16.msra.mxu0 %v4595
    %4614 = vmatprep.subr.bf16.mxu0 0
    %4615 = vmatpush1.bf16.msra.mxu0 %v4596
    %4616 = vmatprep.subr.bf16.mxu0 0
    %4617 = vmatpush1.bf16.msra.mxu0 %v4597
    %4618 = vmatprep.subr.bf16.mxu0 0
    %4619 = vmatpush1.bf16.msra.mxu0 %v4598
    %4620 = vmatprep.subr.bf16.mxu0 0
    %4621 = vmatpush1.bf16.msra.mxu0 %v4599
    %4622 = vmatprep.subr.bf16.mxu0 0
    %4623 = vmatpush1.bf16.msra.mxu0 %v4600
    %4624 = vmatprep.subr.bf16.mxu0 0
    %4625 = vmatpush1.bf16.msra.mxu0 %v4601
    %4626 = vmatprep.subr.bf16.mxu0 0
    %4627 = vmatpush1.bf16.msra.mxu0 0
    %4628 = vmatprep.subr.bf16.mxu0 0
    %4629 = vmatpush1.bf16.msra.mxu0 0
    %4630 = vmatprep.subr.bf16.mxu0 0
    %4631 = vmatpush1.bf16.msra.mxu0 0
    %4632 = vmatprep.subr.bf16.mxu0 0
    %4633 = vmatpush1.bf16.msra.mxu0 0
    %4634 = vmatprep.subr.bf16.mxu0 0
    %4635 = vmatpush1.bf16.msra.mxu0 0
    %4636 = vmatprep.subr.bf16.mxu0 0
    %4637 = vmatpush1.bf16.msra.mxu0 0
    %4638 = vmatprep.subr.bf16.mxu0 0
    %4639 = vmatpush1.bf16.msra.mxu0 0
    %4640 = vmatprep.subr.bf16.mxu0 0
    %4641 = vmatpush1.bf16.msra.mxu0 0
    %4642 = vmatprep.mubr.bf16.mxu0 0
    %4643 = vmatmul.mubr.bf16.gmra.mrb[0].mxu0 %v4538
    %v4644 = vpop.f32.mrb[0].mxu0
    %v4645 = vadd.f32 %v4560, %v4644
    %v4646 = vpop.f32.mrb[0].mxu0
    %v4647 = vpop.f32.mrb[0].mxu0
    %v4648 = vpop.f32.mrb[0].mxu0
    %4649 = vdwg.mxu0
    %vm4650 = vcmask 203776
    %4651 = vst.msk [vmem:[%s9] sm:$0xff] %vm4650, %v4645
  $region45: #{_lambda_.1} parent=0 // pred_fallthru
    _
  // Predicated region
  $region46: #{_lambda_.1} parent=0 // pred_check
    _
  $region47: #{_lambda_.1} parent=0 // pred_check_branch
    %4653 = sbr.rel (0) target = $region49
  $region48: #{_lambda_.1} parent=0 // pred_region
    _
  $region49: #{_lambda_.1} parent=0 // pred_fallthru
    _
  // Predicated region
  $region50: #{_lambda_.1} parent=0 // pred_check
    _
  $region51: #{_lambda_.1} parent=0 // pred_check_branch
    %4655 = sbr.rel (0) target = $region53
  $region52: #{_lambda_.1} parent=0 // pred_region
    _
  $region53: #{_lambda_.1} parent=0 // pred_fallthru
    _

</llo_original>
